<compile_context>
chip_gen: v6e
topology: v6e:2x2x1
jax: 0.10.0
libtpu: 0.0.40
codegen_flags: <defaults>
</compile_context>

<pallas_src>
import jax
import jax.numpy as jnp
from jax.experimental import pallas as pl
from jax.experimental.pallas import tpu as pltpu


def _zero_halo(pad_ref, h, w):
    """Zero only the 1-element halo ring of a (h+2, w+2, c) padded scratch."""
    c = pad_ref.shape[-1]
    zrow = jnp.zeros((1, w + 2, c), pad_ref.dtype)
    pad_ref[pl.ds(0, 1), :, :] = zrow
    pad_ref[pl.ds(h + 1, 1), :, :] = zrow
    zcol = jnp.zeros((h + 2, 1, c), pad_ref.dtype)
    pad_ref[:, pl.ds(0, 1), :] = zcol
    pad_ref[:, pl.ds(w + 1, 1), :] = zcol


def _conv3x3_s1(pad_ref, wp_ref, ws_ref, h, w):
    """3x3 / stride-1 conv over a zero-padded (h+2, w+2, cin) f32 VMEM scratch.

    wp_ref: (3, 2*cin, cout) bf16 — per-dy weights for column taps dx=0,1
            concatenated along cin (K=2*cin tap pairing for the 256-wide MXU).
    ws_ref: (3, cin, cout) bf16   — per-dy weights for column tap dx=2.
    Returns the flattened-spatial (h*w, cout) f32 accumulator.
    """
    cin = ws_ref.shape[1]
    # One column-slab materialization per dx group (bf16 cast fused in); the
    # dy taps below are cheap major-dim row slices of these slabs.
    slab01 = jnp.concatenate(
        [pad_ref[:, pl.ds(0, w), :], pad_ref[:, pl.ds(1, w), :]],
        axis=-1).astype(jnp.bfloat16)                          # (h+2, w, 2*cin)
    slab2 = pad_ref[:, pl.ds(2, w), :].astype(jnp.bfloat16)    # (h+2, w, cin)

    acc = None
    for dy in range(3):
        a = slab01[dy:dy + h].reshape(h * w, 2 * cin)          # tile-preserving
        d = jnp.dot(a, wp_ref[dy], preferred_element_type=jnp.float32)
        acc = d if acc is None else acc + d
        b = slab2[dy:dy + h].reshape(h * w, cin)
        acc = acc + jnp.dot(b, ws_ref[dy], preferred_element_type=jnp.float32)
    return acc


def _conv3x3_s2(pad_ref, wp_ref, ws_ref, ho, wo):
    """3x3 / stride-2 conv over a zero-padded (2*ho+2, 2*wo+2, cin) f32 scratch."""
    cin = ws_ref.shape[1]
    hp = pad_ref.shape[0]                                      # 2*ho + 2 (even)

    def col_slab(dx):
        # Padded columns dx, dx+2, ..., dx+2*(wo-1): one sublane-strided load.
        return pad_ref[:, pl.ds(dx, wo, stride=2), :]          # (hp, wo, cin) f32

    slab01 = jnp.concatenate([col_slab(0), col_slab(1)],
                             axis=-1).astype(jnp.bfloat16)     # (hp, wo, 2*cin)
    slab2 = col_slab(2).astype(jnp.bfloat16)                   # (hp, wo, cin)

    def rows(slab, dy):
        # Row subsample via a layout-free major-dim parity split:
        # output row i with tap dy reads padded row 2*i + dy.
        s = slab.reshape(hp // 2, 2, wo, slab.shape[-1])
        if dy == 0:
            r = s[0:ho, 0]
        elif dy == 1:
            r = s[0:ho, 1]
        else:
            r = s[1:ho + 1, 0]
        return r.reshape(ho * wo, slab.shape[-1])

    acc = None
    for dy in range(3):
        d = jnp.dot(rows(slab01, dy), wp_ref[dy],
                    preferred_element_type=jnp.float32)
        acc = d if acc is None else acc + d
        acc = acc + jnp.dot(rows(slab2, dy), ws_ref[dy],
                            preferred_element_type=jnp.float32)
    return acc


def _split_weight(w):
    """PyTorch (cout, cin, 3, 3) -> bf16 (3, 2*cin, cout) for paired dx∈{0,1}
    taps plus bf16 (3, cin, cout) for the dx=2 tap."""
    wt = jnp.transpose(w, (2, 3, 1, 0)).astype(jnp.bfloat16)   # (3, 3, cin, cout)
    wp = jnp.concatenate([wt[:, 0], wt[:, 1]], axis=1)         # (3, 2*cin, cout)
    wsingle = wt[:, 2]                                         # (3, cin, cout)
    return wp, wsingle


def feature_conv_nhwc(x_nhwc, w1, w2, w3):
    """x_nhwc: (N, H, W, Cin); w*: PyTorch layout (Cout, Cin, 3, 3), bias-free.

    Returns (N, H//2, W//2, Cout) in x's dtype."""
    N, H, W, Cin = x_nhwc.shape
    Cout = w1.shape[0]
    assert H % 2 == 0 and W % 16 == 0, "demo kernel needs even H and W % 16 == 0"
    Ho, Wo = H // 2, W // 2

    # Channels on the lane axis (Cin/Cout multiples of 128 in the demo keep
    # every load/store lane-dense and the MXU contraction over C).
    w1p, w1s = _split_weight(w1)
    w2p, w2s = _split_weight(w2)
    w3p, w3s = _split_weight(w3)

    def kernel(x_ref, w1p_ref, w1s_ref, w2p_ref, w2s_ref, w3p_ref, w3s_ref,
               o_ref, xpad, y1pad, y2pad):
        # Only the halo rings need zeroing (interiors are fully overwritten
        # below).  Re-done every step: under "parallel" each core owns its own
        # initially-uninitialized scratch instance, so no n==0 init trick.
        _zero_halo(xpad, H, W)
        _zero_halo(y1pad, H, W)
        _zero_halo(y2pad, Ho, Wo)

        # Stage this batch element into the padded interior (plain f32 copy).
        xpad[pl.ds(1, H), pl.ds(1, W), :] = x_ref[0]

        # conv1: 3x3 / s1 / p1, no bias, ReLU
        y1 = jnp.maximum(_conv3x3_s1(xpad, w1p_ref, w1s_ref, H, W), 0.0)
        y1pad[pl.ds(1, H), pl.ds(1, W), :] = y1.reshape(H, W, Cout)

        # conv2: 3x3 / s2 / p1, no bias, ReLU
        y2 = jnp.maximum(_conv3x3_s2(y1pad, w2p_ref, w2s_ref, Ho, Wo), 0.0)
        y2pad[pl.ds(1, Ho), pl.ds(1, Wo), :] = y2.reshape(Ho, Wo, Cout)

        # conv3: 3x3 / s1 / p1, no bias, ReLU
        y3 = jnp.maximum(_conv3x3_s1(y2pad, w3p_ref, w3s_ref, Ho, Wo), 0.0)
        o_ref[0] = y3.reshape(Ho, Wo, Cout).astype(o_ref.dtype)

    const3 = lambda n: (0, 0, 0)
    out = pl.pallas_call(
        kernel,
        out_shape=jax.ShapeDtypeStruct((N, Ho, Wo, Cout), x_nhwc.dtype),
        grid_spec=pltpu.PrefetchScalarGridSpec(
            num_scalar_prefetch=0,
            grid=(N,),
            in_specs=[
                pl.BlockSpec((1, H, W, Cin), lambda n: (n, 0, 0, 0)),
                # Constant-index weight blocks (bf16).  TODO(synk): at
                # production Cout=512 pass these with pipeline_mode=
                # pl.Buffered(1) to avoid double-buffering the weights.
                pl.BlockSpec((3, 2 * Cin, Cout), const3),
                pl.BlockSpec((3, Cin, Cout), const3),
                pl.BlockSpec((3, 2 * Cout, Cout), const3),
                pl.BlockSpec((3, Cout, Cout), const3),
                pl.BlockSpec((3, 2 * Cout, Cout), const3),
                pl.BlockSpec((3, Cout, Cout), const3),
            ],
            out_specs=pl.BlockSpec((1, Ho, Wo, Cout), lambda n: (n, 0, 0, 0)),
            scratch_shapes=[
                pltpu.VMEM((H + 2, W + 2, Cin), jnp.float32),     # padded x
                pltpu.VMEM((H + 2, W + 2, Cout), jnp.float32),    # padded conv1 out
                pltpu.VMEM((Ho + 2, Wo + 2, Cout), jnp.float32),  # padded conv2 out
            ],
        ),
        compiler_params=pltpu.CompilerParams(
            dimension_semantics=("parallel",),
        ),
    )(x_nhwc, w1p, w1s, w2p, w2s, w3p, w3s)
    return out


@jax.jit
def feature_conv(x_nchw, w1, w2, w3):
    """PyTorch-parity entry point: NCHW in, NCHW out."""
    x_nhwc = jnp.transpose(x_nchw, (0, 2, 3, 1))
    out = feature_conv_nhwc(x_nhwc, w1, w2, w3)
    return jnp.transpose(out, (0, 3, 1, 2))


# ---------------------------------------------------------------------------
# Plain-JAX f32 reference for a correctness check.
# ---------------------------------------------------------------------------
def _reference(x_nchw, w1, w2, w3):
    dn = jax.lax.conv_dimension_numbers(x_nchw.shape, w1.shape,
                                        ("NCHW", "OIHW", "NCHW"))
    y = jax.lax.conv_general_dilated(x_nchw, w1, (1, 1), [(1, 1), (1, 1)],
                                     dimension_numbers=dn)
    y = jnp.maximum(y, 0.0)
    y = jax.lax.conv_general_dilated(y, w2, (2, 2), [(1, 1), (1, 1)],
                                     dimension_numbers=dn)
    y = jnp.maximum(y, 0.0)
    y = jax.lax.conv_general_dilated(y, w3, (1, 1), [(1, 1), (1, 1)],
                                     dimension_numbers=dn)
    return jnp.maximum(y, 0.0)


if __name__ == "__main__":
    # Small shapes consistent with the module (input_dim == output_dim).
    # 128 channels keeps the lane axis dense; N=2 keeps both v7x TCs busy.
    N, C, H, W = 2, 128, 16, 16

    key = jax.random.PRNGKey(0)
    kx, k1, k2, k3 = jax.random.split(key, 4)
    std = (2.0 / (9 * C)) ** 0.5          # He-style init keeps activations O(1)
    x = jax.random.normal(kx, (N, C, H, W), jnp.float32)
    w1 = jax.random.normal(k1, (C, C, 3, 3), jnp.float32) * std
    w2 = jax.random.normal(k2, (C, C, 3, 3), jnp.float32) * std
    w3 = jax.random.normal(k3, (C, C, 3, 3), jnp.float32) * std

    out = jax.block_until_ready(feature_conv(x, w1, w2, w3))
    ref = jax.block_until_ready(_reference(x, w1, w2, w3))

    assert out.shape == (N, C, H // 2, W // 2) and out.dtype == x.dtype
    # Precision note: the kernel uses bf16 MXU operands with f32 accumulation
    # (documented change vs the f32 reference), so the tolerance is 2e-2.
    assert jnp.allclose(out, ref, rtol=2e-2, atol=2e-2), "mismatch vs reference"
    print("KERNEL_OK")
</pallas_src>

<mosaic_0001>
module attributes {stable_mosaic.version = 11 : i64} {
  func.func @kernel(%arg0: i32, %arg1: memref<1x16x16x128xf32, #tpu.memory_space<vmem>>, %arg2: memref<3x256x128xbf16, #tpu.memory_space<vmem>>, %arg3: memref<3x128x128xbf16, #tpu.memory_space<vmem>>, %arg4: memref<3x256x128xbf16, #tpu.memory_space<vmem>>, %arg5: memref<3x128x128xbf16, #tpu.memory_space<vmem>>, %arg6: memref<3x256x128xbf16, #tpu.memory_space<vmem>>, %arg7: memref<3x128x128xbf16, #tpu.memory_space<vmem>>, %arg8: memref<1x8x8x128xf32, #tpu.memory_space<vmem>>, %arg9: memref<18x18x128xf32, #tpu.memory_space<vmem>>, %arg10: memref<18x18x128xf32, #tpu.memory_space<vmem>>, %arg11: memref<10x10x128xf32, #tpu.memory_space<vmem>>) attributes {dimension_semantics = [#tpu.dimension_semantics<parallel>], iteration_bounds = array<i64: 2>, scalar_prefetch = 0 : i64, scratch_operands = 3 : i64, tpu.core_type = #tpu.core_type<tc>, window_params = [{transform_indices = @transform_0, window_bounds = array<i64: 1, 16, 16, 128>}, {pipeline_mode = #tpu.pipeline_mode<synchronous>, transform_indices = @transform_1, window_bounds = array<i64: 3, 256, 128>}, {pipeline_mode = #tpu.pipeline_mode<synchronous>, transform_indices = @transform_2, window_bounds = array<i64: 3, 128, 128>}, {pipeline_mode = #tpu.pipeline_mode<synchronous>, transform_indices = @transform_3, window_bounds = array<i64: 3, 256, 128>}, {pipeline_mode = #tpu.pipeline_mode<synchronous>, transform_indices = @transform_4, window_bounds = array<i64: 3, 128, 128>}, {pipeline_mode = #tpu.pipeline_mode<synchronous>, transform_indices = @transform_5, window_bounds = array<i64: 3, 256, 128>}, {pipeline_mode = #tpu.pipeline_mode<synchronous>, transform_indices = @transform_6, window_bounds = array<i64: 3, 128, 128>}, {transform_indices = @transform_7, window_bounds = array<i64: 1, 8, 8, 128>}]} {
    %cst = arith.constant 0.000000e+00 : f32
    %0 = vector.broadcast %cst : f32 to vector<1x18x128xf32>
    %c0 = arith.constant 0 : index
    %c0_0 = arith.constant 0 : index
    %c0_1 = arith.constant 0 : index
    %1 = vector.load %arg9[%c0, %c0_0, %c0_1] : memref<18x18x128xf32, #tpu.memory_space<vmem>>, vector<1x18x128xf32>
    tpu.vector_store %arg9[%c0, %c0_0, %c0_1], %0 {strides = array<i32>} : memref<18x18x128xf32, #tpu.memory_space<vmem>>, vector<1x18x128xf32>,
    %c17 = arith.constant 17 : index
    %c0_2 = arith.constant 0 : index
    %c0_3 = arith.constant 0 : index
    %2 = vector.load %arg9[%c17, %c0_2, %c0_3] : memref<18x18x128xf32, #tpu.memory_space<vmem>>, vector<1x18x128xf32>
    tpu.vector_store %arg9[%c17, %c0_2, %c0_3], %0 {strides = array<i32>} : memref<18x18x128xf32, #tpu.memory_space<vmem>>, vector<1x18x128xf32>,
    %cst_4 = arith.constant 0.000000e+00 : f32
    %3 = vector.broadcast %cst_4 : f32 to vector<18x1x128xf32>
    %c0_5 = arith.constant 0 : index
    %c0_6 = arith.constant 0 : index
    %c0_7 = arith.constant 0 : index
    %4 = vector.load %arg9[%c0_5, %c0_6, %c0_7] : memref<18x18x128xf32, #tpu.memory_space<vmem>>, vector<18x1x128xf32>
    tpu.vector_store %arg9[%c0_5, %c0_6, %c0_7], %3 {strides = array<i32>} : memref<18x18x128xf32, #tpu.memory_space<vmem>>, vector<18x1x128xf32>,
    %c0_8 = arith.constant 0 : index
    %c17_9 = arith.constant 17 : index
    %c0_10 = arith.constant 0 : index
    %5 = vector.load %arg9[%c0_8, %c17_9, %c0_10] : memref<18x18x128xf32, #tpu.memory_space<vmem>>, vector<18x1x128xf32>
    tpu.vector_store %arg9[%c0_8, %c17_9, %c0_10], %3 {strides = array<i32>} : memref<18x18x128xf32, #tpu.memory_space<vmem>>, vector<18x1x128xf32>,
    %cst_11 = arith.constant 0.000000e+00 : f32
    %6 = vector.broadcast %cst_11 : f32 to vector<1x18x128xf32>
    %c0_12 = arith.constant 0 : index
    %c0_13 = arith.constant 0 : index
    %c0_14 = arith.constant 0 : index
    %7 = vector.load %arg10[%c0_12, %c0_13, %c0_14] : memref<18x18x128xf32, #tpu.memory_space<vmem>>, vector<1x18x128xf32>
    tpu.vector_store %arg10[%c0_12, %c0_13, %c0_14], %6 {strides = array<i32>} : memref<18x18x128xf32, #tpu.memory_space<vmem>>, vector<1x18x128xf32>,
    %c17_15 = arith.constant 17 : index
    %c0_16 = arith.constant 0 : index
    %c0_17 = arith.constant 0 : index
    %8 = vector.load %arg10[%c17_15, %c0_16, %c0_17] : memref<18x18x128xf32, #tpu.memory_space<vmem>>, vector<1x18x128xf32>
    tpu.vector_store %arg10[%c17_15, %c0_16, %c0_17], %6 {strides = array<i32>} : memref<18x18x128xf32, #tpu.memory_space<vmem>>, vector<1x18x128xf32>,
    %cst_18 = arith.constant 0.000000e+00 : f32
    %9 = vector.broadcast %cst_18 : f32 to vector<18x1x128xf32>
    %c0_19 = arith.constant 0 : index
    %c0_20 = arith.constant 0 : index
    %c0_21 = arith.constant 0 : index
    %10 = vector.load %arg10[%c0_19, %c0_20, %c0_21] : memref<18x18x128xf32, #tpu.memory_space<vmem>>, vector<18x1x128xf32>
    tpu.vector_store %arg10[%c0_19, %c0_20, %c0_21], %9 {strides = array<i32>} : memref<18x18x128xf32, #tpu.memory_space<vmem>>, vector<18x1x128xf32>,
    %c0_22 = arith.constant 0 : index
    %c17_23 = arith.constant 17 : index
    %c0_24 = arith.constant 0 : index
    %11 = vector.load %arg10[%c0_22, %c17_23, %c0_24] : memref<18x18x128xf32, #tpu.memory_space<vmem>>, vector<18x1x128xf32>
    tpu.vector_store %arg10[%c0_22, %c17_23, %c0_24], %9 {strides = array<i32>} : memref<18x18x128xf32, #tpu.memory_space<vmem>>, vector<18x1x128xf32>,
    %cst_25 = arith.constant 0.000000e+00 : f32
    %12 = vector.broadcast %cst_25 : f32 to vector<1x10x128xf32>
    %c0_26 = arith.constant 0 : index
    %c0_27 = arith.constant 0 : index
    %c0_28 = arith.constant 0 : index
    %13 = vector.load %arg11[%c0_26, %c0_27, %c0_28] : memref<10x10x128xf32, #tpu.memory_space<vmem>>, vector<1x10x128xf32>
    tpu.vector_store %arg11[%c0_26, %c0_27, %c0_28], %12 {strides = array<i32>} : memref<10x10x128xf32, #tpu.memory_space<vmem>>, vector<1x10x128xf32>,
    %c9 = arith.constant 9 : index
    %c0_29 = arith.constant 0 : index
    %c0_30 = arith.constant 0 : index
    %14 = vector.load %arg11[%c9, %c0_29, %c0_30] : memref<10x10x128xf32, #tpu.memory_space<vmem>>, vector<1x10x128xf32>
    tpu.vector_store %arg11[%c9, %c0_29, %c0_30], %12 {strides = array<i32>} : memref<10x10x128xf32, #tpu.memory_space<vmem>>, vector<1x10x128xf32>,
    %cst_31 = arith.constant 0.000000e+00 : f32
    %15 = vector.broadcast %cst_31 : f32 to vector<10x1x128xf32>
    %c0_32 = arith.constant 0 : index
    %c0_33 = arith.constant 0 : index
    %c0_34 = arith.constant 0 : index
    %16 = vector.load %arg11[%c0_32, %c0_33, %c0_34] : memref<10x10x128xf32, #tpu.memory_space<vmem>>, vector<10x1x128xf32>
    tpu.vector_store %arg11[%c0_32, %c0_33, %c0_34], %15 {strides = array<i32>} : memref<10x10x128xf32, #tpu.memory_space<vmem>>, vector<10x1x128xf32>,
    %c0_35 = arith.constant 0 : index
    %c9_36 = arith.constant 9 : index
    %c0_37 = arith.constant 0 : index
    %17 = vector.load %arg11[%c0_35, %c9_36, %c0_37] : memref<10x10x128xf32, #tpu.memory_space<vmem>>, vector<10x1x128xf32>
    tpu.vector_store %arg11[%c0_35, %c9_36, %c0_37], %15 {strides = array<i32>} : memref<10x10x128xf32, #tpu.memory_space<vmem>>, vector<10x1x128xf32>,
    %c0_38 = arith.constant 0 : index
    %c0_39 = arith.constant 0 : index
    %c0_40 = arith.constant 0 : index
    %c0_41 = arith.constant 0 : index
    %18 = vector.load %arg1[%c0_38, %c0_39, %c0_40, %c0_41] : memref<1x16x16x128xf32, #tpu.memory_space<vmem>>, vector<1x16x16x128xf32>
    %19 = vector.shape_cast %18 : vector<1x16x16x128xf32> to vector<16x16x128xf32>
    %c1 = arith.constant 1 : index
    %c1_42 = arith.constant 1 : index
    %c0_43 = arith.constant 0 : index
    %20 = vector.load %arg9[%c1, %c1_42, %c0_43] : memref<18x18x128xf32, #tpu.memory_space<vmem>>, vector<16x16x128xf32>
    tpu.vector_store %arg9[%c1, %c1_42, %c0_43], %19 {strides = array<i32>} : memref<18x18x128xf32, #tpu.memory_space<vmem>>, vector<16x16x128xf32>,
    %c0_44 = arith.constant 0 : index
    %c0_45 = arith.constant 0 : index
    %c0_46 = arith.constant 0 : index
    %21 = vector.load %arg9[%c0_44, %c0_45, %c0_46] : memref<18x18x128xf32, #tpu.memory_space<vmem>>, vector<18x16x128xf32>
    %c0_47 = arith.constant 0 : index
    %c1_48 = arith.constant 1 : index
    %c0_49 = arith.constant 0 : index
    %22 = vector.load %arg9[%c0_47, %c1_48, %c0_49] : memref<18x18x128xf32, #tpu.memory_space<vmem>>, vector<18x16x128xf32>
    %23 = tpu.concatenate %21, %22 in 2 : vector<18x16x128xf32>, vector<18x16x128xf32> -> vector<18x16x256xf32>
    %24 = arith.truncf %23 : vector<18x16x256xf32> to vector<18x16x256xbf16>
    %c0_50 = arith.constant 0 : index
    %c2 = arith.constant 2 : index
    %c0_51 = arith.constant 0 : index
    %25 = vector.load %arg9[%c0_50, %c2, %c0_51] : memref<18x18x128xf32, #tpu.memory_space<vmem>>, vector<18x16x128xf32>
    %26 = arith.truncf %25 : vector<18x16x128xf32> to vector<18x16x128xbf16>
    %27 = vector.extract_strided_slice %24 {offsets = [0, 0, 0], sizes = [16, 16, 256], strides = [1, 1, 1]} : vector<18x16x256xbf16> to vector<16x16x256xbf16>
    %28 = vector.shape_cast %27 : vector<16x16x256xbf16> to vector<256x256xbf16>
    %c0_52 = arith.constant 0 : index
    %c0_53 = arith.constant 0 : index
    %c0_54 = arith.constant 0 : index
    %29 = vector.load %arg2[%c0_52, %c0_53, %c0_54] : memref<3x256x128xbf16, #tpu.memory_space<vmem>>, vector<1x256x128xbf16>
    %30 = vector.shape_cast %29 : vector<1x256x128xbf16> to vector<256x128xbf16>
    %cst_55 = arith.constant dense<0.000000e+00> : vector<256x128xf32>
    %31 = tpu.matmul %28, %30, %cst_55 {dimension_numbers = #tpu.dot_dimension_numbers<[1], [0], [0], [1], [0, 0, 1, 1], [], []>} : vector<256x256xbf16>, vector<256x128xbf16>, vector<256x128xf32> -> vector<256x128xf32>
    %32 = vector.extract_strided_slice %26 {offsets = [0, 0, 0], sizes = [16, 16, 128], strides = [1, 1, 1]} : vector<18x16x128xbf16> to vector<16x16x128xbf16>
    %33 = vector.shape_cast %32 : vector<16x16x128xbf16> to vector<256x128xbf16>
    %c0_56 = arith.constant 0 : index
    %c0_57 = arith.constant 0 : index
    %c0_58 = arith.constant 0 : index
    %34 = vector.load %arg3[%c0_56, %c0_57, %c0_58] : memref<3x128x128xbf16, #tpu.memory_space<vmem>>, vector<1x128x128xbf16>
    %35 = vector.shape_cast %34 : vector<1x128x128xbf16> to vector<128x128xbf16>
    %cst_59 = arith.constant dense<0.000000e+00> : vector<256x128xf32>
    %36 = tpu.matmul %33, %35, %cst_59 {dimension_numbers = #tpu.dot_dimension_numbers<[1], [0], [0], [1], [0, 0, 1, 1], [], []>} : vector<256x128xbf16>, vector<128x128xbf16>, vector<256x128xf32> -> vector<256x128xf32>
    %37 = arith.addf %31, %36 : vector<256x128xf32>
    %38 = vector.extract_strided_slice %24 {offsets = [1, 0, 0], sizes = [16, 16, 256], strides = [1, 1, 1]} : vector<18x16x256xbf16> to vector<16x16x256xbf16>
    %39 = vector.shape_cast %38 : vector<16x16x256xbf16> to vector<256x256xbf16>
    %c1_60 = arith.constant 1 : index
    %c0_61 = arith.constant 0 : index
    %c0_62 = arith.constant 0 : index
    %40 = vector.load %arg2[%c1_60, %c0_61, %c0_62] : memref<3x256x128xbf16, #tpu.memory_space<vmem>>, vector<1x256x128xbf16>
    %41 = vector.shape_cast %40 : vector<1x256x128xbf16> to vector<256x128xbf16>
    %cst_63 = arith.constant dense<0.000000e+00> : vector<256x128xf32>
    %42 = tpu.matmul %39, %41, %cst_63 {dimension_numbers = #tpu.dot_dimension_numbers<[1], [0], [0], [1], [0, 0, 1, 1], [], []>} : vector<256x256xbf16>, vector<256x128xbf16>, vector<256x128xf32> -> vector<256x128xf32>
    %43 = arith.addf %37, %42 : vector<256x128xf32>
    %44 = vector.extract_strided_slice %26 {offsets = [1, 0, 0], sizes = [16, 16, 128], strides = [1, 1, 1]} : vector<18x16x128xbf16> to vector<16x16x128xbf16>
    %45 = vector.shape_cast %44 : vector<16x16x128xbf16> to vector<256x128xbf16>
    %c1_64 = arith.constant 1 : index
    %c0_65 = arith.constant 0 : index
    %c0_66 = arith.constant 0 : index
    %46 = vector.load %arg3[%c1_64, %c0_65, %c0_66] : memref<3x128x128xbf16, #tpu.memory_space<vmem>>, vector<1x128x128xbf16>
    %47 = vector.shape_cast %46 : vector<1x128x128xbf16> to vector<128x128xbf16>
    %cst_67 = arith.constant dense<0.000000e+00> : vector<256x128xf32>
    %48 = tpu.matmul %45, %47, %cst_67 {dimension_numbers = #tpu.dot_dimension_numbers<[1], [0], [0], [1], [0, 0, 1, 1], [], []>} : vector<256x128xbf16>, vector<128x128xbf16>, vector<256x128xf32> -> vector<256x128xf32>
    %49 = arith.addf %43, %48 : vector<256x128xf32>
    %50 = vector.extract_strided_slice %24 {offsets = [2, 0, 0], sizes = [16, 16, 256], strides = [1, 1, 1]} : vector<18x16x256xbf16> to vector<16x16x256xbf16>
    %51 = vector.shape_cast %50 : vector<16x16x256xbf16> to vector<256x256xbf16>
    %c2_68 = arith.constant 2 : index
    %c0_69 = arith.constant 0 : index
    %c0_70 = arith.constant 0 : index
    %52 = vector.load %arg2[%c2_68, %c0_69, %c0_70] : memref<3x256x128xbf16, #tpu.memory_space<vmem>>, vector<1x256x128xbf16>
    %53 = vector.shape_cast %52 : vector<1x256x128xbf16> to vector<256x128xbf16>
    %cst_71 = arith.constant dense<0.000000e+00> : vector<256x128xf32>
    %54 = tpu.matmul %51, %53, %cst_71 {dimension_numbers = #tpu.dot_dimension_numbers<[1], [0], [0], [1], [0, 0, 1, 1], [], []>} : vector<256x256xbf16>, vector<256x128xbf16>, vector<256x128xf32> -> vector<256x128xf32>
    %55 = arith.addf %49, %54 : vector<256x128xf32>
    %56 = vector.extract_strided_slice %26 {offsets = [2, 0, 0], sizes = [16, 16, 128], strides = [1, 1, 1]} : vector<18x16x128xbf16> to vector<16x16x128xbf16>
    %57 = vector.shape_cast %56 : vector<16x16x128xbf16> to vector<256x128xbf16>
    %c2_72 = arith.constant 2 : index
    %c0_73 = arith.constant 0 : index
    %c0_74 = arith.constant 0 : index
    %58 = vector.load %arg3[%c2_72, %c0_73, %c0_74] : memref<3x128x128xbf16, #tpu.memory_space<vmem>>, vector<1x128x128xbf16>
    %59 = vector.shape_cast %58 : vector<1x128x128xbf16> to vector<128x128xbf16>
    %cst_75 = arith.constant dense<0.000000e+00> : vector<256x128xf32>
    %60 = tpu.matmul %57, %59, %cst_75 {dimension_numbers = #tpu.dot_dimension_numbers<[1], [0], [0], [1], [0, 0, 1, 1], [], []>} : vector<256x128xbf16>, vector<128x128xbf16>, vector<256x128xf32> -> vector<256x128xf32>
    %61 = arith.addf %55, %60 : vector<256x128xf32>
    %cst_76 = arith.constant 0.000000e+00 : f32
    %62 = vector.broadcast %cst_76 : f32 to vector<256x128xf32>
    %63 = arith.maximumf %61, %62 : vector<256x128xf32>
    %64 = vector.shape_cast %63 : vector<256x128xf32> to vector<16x16x128xf32>
    %c1_77 = arith.constant 1 : index
    %c1_78 = arith.constant 1 : index
    %c0_79 = arith.constant 0 : index
    %65 = vector.load %arg10[%c1_77, %c1_78, %c0_79] : memref<18x18x128xf32, #tpu.memory_space<vmem>>, vector<16x16x128xf32>
    tpu.vector_store %arg10[%c1_77, %c1_78, %c0_79], %64 {strides = array<i32>} : memref<18x18x128xf32, #tpu.memory_space<vmem>>, vector<16x16x128xf32>,
    %c0_80 = arith.constant 0 : index
    %c0_81 = arith.constant 0 : index
    %c0_82 = arith.constant 0 : index
    %66 = tpu.strided_load %arg10[%c0_80, %c0_81, %c0_82] {strides = array<i32: 1, 2, 1>} : memref<18x18x128xf32, #tpu.memory_space<vmem>>, vector<18x8x128xf32>
    %c0_83 = arith.constant 0 : index
    %c1_84 = arith.constant 1 : index
    %c0_85 = arith.constant 0 : index
    %67 = tpu.strided_load %arg10[%c0_83, %c1_84, %c0_85] {strides = array<i32: 1, 2, 1>} : memref<18x18x128xf32, #tpu.memory_space<vmem>>, vector<18x8x128xf32>
    %68 = tpu.concatenate %66, %67 in 2 : vector<18x8x128xf32>, vector<18x8x128xf32> -> vector<18x8x256xf32>
    %69 = arith.truncf %68 : vector<18x8x256xf32> to vector<18x8x256xbf16>
    %c0_86 = arith.constant 0 : index
    %c2_87 = arith.constant 2 : index
    %c0_88 = arith.constant 0 : index
    %70 = tpu.strided_load %arg10[%c0_86, %c2_87, %c0_88] {strides = array<i32: 1, 2, 1>} : memref<18x18x128xf32, #tpu.memory_space<vmem>>, vector<18x8x128xf32>
    %71 = arith.truncf %70 : vector<18x8x128xf32> to vector<18x8x128xbf16>
    %72 = vector.shape_cast %69 : vector<18x8x256xbf16> to vector<9x2x8x256xbf16>
    %73 = vector.extract_strided_slice %72 {offsets = [0, 0, 0, 0], sizes = [8, 1, 8, 256], strides = [1, 1, 1, 1]} : vector<9x2x8x256xbf16> to vector<8x1x8x256xbf16>
    %74 = vector.shape_cast %73 : vector<8x1x8x256xbf16> to vector<8x8x256xbf16>
    %75 = vector.shape_cast %74 : vector<8x8x256xbf16> to vector<64x256xbf16>
    %c0_89 = arith.constant 0 : index
    %c0_90 = arith.constant 0 : index
    %c0_91 = arith.constant 0 : index
    %76 = vector.load %arg4[%c0_89, %c0_90, %c0_91] : memref<3x256x128xbf16, #tpu.memory_space<vmem>>, vector<1x256x128xbf16>
    %77 = vector.shape_cast %76 : vector<1x256x128xbf16> to vector<256x128xbf16>
    %cst_92 = arith.constant dense<0.000000e+00> : vector<64x128xf32>
    %78 = tpu.matmul %75, %77, %cst_92 {dimension_numbers = #tpu.dot_dimension_numbers<[1], [0], [0], [1], [0, 0, 1, 1], [], []>} : vector<64x256xbf16>, vector<256x128xbf16>, vector<64x128xf32> -> vector<64x128xf32>
    %79 = vector.shape_cast %71 : vector<18x8x128xbf16> to vector<9x2x8x128xbf16>
    %80 = vector.extract_strided_slice %79 {offsets = [0, 0, 0, 0], sizes = [8, 1, 8, 128], strides = [1, 1, 1, 1]} : vector<9x2x8x128xbf16> to vector<8x1x8x128xbf16>
    %81 = vector.shape_cast %80 : vector<8x1x8x128xbf16> to vector<8x8x128xbf16>
    %82 = vector.shape_cast %81 : vector<8x8x128xbf16> to vector<64x128xbf16>
    %c0_93 = arith.constant 0 : index
    %c0_94 = arith.constant 0 : index
    %c0_95 = arith.constant 0 : index
    %83 = vector.load %arg5[%c0_93, %c0_94, %c0_95] : memref<3x128x128xbf16, #tpu.memory_space<vmem>>, vector<1x128x128xbf16>
    %84 = vector.shape_cast %83 : vector<1x128x128xbf16> to vector<128x128xbf16>
    %cst_96 = arith.constant dense<0.000000e+00> : vector<64x128xf32>
    %85 = tpu.matmul %82, %84, %cst_96 {dimension_numbers = #tpu.dot_dimension_numbers<[1], [0], [0], [1], [0, 0, 1, 1], [], []>} : vector<64x128xbf16>, vector<128x128xbf16>, vector<64x128xf32> -> vector<64x128xf32>
    %86 = arith.addf %78, %85 : vector<64x128xf32>
    %87 = vector.shape_cast %69 : vector<18x8x256xbf16> to vector<9x2x8x256xbf16>
    %88 = vector.extract_strided_slice %87 {offsets = [0, 1, 0, 0], sizes = [8, 1, 8, 256], strides = [1, 1, 1, 1]} : vector<9x2x8x256xbf16> to vector<8x1x8x256xbf16>
    %89 = vector.shape_cast %88 : vector<8x1x8x256xbf16> to vector<8x8x256xbf16>
    %90 = vector.shape_cast %89 : vector<8x8x256xbf16> to vector<64x256xbf16>
    %c1_97 = arith.constant 1 : index
    %c0_98 = arith.constant 0 : index
    %c0_99 = arith.constant 0 : index
    %91 = vector.load %arg4[%c1_97, %c0_98, %c0_99] : memref<3x256x128xbf16, #tpu.memory_space<vmem>>, vector<1x256x128xbf16>
    %92 = vector.shape_cast %91 : vector<1x256x128xbf16> to vector<256x128xbf16>
    %cst_100 = arith.constant dense<0.000000e+00> : vector<64x128xf32>
    %93 = tpu.matmul %90, %92, %cst_100 {dimension_numbers = #tpu.dot_dimension_numbers<[1], [0], [0], [1], [0, 0, 1, 1], [], []>} : vector<64x256xbf16>, vector<256x128xbf16>, vector<64x128xf32> -> vector<64x128xf32>
    %94 = arith.addf %86, %93 : vector<64x128xf32>
    %95 = vector.shape_cast %71 : vector<18x8x128xbf16> to vector<9x2x8x128xbf16>
    %96 = vector.extract_strided_slice %95 {offsets = [0, 1, 0, 0], sizes = [8, 1, 8, 128], strides = [1, 1, 1, 1]} : vector<9x2x8x128xbf16> to vector<8x1x8x128xbf16>
    %97 = vector.shape_cast %96 : vector<8x1x8x128xbf16> to vector<8x8x128xbf16>
    %98 = vector.shape_cast %97 : vector<8x8x128xbf16> to vector<64x128xbf16>
    %c1_101 = arith.constant 1 : index
    %c0_102 = arith.constant 0 : index
    %c0_103 = arith.constant 0 : index
    %99 = vector.load %arg5[%c1_101, %c0_102, %c0_103] : memref<3x128x128xbf16, #tpu.memory_space<vmem>>, vector<1x128x128xbf16>
    %100 = vector.shape_cast %99 : vector<1x128x128xbf16> to vector<128x128xbf16>
    %cst_104 = arith.constant dense<0.000000e+00> : vector<64x128xf32>
    %101 = tpu.matmul %98, %100, %cst_104 {dimension_numbers = #tpu.dot_dimension_numbers<[1], [0], [0], [1], [0, 0, 1, 1], [], []>} : vector<64x128xbf16>, vector<128x128xbf16>, vector<64x128xf32> -> vector<64x128xf32>
    %102 = arith.addf %94, %101 : vector<64x128xf32>
    %103 = vector.shape_cast %69 : vector<18x8x256xbf16> to vector<9x2x8x256xbf16>
    %104 = vector.extract_strided_slice %103 {offsets = [1, 0, 0, 0], sizes = [8, 1, 8, 256], strides = [1, 1, 1, 1]} : vector<9x2x8x256xbf16> to vector<8x1x8x256xbf16>
    %105 = vector.shape_cast %104 : vector<8x1x8x256xbf16> to vector<8x8x256xbf16>
    %106 = vector.shape_cast %105 : vector<8x8x256xbf16> to vector<64x256xbf16>
    %c2_105 = arith.constant 2 : index
    %c0_106 = arith.constant 0 : index
    %c0_107 = arith.constant 0 : index
    %107 = vector.load %arg4[%c2_105, %c0_106, %c0_107] : memref<3x256x128xbf16, #tpu.memory_space<vmem>>, vector<1x256x128xbf16>
    %108 = vector.shape_cast %107 : vector<1x256x128xbf16> to vector<256x128xbf16>
    %cst_108 = arith.constant dense<0.000000e+00> : vector<64x128xf32>
    %109 = tpu.matmul %106, %108, %cst_108 {dimension_numbers = #tpu.dot_dimension_numbers<[1], [0], [0], [1], [0, 0, 1, 1], [], []>} : vector<64x256xbf16>, vector<256x128xbf16>, vector<64x128xf32> -> vector<64x128xf32>
    %110 = arith.addf %102, %109 : vector<64x128xf32>
    %111 = vector.shape_cast %71 : vector<18x8x128xbf16> to vector<9x2x8x128xbf16>
    %112 = vector.extract_strided_slice %111 {offsets = [1, 0, 0, 0], sizes = [8, 1, 8, 128], strides = [1, 1, 1, 1]} : vector<9x2x8x128xbf16> to vector<8x1x8x128xbf16>
    %113 = vector.shape_cast %112 : vector<8x1x8x128xbf16> to vector<8x8x128xbf16>
    %114 = vector.shape_cast %113 : vector<8x8x128xbf16> to vector<64x128xbf16>
    %c2_109 = arith.constant 2 : index
    %c0_110 = arith.constant 0 : index
    %c0_111 = arith.constant 0 : index
    %115 = vector.load %arg5[%c2_109, %c0_110, %c0_111] : memref<3x128x128xbf16, #tpu.memory_space<vmem>>, vector<1x128x128xbf16>
    %116 = vector.shape_cast %115 : vector<1x128x128xbf16> to vector<128x128xbf16>
    %cst_112 = arith.constant dense<0.000000e+00> : vector<64x128xf32>
    %117 = tpu.matmul %114, %116, %cst_112 {dimension_numbers = #tpu.dot_dimension_numbers<[1], [0], [0], [1], [0, 0, 1, 1], [], []>} : vector<64x128xbf16>, vector<128x128xbf16>, vector<64x128xf32> -> vector<64x128xf32>
    %118 = arith.addf %110, %117 : vector<64x128xf32>
    %cst_113 = arith.constant 0.000000e+00 : f32
    %119 = vector.broadcast %cst_113 : f32 to vector<64x128xf32>
    %120 = arith.maximumf %118, %119 : vector<64x128xf32>
    %121 = vector.shape_cast %120 : vector<64x128xf32> to vector<8x8x128xf32>
    %c1_114 = arith.constant 1 : index
    %c1_115 = arith.constant 1 : index
    %c0_116 = arith.constant 0 : index
    %122 = vector.load %arg11[%c1_114, %c1_115, %c0_116] : memref<10x10x128xf32, #tpu.memory_space<vmem>>, vector<8x8x128xf32>
    tpu.vector_store %arg11[%c1_114, %c1_115, %c0_116], %121 {strides = array<i32>} : memref<10x10x128xf32, #tpu.memory_space<vmem>>, vector<8x8x128xf32>,
    %c0_117 = arith.constant 0 : index
    %c0_118 = arith.constant 0 : index
    %c0_119 = arith.constant 0 : index
    %123 = vector.load %arg11[%c0_117, %c0_118, %c0_119] : memref<10x10x128xf32, #tpu.memory_space<vmem>>, vector<10x8x128xf32>
    %c0_120 = arith.constant 0 : index
    %c1_121 = arith.constant 1 : index
    %c0_122 = arith.constant 0 : index
    %124 = vector.load %arg11[%c0_120, %c1_121, %c0_122] : memref<10x10x128xf32, #tpu.memory_space<vmem>>, vector<10x8x128xf32>
    %125 = tpu.concatenate %123, %124 in 2 : vector<10x8x128xf32>, vector<10x8x128xf32> -> vector<10x8x256xf32>
    %126 = arith.truncf %125 : vector<10x8x256xf32> to vector<10x8x256xbf16>
    %c0_123 = arith.constant 0 : index
    %c2_124 = arith.constant 2 : index
    %c0_125 = arith.constant 0 : index
    %127 = vector.load %arg11[%c0_123, %c2_124, %c0_125] : memref<10x10x128xf32, #tpu.memory_space<vmem>>, vector<10x8x128xf32>
    %128 = arith.truncf %127 : vector<10x8x128xf32> to vector<10x8x128xbf16>
    %129 = vector.extract_strided_slice %126 {offsets = [0, 0, 0], sizes = [8, 8, 256], strides = [1, 1, 1]} : vector<10x8x256xbf16> to vector<8x8x256xbf16>
    %130 = vector.shape_cast %129 : vector<8x8x256xbf16> to vector<64x256xbf16>
    %c0_126 = arith.constant 0 : index
    %c0_127 = arith.constant 0 : index
    %c0_128 = arith.constant 0 : index
    %131 = vector.load %arg6[%c0_126, %c0_127, %c0_128] : memref<3x256x128xbf16, #tpu.memory_space<vmem>>, vector<1x256x128xbf16>
    %132 = vector.shape_cast %131 : vector<1x256x128xbf16> to vector<256x128xbf16>
    %cst_129 = arith.constant dense<0.000000e+00> : vector<64x128xf32>
    %133 = tpu.matmul %130, %132, %cst_129 {dimension_numbers = #tpu.dot_dimension_numbers<[1], [0], [0], [1], [0, 0, 1, 1], [], []>} : vector<64x256xbf16>, vector<256x128xbf16>, vector<64x128xf32> -> vector<64x128xf32>
    %134 = vector.extract_strided_slice %128 {offsets = [0, 0, 0], sizes = [8, 8, 128], strides = [1, 1, 1]} : vector<10x8x128xbf16> to vector<8x8x128xbf16>
    %135 = vector.shape_cast %134 : vector<8x8x128xbf16> to vector<64x128xbf16>
    %c0_130 = arith.constant 0 : index
    %c0_131 = arith.constant 0 : index
    %c0_132 = arith.constant 0 : index
    %136 = vector.load %arg7[%c0_130, %c0_131, %c0_132] : memref<3x128x128xbf16, #tpu.memory_space<vmem>>, vector<1x128x128xbf16>
    %137 = vector.shape_cast %136 : vector<1x128x128xbf16> to vector<128x128xbf16>
    %cst_133 = arith.constant dense<0.000000e+00> : vector<64x128xf32>
    %138 = tpu.matmul %135, %137, %cst_133 {dimension_numbers = #tpu.dot_dimension_numbers<[1], [0], [0], [1], [0, 0, 1, 1], [], []>} : vector<64x128xbf16>, vector<128x128xbf16>, vector<64x128xf32> -> vector<64x128xf32>
    %139 = arith.addf %133, %138 : vector<64x128xf32>
    %140 = vector.extract_strided_slice %126 {offsets = [1, 0, 0], sizes = [8, 8, 256], strides = [1, 1, 1]} : vector<10x8x256xbf16> to vector<8x8x256xbf16>
    %141 = vector.shape_cast %140 : vector<8x8x256xbf16> to vector<64x256xbf16>
    %c1_134 = arith.constant 1 : index
    %c0_135 = arith.constant 0 : index
    %c0_136 = arith.constant 0 : index
    %142 = vector.load %arg6[%c1_134, %c0_135, %c0_136] : memref<3x256x128xbf16, #tpu.memory_space<vmem>>, vector<1x256x128xbf16>
    %143 = vector.shape_cast %142 : vector<1x256x128xbf16> to vector<256x128xbf16>
    %cst_137 = arith.constant dense<0.000000e+00> : vector<64x128xf32>
    %144 = tpu.matmul %141, %143, %cst_137 {dimension_numbers = #tpu.dot_dimension_numbers<[1], [0], [0], [1], [0, 0, 1, 1], [], []>} : vector<64x256xbf16>, vector<256x128xbf16>, vector<64x128xf32> -> vector<64x128xf32>
    %145 = arith.addf %139, %144 : vector<64x128xf32>
    %146 = vector.extract_strided_slice %128 {offsets = [1, 0, 0], sizes = [8, 8, 128], strides = [1, 1, 1]} : vector<10x8x128xbf16> to vector<8x8x128xbf16>
    %147 = vector.shape_cast %146 : vector<8x8x128xbf16> to vector<64x128xbf16>
    %c1_138 = arith.constant 1 : index
    %c0_139 = arith.constant 0 : index
    %c0_140 = arith.constant 0 : index
    %148 = vector.load %arg7[%c1_138, %c0_139, %c0_140] : memref<3x128x128xbf16, #tpu.memory_space<vmem>>, vector<1x128x128xbf16>
    %149 = vector.shape_cast %148 : vector<1x128x128xbf16> to vector<128x128xbf16>
    %cst_141 = arith.constant dense<0.000000e+00> : vector<64x128xf32>
    %150 = tpu.matmul %147, %149, %cst_141 {dimension_numbers = #tpu.dot_dimension_numbers<[1], [0], [0], [1], [0, 0, 1, 1], [], []>} : vector<64x128xbf16>, vector<128x128xbf16>, vector<64x128xf32> -> vector<64x128xf32>
    %151 = arith.addf %145, %150 : vector<64x128xf32>
    %152 = vector.extract_strided_slice %126 {offsets = [2, 0, 0], sizes = [8, 8, 256], strides = [1, 1, 1]} : vector<10x8x256xbf16> to vector<8x8x256xbf16>
    %153 = vector.shape_cast %152 : vector<8x8x256xbf16> to vector<64x256xbf16>
    %c2_142 = arith.constant 2 : index
    %c0_143 = arith.constant 0 : index
    %c0_144 = arith.constant 0 : index
    %154 = vector.load %arg6[%c2_142, %c0_143, %c0_144] : memref<3x256x128xbf16, #tpu.memory_space<vmem>>, vector<1x256x128xbf16>
    %155 = vector.shape_cast %154 : vector<1x256x128xbf16> to vector<256x128xbf16>
    %cst_145 = arith.constant dense<0.000000e+00> : vector<64x128xf32>
    %156 = tpu.matmul %153, %155, %cst_145 {dimension_numbers = #tpu.dot_dimension_numbers<[1], [0], [0], [1], [0, 0, 1, 1], [], []>} : vector<64x256xbf16>, vector<256x128xbf16>, vector<64x128xf32> -> vector<64x128xf32>
    %157 = arith.addf %151, %156 : vector<64x128xf32>
    %158 = vector.extract_strided_slice %128 {offsets = [2, 0, 0], sizes = [8, 8, 128], strides = [1, 1, 1]} : vector<10x8x128xbf16> to vector<8x8x128xbf16>
    %159 = vector.shape_cast %158 : vector<8x8x128xbf16> to vector<64x128xbf16>
    %c2_146 = arith.constant 2 : index
    %c0_147 = arith.constant 0 : index
    %c0_148 = arith.constant 0 : index
    %160 = vector.load %arg7[%c2_146, %c0_147, %c0_148] : memref<3x128x128xbf16, #tpu.memory_space<vmem>>, vector<1x128x128xbf16>
    %161 = vector.shape_cast %160 : vector<1x128x128xbf16> to vector<128x128xbf16>
    %cst_149 = arith.constant dense<0.000000e+00> : vector<64x128xf32>
    %162 = tpu.matmul %159, %161, %cst_149 {dimension_numbers = #tpu.dot_dimension_numbers<[1], [0], [0], [1], [0, 0, 1, 1], [], []>} : vector<64x128xbf16>, vector<128x128xbf16>, vector<64x128xf32> -> vector<64x128xf32>
    %163 = arith.addf %157, %162 : vector<64x128xf32>
    %cst_150 = arith.constant 0.000000e+00 : f32
    %164 = vector.broadcast %cst_150 : f32 to vector<64x128xf32>
    %165 = arith.maximumf %163, %164 : vector<64x128xf32>
    %166 = vector.shape_cast %165 : vector<64x128xf32> to vector<8x8x128xf32>
    %c0_151 = arith.constant 0 : index
    %c0_152 = arith.constant 0 : index
    %c0_153 = arith.constant 0 : index
    %c0_154 = arith.constant 0 : index
    %167 = vector.load %arg8[%c0_151, %c0_152, %c0_153, %c0_154] : memref<1x8x8x128xf32, #tpu.memory_space<vmem>>, vector<1x8x8x128xf32>
    %168 = vector.shape_cast %167 : vector<1x8x8x128xf32> to vector<8x8x128xf32>
    %169 = vector.shape_cast %166 : vector<8x8x128xf32> to vector<1x8x8x128xf32>
    tpu.vector_store %arg8[%c0_151, %c0_152, %c0_153, %c0_154], %169 {strides = array<i32>} : memref<1x8x8x128xf32, #tpu.memory_space<vmem>>, vector<1x8x8x128xf32>,
    return
  }
  func.func @transform_0(%arg0: i32) -> (i32, i32, i32, i32) {
    %c0_i32 = arith.constant 0 : i32
    %c0_i32_0 = arith.constant 0 : i32
    %c0_i32_1 = arith.constant 0 : i32
    %c0_i32_2 = arith.constant 0 : i32
    return %arg0, %c0_i32, %c0_i32_0, %c0_i32_1 : i32, i32, i32, i32
  }
  func.func @transform_1(%arg0: i32) -> (i32, i32, i32) {
    %c0_i32 = arith.constant 0 : i32
    %c0_i32_0 = arith.constant 0 : i32
    %c0_i32_1 = arith.constant 0 : i32
    %c0_i32_2 = arith.constant 0 : i32
    return %c0_i32, %c0_i32_0, %c0_i32_1 : i32, i32, i32
  }
  func.func @transform_2(%arg0: i32) -> (i32, i32, i32) {
    %c0_i32 = arith.constant 0 : i32
    %c0_i32_0 = arith.constant 0 : i32
    %c0_i32_1 = arith.constant 0 : i32
    %c0_i32_2 = arith.constant 0 : i32
    return %c0_i32, %c0_i32_0, %c0_i32_1 : i32, i32, i32
  }
  func.func @transform_3(%arg0: i32) -> (i32, i32, i32) {
    %c0_i32 = arith.constant 0 : i32
    %c0_i32_0 = arith.constant 0 : i32
    %c0_i32_1 = arith.constant 0 : i32
    %c0_i32_2 = arith.constant 0 : i32
    return %c0_i32, %c0_i32_0, %c0_i32_1 : i32, i32, i32
  }
  func.func @transform_4(%arg0: i32) -> (i32, i32, i32) {
    %c0_i32 = arith.constant 0 : i32
    %c0_i32_0 = arith.constant 0 : i32
    %c0_i32_1 = arith.constant 0 : i32
    %c0_i32_2 = arith.constant 0 : i32
    return %c0_i32, %c0_i32_0, %c0_i32_1 : i32, i32, i32
  }
  func.func @transform_5(%arg0: i32) -> (i32, i32, i32) {
    %c0_i32 = arith.constant 0 : i32
    %c0_i32_0 = arith.constant 0 : i32
    %c0_i32_1 = arith.constant 0 : i32
    %c0_i32_2 = arith.constant 0 : i32
    return %c0_i32, %c0_i32_0, %c0_i32_1 : i32, i32, i32
  }
  func.func @transform_6(%arg0: i32) -> (i32, i32, i32) {
    %c0_i32 = arith.constant 0 : i32
    %c0_i32_0 = arith.constant 0 : i32
    %c0_i32_1 = arith.constant 0 : i32
    %c0_i32_2 = arith.constant 0 : i32
    return %c0_i32, %c0_i32_0, %c0_i32_1 : i32, i32, i32
  }
  func.func @transform_7(%arg0: i32) -> (i32, i32, i32, i32) {
    %c0_i32 = arith.constant 0 : i32
    %c0_i32_0 = arith.constant 0 : i32
    %c0_i32_1 = arith.constant 0 : i32
    %c0_i32_2 = arith.constant 0 : i32
    return %arg0, %c0_i32, %c0_i32_0, %c0_i32_1 : i32, i32, i32, i32
  }
}

</mosaic_0001>

<llo_original>
// kernel: feature_conv.1
$region0: #{feature_conv.1}
  #allocation0 [shape = 'u32[]', space=smem, size = 0x4, offset = 0x4, fixed_abs, tag = 'smem constant byte address 0x4 - core index']
  #allocation1 [shape = 'u32[144,128]{1,0:T(1,128)}', space=vmem, size = 0x12000, scoped, tag = 'internal scratch']
  #allocation2 [shape = 'f32[18,18,128]{2,1,0:T(8,128)}', space=vmem, size = 0x36000, scoped, tag = 'scratch operand']
  #allocation3 [shape = 'f32[18,18,128]{2,1,0:T(8,128)}', space=vmem, size = 0x36000, scoped, tag = 'scratch operand']
  #allocation4 [shape = 'f32[10,10,128]{2,1,0:T(8,128)}', space=vmem, size = 0x14000, scoped, tag = 'scratch operand']
  %s0 = inlined_call_operand.vmem [shape: f32[2,16,16,128], index: 0, kind: input, shape index: {}]
  %s1 = inlined_call_operand.vmem [shape: bf16[3,256,128], index: 1, kind: input, shape index: {}]
  %s2 = inlined_call_operand.vmem [shape: bf16[3,128,128], index: 2, kind: input, shape index: {}]
  %s3 = inlined_call_operand.vmem [shape: bf16[3,256,128], index: 3, kind: input, shape index: {}]
  %s4 = inlined_call_operand.vmem [shape: bf16[3,128,128], index: 4, kind: input, shape index: {}]
  %s5 = inlined_call_operand.vmem [shape: bf16[3,256,128], index: 5, kind: input, shape index: {}]
  %s6 = inlined_call_operand.vmem [shape: bf16[3,128,128], index: 6, kind: input, shape index: {}]
  %s7 = inlined_call_operand.hbm [shape: f32[2,8,8,128], index: 7, kind: output, shape index: {}]
  %s8 = sld [smem:[#allocation0]]
  $region61: #{feature_conv.1} parent=0
    _
  %s10 = ssub.s32 1, %s8
  %s11 = scalar_select 0, %s10, %s8
  $region1: #{feature_conv.1} parent=0
    #allocation5 [shape = 'u8[65536]{0}', space=vmem, size = 0x10000, scoped, tag = 'output window, operand 0']
    #allocation6 [shape = 's32[2]{0}', space=sflag, size = 0x8, scoped, tag = 'scoped memory for feature_conv.1']
    %12 = vsyncpa [#allocation6], 0
    %s13 = scalar_lea.sflag [#allocation6], 1
    %14 = vsyncpa %s13, 0
    loop: start=0, step=1, limit=4
    $region2: #{feature_conv.1} parent=1 // loop_pre_header
      _
    $region3: #{feature_conv.1} parent=1 // loop_header
      %s16 = sphi 0, %s20
      %p17 = scmp.ge.s32.totalorder %s16, 4
      %s26 = sphi 0, %s28
      %s29 = sphi 0, %s26
      %s30 = sphi 0, %s29
      %s46 = sphi 0, %s30
      %s50 = sphi 0, %s50
      %s52 = sphi 0, %s50
      %s53 = sphi 0, %s52
      %s67 = sphi 0, %s53
      %s71 = sphi 0, %s71
      %s73 = sphi 0, %s71
      %s74 = sphi 0, %s73
      %s88 = sphi 0, %s74
      %s92 = sphi 0, %s92
      %s94 = sphi 0, %s92
      %s95 = sphi 0, %s94
      %s109 = sphi 0, %s95
      %s113 = sphi 0, %s113
      %s115 = sphi 0, %s113
      %s116 = sphi 0, %s115
      %s130 = sphi 0, %s116
      %s134 = sphi 0, %s134
      %s136 = sphi 0, %s134
      %s137 = sphi 0, %s136
      %s151 = sphi 0, %s137
      %s155 = sphi 0, %s155
      %s157 = sphi 0, %s155
      %s158 = sphi 0, %s157
      %s172 = sphi 0, %s158
      %s178 = sphi 0, %s180
      %s181 = sphi 0, %s178
      %s182 = sphi 0, %s181
      %s198 = sphi 0, %s182
    $region4: #{feature_conv.1} parent=1 // loop_header_branch
      %19 = sbr.rel (%p17) target = $region8
    $region5: #{feature_conv.1} parent=1 // loop_body
      %s21 = ssub.s32 %s16, 1
      %s22 = ssub.s32 %s16, 2
      %s23 = sadd.s32 %s16, 1
      %s24 = ssub.s32 %s16, %s23
      %p25 = scmp.eq.s32.totalorder %s24, 0
      %s27 = sadd.s32 %s26, 1
      %s28 = scalar_select %p25, %s26, %s27
      %p31 = pneg %p25
      %p32 = scmp.eq.s32.totalorder %s16, 1
      %p33 = por %p31, %p32
      %p34 = scmp.ne.s32.totalorder %s26, %s29
      %p35 = scmp.eq.s32.totalorder %s16, 0
      %p36 = por %p34, %p35
      %p37 = scmp.ne.s32.totalorder %s26, %s29
      %p38 = scmp.eq.s32.totalorder %s21, 1
      %p39 = por %p37, %p38
      %p40 = scmp.ne.s32.totalorder %s29, %s30
      %p41 = scmp.eq.s32.totalorder %s21, 0
      %p42 = por %p40, %p41
      %p43 = scmp.ne.s32.totalorder %s29, %s30
      %p44 = scmp.eq.s32.totalorder %s22, 1
      %p45 = por %p43, %p44
      %p47 = scmp.ne.s32.totalorder %s30, %s46
      %p48 = scmp.eq.s32.totalorder %s22, 0
      %p49 = por %p47, %p48
      %s51 = sadd.s32 %s50, 1
      %p54 = scmp.eq.s32.totalorder %s16, 1
      %p55 = scmp.ne.s32.totalorder %s50, %s52
      %p56 = scmp.eq.s32.totalorder %s16, 0
      %p57 = por %p55, %p56
      %p58 = scmp.ne.s32.totalorder %s50, %s52
      %p59 = scmp.eq.s32.totalorder %s21, 1
      %p60 = por %p58, %p59
      %p61 = scmp.ne.s32.totalorder %s52, %s53
      %p62 = scmp.eq.s32.totalorder %s21, 0
      %p63 = por %p61, %p62
      %p64 = scmp.ne.s32.totalorder %s52, %s53
      %p65 = scmp.eq.s32.totalorder %s22, 1
      %p66 = por %p64, %p65
      %p68 = scmp.ne.s32.totalorder %s53, %s67
      %p69 = scmp.eq.s32.totalorder %s22, 0
      %p70 = por %p68, %p69
      %s72 = sadd.s32 %s71, 1
      %p75 = scmp.eq.s32.totalorder %s16, 1
      %p76 = scmp.ne.s32.totalorder %s71, %s73
      %p77 = scmp.eq.s32.totalorder %s16, 0
      %p78 = por %p76, %p77
      %p79 = scmp.ne.s32.totalorder %s71, %s73
      %p80 = scmp.eq.s32.totalorder %s21, 1
      %p81 = por %p79, %p80
      %p82 = scmp.ne.s32.totalorder %s73, %s74
      %p83 = scmp.eq.s32.totalorder %s21, 0
      %p84 = por %p82, %p83
      %p85 = scmp.ne.s32.totalorder %s73, %s74
      %p86 = scmp.eq.s32.totalorder %s22, 1
      %p87 = por %p85, %p86
      %p89 = scmp.ne.s32.totalorder %s74, %s88
      %p90 = scmp.eq.s32.totalorder %s22, 0
      %p91 = por %p89, %p90
      %s93 = sadd.s32 %s92, 1
      %p96 = scmp.eq.s32.totalorder %s16, 1
      %p97 = scmp.ne.s32.totalorder %s92, %s94
      %p98 = scmp.eq.s32.totalorder %s16, 0
      %p99 = por %p97, %p98
      %p100 = scmp.ne.s32.totalorder %s92, %s94
      %p101 = scmp.eq.s32.totalorder %s21, 1
      %p102 = por %p100, %p101
      %p103 = scmp.ne.s32.totalorder %s94, %s95
      %p104 = scmp.eq.s32.totalorder %s21, 0
      %p105 = por %p103, %p104
      %p106 = scmp.ne.s32.totalorder %s94, %s95
      %p107 = scmp.eq.s32.totalorder %s22, 1
      %p108 = por %p106, %p107
      %p110 = scmp.ne.s32.totalorder %s95, %s109
      %p111 = scmp.eq.s32.totalorder %s22, 0
      %p112 = por %p110, %p111
      %s114 = sadd.s32 %s113, 1
      %p117 = scmp.eq.s32.totalorder %s16, 1
      %p118 = scmp.ne.s32.totalorder %s113, %s115
      %p119 = scmp.eq.s32.totalorder %s16, 0
      %p120 = por %p118, %p119
      %p121 = scmp.ne.s32.totalorder %s113, %s115
      %p122 = scmp.eq.s32.totalorder %s21, 1
      %p123 = por %p121, %p122
      %p124 = scmp.ne.s32.totalorder %s115, %s116
      %p125 = scmp.eq.s32.totalorder %s21, 0
      %p126 = por %p124, %p125
      %p127 = scmp.ne.s32.totalorder %s115, %s116
      %p128 = scmp.eq.s32.totalorder %s22, 1
      %p129 = por %p127, %p128
      %p131 = scmp.ne.s32.totalorder %s116, %s130
      %p132 = scmp.eq.s32.totalorder %s22, 0
      %p133 = por %p131, %p132
      %s135 = sadd.s32 %s134, 1
      %p138 = scmp.eq.s32.totalorder %s16, 1
      %p139 = scmp.ne.s32.totalorder %s134, %s136
      %p140 = scmp.eq.s32.totalorder %s16, 0
      %p141 = por %p139, %p140
      %p142 = scmp.ne.s32.totalorder %s134, %s136
      %p143 = scmp.eq.s32.totalorder %s21, 1
      %p144 = por %p142, %p143
      %p145 = scmp.ne.s32.totalorder %s136, %s137
      %p146 = scmp.eq.s32.totalorder %s21, 0
      %p147 = por %p145, %p146
      %p148 = scmp.ne.s32.totalorder %s136, %s137
      %p149 = scmp.eq.s32.totalorder %s22, 1
      %p150 = por %p148, %p149
      %p152 = scmp.ne.s32.totalorder %s137, %s151
      %p153 = scmp.eq.s32.totalorder %s22, 0
      %p154 = por %p152, %p153
      %s156 = sadd.s32 %s155, 1
      %p159 = scmp.eq.s32.totalorder %s16, 1
      %p160 = scmp.ne.s32.totalorder %s155, %s157
      %p161 = scmp.eq.s32.totalorder %s16, 0
      %p162 = por %p160, %p161
      %p163 = scmp.ne.s32.totalorder %s155, %s157
      %p164 = scmp.eq.s32.totalorder %s21, 1
      %p165 = por %p163, %p164
      %p166 = scmp.ne.s32.totalorder %s157, %s158
      %p167 = scmp.eq.s32.totalorder %s21, 0
      %p168 = por %p166, %p167
      %p169 = scmp.ne.s32.totalorder %s157, %s158
      %p170 = scmp.eq.s32.totalorder %s22, 1
      %p171 = por %p169, %p170
      %p173 = scmp.ne.s32.totalorder %s158, %s172
      %p174 = scmp.eq.s32.totalorder %s22, 0
      %p175 = por %p173, %p174
      %s176 = ssub.s32 %s16, %s23
      %p177 = scmp.eq.s32.totalorder %s176, 0
      %s179 = sadd.s32 %s178, 1
      %s180 = scalar_select %p177, %s178, %s179
      %p183 = pneg %p177
      %p184 = scmp.eq.s32.totalorder %s16, 1
      %p185 = por %p183, %p184
      %p186 = scmp.ne.s32.totalorder %s178, %s181
      %p187 = scmp.eq.s32.totalorder %s16, 0
      %p188 = por %p186, %p187
      %p189 = scmp.ne.s32.totalorder %s178, %s181
      %p190 = scmp.eq.s32.totalorder %s21, 1
      %p191 = por %p189, %p190
      %p192 = scmp.ne.s32.totalorder %s181, %s182
      %p193 = scmp.eq.s32.totalorder %s21, 0
      %p194 = por %p192, %p193
      %p195 = scmp.ne.s32.totalorder %s181, %s182
      %p196 = scmp.eq.s32.totalorder %s22, 1
      %p197 = por %p195, %p196
      %p199 = scmp.ne.s32.totalorder %s182, %s198
      %p200 = scmp.eq.s32.totalorder %s22, 0
      %p201 = por %p199, %p200
      %p202 = scmp.le.s32.totalorder 1, %s16
      %p203 = scmp.lt.s32.totalorder %s16, 3
      %p204 = pnand %p202, %p203
      %p205 = pneg %p204
      // Predicated region
      $region9: #{feature_conv.1} parent=5 // pred_check
        _
      $region10: #{feature_conv.1} parent=5 // pred_check_branch
        %207 = sbr.rel (%p204) target = $region12
      $region11: #{feature_conv.1} parent=5 // pred_region
        %s208 = ssub.s32 %s16, 1
        // Predicated region
        $region13: #{feature_conv.1} parent=11 // pred_check
          %p209 = pneg %p63
        $region14: #{feature_conv.1} parent=11 // pred_check_branch
          %211 = sbr.rel (%p209) target = $region16
        $region15: #{feature_conv.1} parent=11 // pred_region
          _
        $region16: #{feature_conv.1} parent=11 // pred_fallthru
          _
        // Predicated region
        $region17: #{feature_conv.1} parent=11 // pred_check
          %p212 = pneg %p84
        $region18: #{feature_conv.1} parent=11 // pred_check_branch
          %214 = sbr.rel (%p212) target = $region20
        $region19: #{feature_conv.1} parent=11 // pred_region
          _
        $region20: #{feature_conv.1} parent=11 // pred_fallthru
          _
        // Predicated region
        $region21: #{feature_conv.1} parent=11 // pred_check
          %p215 = pneg %p105
        $region22: #{feature_conv.1} parent=11 // pred_check_branch
          %217 = sbr.rel (%p215) target = $region24
        $region23: #{feature_conv.1} parent=11 // pred_region
          _
        $region24: #{feature_conv.1} parent=11 // pred_fallthru
          _
        // Predicated region
        $region25: #{feature_conv.1} parent=11 // pred_check
          %p218 = pneg %p126
        $region26: #{feature_conv.1} parent=11 // pred_check_branch
          %220 = sbr.rel (%p218) target = $region28
        $region27: #{feature_conv.1} parent=11 // pred_region
          _
        $region28: #{feature_conv.1} parent=11 // pred_fallthru
          _
        // Predicated region
        $region29: #{feature_conv.1} parent=11 // pred_check
          %p221 = pneg %p147
        $region30: #{feature_conv.1} parent=11 // pred_check_branch
          %223 = sbr.rel (%p221) target = $region32
        $region31: #{feature_conv.1} parent=11 // pred_region
          _
        $region32: #{feature_conv.1} parent=11 // pred_fallthru
          _
        // Predicated region
        $region33: #{feature_conv.1} parent=11 // pred_check
          %p224 = pneg %p168
        $region34: #{feature_conv.1} parent=11 // pred_check_branch
          %226 = sbr.rel (%p224) target = $region36
        $region35: #{feature_conv.1} parent=11 // pred_region
          _
        $region36: #{feature_conv.1} parent=11 // pred_fallthru
          _
      $region12: #{feature_conv.1} parent=5 // pred_fallthru
        _
      %p227 = scmp.lt.s32.totalorder %s16, 2
      // Predicated region
      $region37: #{feature_conv.1} parent=5 // pred_check
        %p228 = pneg %p227
      $region38: #{feature_conv.1} parent=5 // pred_check_branch
        %230 = sbr.rel (%p228) target = $region40
      $region39: #{feature_conv.1} parent=5 // pred_region
        // Predicated region
        $region41: #{feature_conv.1} parent=39 // pred_check
          %p231 = pneg %p36
        $region42: #{feature_conv.1} parent=39 // pred_check_branch
          %233 = sbr.rel (%p231) target = $region44
        $region43: #{feature_conv.1} parent=39 // pred_region
          %p234 = scmp.lt.s32.totalorder %s16, 1
          %s235 = scalar_select %p234, %s16, 1
          %s236 = smul.addr %s235, 32
          %s237 = smul.addr %s236, 8
          %s238 = scalar_lea.vmem %s0, %s237
        $region44: #{feature_conv.1} parent=39 // pred_fallthru
          _
      $region40: #{feature_conv.1} parent=5 // pred_fallthru
        _
      %p239 = scmp.le.s32.totalorder 1, %s16
      %p240 = scmp.lt.s32.totalorder %s16, 3
      %p241 = pnand %p239, %p240
      %p242 = pneg %p241
      // Predicated region
      $region45: #{feature_conv.1} parent=5 // pred_check
        _
      $region46: #{feature_conv.1} parent=5 // pred_check_branch
        %244 = sbr.rel (%p241) target = $region48
      $region47: #{feature_conv.1} parent=5 // pred_region
        %s245 = ssub.s32 %s16, 1
        %p246 = scmp.lt.s32.totalorder %s21, 1
        %s247 = scalar_select %p246, %s21, 1
        %s248 = smul.addr %s247, 32
        %s249 = smul.addr %s248, 8
        %s250 = scalar_lea.vmem %s0, %s249
        %p251 = pneg %p42
        %p252 = pneg %p39
        %p253 = pneg %p63
        %p254 = pneg %p60
        %p255 = pneg %p84
        %p256 = pneg %p81
        %p257 = pneg %p105
        %p258 = pneg %p102
        %p259 = pneg %p126
        %p260 = pneg %p123
        %p261 = pneg %p147
        %p262 = pneg %p144
        %p263 = pneg %p168
        %p264 = pneg %p165
        %p265 = pneg %p194
        %p266 = pneg %p191
        %s267 = sand.u32 %s181, 1
        %s268 = scalar_lea.sflag [#allocation6], %s267
        %s269 = sand.u32 %s181, 1
        %s270 = smul.addr %s269, 64
        %s271 = scalar_lea.vmem [#allocation5], %s270
        %p272 = scmp.lt.s32.totalorder %s21, 1
        %s273 = scalar_select %p272, %s21, 1
        %s274 = smul.addr %s273, 32
        %s275 = smul.addr %s274, 8
        %s276 = scalar_lea.vmem %s0, %s275
        %278 = vst [vmem:[#allocation2] sm:$0xff] 0.0
        %279 = vst [vmem:[#allocation2 + $0x8] sm:$0xff] 0.0
        %280 = vst [vmem:[#allocation2 + $0x10] sm:$0x3] 0.0
        %s281 = scalar_lea.vmem [#allocation2], 408
        %282 = vst [vmem:[%s281] sm:$0xff] 0.0
        %283 = vst [vmem:[%s281 + $0x8] sm:$0xff] 0.0
        %284 = vst [vmem:[%s281 + $0x10] sm:$0x3] 0.0
        %285 = vst [vmem:[#allocation2] sm:$0x1] 0.0
        %286 = vst [vmem:[#allocation2 + $0x18] sm:$0x1] 0.0
        %287 = vst [vmem:[#allocation2 + $0x30] sm:$0x1] 0.0
        %288 = vst [vmem:[#allocation2 + $0x48] sm:$0x1] 0.0
        %289 = vst [vmem:[#allocation2 + $0x60] sm:$0x1] 0.0
        %290 = vst [vmem:[#allocation2 + $0x78] sm:$0x1] 0.0
        %291 = vst [vmem:[#allocation2 + $0x90] sm:$0x1] 0.0
        %292 = vst [vmem:[#allocation2 + $0xa8] sm:$0x1] 0.0
        %293 = vst [vmem:[#allocation2 + $0xc0] sm:$0x1] 0.0
        %294 = vst [vmem:[#allocation2 + $0xd8] sm:$0x1] 0.0
        %295 = vst [vmem:[#allocation2 + $0xf0] sm:$0x1] 0.0
        %296 = vst [vmem:[#allocation2 + $0x108] sm:$0x1] 0.0
        %297 = vst [vmem:[#allocation2 + $0x120] sm:$0x1] 0.0
        %298 = vst [vmem:[#allocation2 + $0x138] sm:$0x1] 0.0
        %299 = vst [vmem:[#allocation2 + $0x150] sm:$0x1] 0.0
        %300 = vst [vmem:[#allocation2 + $0x168] sm:$0x1] 0.0
        %301 = vst [vmem:[#allocation2 + $0x180] sm:$0x1] 0.0
        %302 = vst [vmem:[#allocation2 + $0x198] sm:$0x1] 0.0
        %303 = vst [vmem:[#allocation2 + $0x11] sm:$0x1] 0.0
        %304 = vst [vmem:[#allocation2 + $0x29] sm:$0x1] 0.0
        %305 = vst [vmem:[#allocation2 + $0x41] sm:$0x1] 0.0
        %306 = vst [vmem:[#allocation2 + $0x59] sm:$0x1] 0.0
        %307 = vst [vmem:[#allocation2 + $0x71] sm:$0x1] 0.0
        %308 = vst [vmem:[#allocation2 + $0x89] sm:$0x1] 0.0
        %309 = vst [vmem:[#allocation2 + $0xa1] sm:$0x1] 0.0
        %310 = vst [vmem:[#allocation2 + $0xb9] sm:$0x1] 0.0
        %311 = vst [vmem:[#allocation2 + $0xd1] sm:$0x1] 0.0
        %312 = vst [vmem:[#allocation2 + $0xe9] sm:$0x1] 0.0
        %313 = vst [vmem:[#allocation2 + $0x101] sm:$0x1] 0.0
        %314 = vst [vmem:[#allocation2 + $0x119] sm:$0x1] 0.0
        %315 = vst [vmem:[#allocation2 + $0x131] sm:$0x1] 0.0
        %316 = vst [vmem:[#allocation2 + $0x149] sm:$0x1] 0.0
        %317 = vst [vmem:[#allocation2 + $0x161] sm:$0x1] 0.0
        %318 = vst [vmem:[#allocation2 + $0x179] sm:$0x1] 0.0
        %319 = vst [vmem:[#allocation2 + $0x191] sm:$0x1] 0.0
        %320 = vst [vmem:[#allocation2 + $0x1a9] sm:$0x1] 0.0
        %321 = vst [vmem:[#allocation3] sm:$0xff] 0.0
        %322 = vst [vmem:[#allocation3 + $0x8] sm:$0xff] 0.0
        %323 = vst [vmem:[#allocation3 + $0x10] sm:$0x3] 0.0
        %s324 = scalar_lea.vmem [#allocation3], 408
        %325 = vst [vmem:[%s324] sm:$0xff] 0.0
        %326 = vst [vmem:[%s324 + $0x8] sm:$0xff] 0.0
        %327 = vst [vmem:[%s324 + $0x10] sm:$0x3] 0.0
        %328 = vst [vmem:[#allocation3] sm:$0x1] 0.0
        %329 = vst [vmem:[#allocation3 + $0x18] sm:$0x1] 0.0
        %330 = vst [vmem:[#allocation3 + $0x30] sm:$0x1] 0.0
        %331 = vst [vmem:[#allocation3 + $0x48] sm:$0x1] 0.0
        %332 = vst [vmem:[#allocation3 + $0x60] sm:$0x1] 0.0
        %333 = vst [vmem:[#allocation3 + $0x78] sm:$0x1] 0.0
        %334 = vst [vmem:[#allocation3 + $0x90] sm:$0x1] 0.0
        %335 = vst [vmem:[#allocation3 + $0xa8] sm:$0x1] 0.0
        %336 = vst [vmem:[#allocation3 + $0xc0] sm:$0x1] 0.0
        %337 = vst [vmem:[#allocation3 + $0xd8] sm:$0x1] 0.0
        %338 = vst [vmem:[#allocation3 + $0xf0] sm:$0x1] 0.0
        %339 = vst [vmem:[#allocation3 + $0x108] sm:$0x1] 0.0
        %340 = vst [vmem:[#allocation3 + $0x120] sm:$0x1] 0.0
        %341 = vst [vmem:[#allocation3 + $0x138] sm:$0x1] 0.0
        %342 = vst [vmem:[#allocation3 + $0x150] sm:$0x1] 0.0
        %343 = vst [vmem:[#allocation3 + $0x168] sm:$0x1] 0.0
        %344 = vst [vmem:[#allocation3 + $0x180] sm:$0x1] 0.0
        %345 = vst [vmem:[#allocation3 + $0x198] sm:$0x1] 0.0
        %346 = vst [vmem:[#allocation3 + $0x11] sm:$0x1] 0.0
        %347 = vst [vmem:[#allocation3 + $0x29] sm:$0x1] 0.0
        %348 = vst [vmem:[#allocation3 + $0x41] sm:$0x1] 0.0
        %349 = vst [vmem:[#allocation3 + $0x59] sm:$0x1] 0.0
        %350 = vst [vmem:[#allocation3 + $0x71] sm:$0x1] 0.0
        %351 = vst [vmem:[#allocation3 + $0x89] sm:$0x1] 0.0
        %352 = vst [vmem:[#allocation3 + $0xa1] sm:$0x1] 0.0
        %353 = vst [vmem:[#allocation3 + $0xb9] sm:$0x1] 0.0
        %354 = vst [vmem:[#allocation3 + $0xd1] sm:$0x1] 0.0
        %355 = vst [vmem:[#allocation3 + $0xe9] sm:$0x1] 0.0
        %356 = vst [vmem:[#allocation3 + $0x101] sm:$0x1] 0.0
        %357 = vst [vmem:[#allocation3 + $0x119] sm:$0x1] 0.0
        %358 = vst [vmem:[#allocation3 + $0x131] sm:$0x1] 0.0
        %359 = vst [vmem:[#allocation3 + $0x149] sm:$0x1] 0.0
        %360 = vst [vmem:[#allocation3 + $0x161] sm:$0x1] 0.0
        %361 = vst [vmem:[#allocation3 + $0x179] sm:$0x1] 0.0
        %362 = vst [vmem:[#allocation3 + $0x191] sm:$0x1] 0.0
        %363 = vst [vmem:[#allocation3 + $0x1a9] sm:$0x1] 0.0
        %364 = vst [vmem:[#allocation4] sm:$0xff] 0.0
        %365 = vst [vmem:[#allocation4 + $0x8] sm:$0x3] 0.0
        %s366 = scalar_lea.vmem [#allocation4], 144
        %367 = vst [vmem:[%s366] sm:$0xff] 0.0
        %368 = vst [vmem:[%s366 + $0x8] sm:$0x3] 0.0
        %369 = vst [vmem:[#allocation4] sm:$0x1] 0.0
        %370 = vst [vmem:[#allocation4 + $0x10] sm:$0x1] 0.0
        %371 = vst [vmem:[#allocation4 + $0x20] sm:$0x1] 0.0
        %372 = vst [vmem:[#allocation4 + $0x30] sm:$0x1] 0.0
        %373 = vst [vmem:[#allocation4 + $0x40] sm:$0x1] 0.0
        %374 = vst [vmem:[#allocation4 + $0x50] sm:$0x1] 0.0
        %375 = vst [vmem:[#allocation4 + $0x60] sm:$0x1] 0.0
        %376 = vst [vmem:[#allocation4 + $0x70] sm:$0x1] 0.0
        %377 = vst [vmem:[#allocation4 + $0x80] sm:$0x1] 0.0
        %378 = vst [vmem:[#allocation4 + $0x90] sm:$0x1] 0.0
        %379 = vst [vmem:[#allocation4 + $0x9] sm:$0x1] 0.0
        %380 = vst [vmem:[#allocation4 + $0x19] sm:$0x1] 0.0
        %381 = vst [vmem:[#allocation4 + $0x29] sm:$0x1] 0.0
        %382 = vst [vmem:[#allocation4 + $0x39] sm:$0x1] 0.0
        %383 = vst [vmem:[#allocation4 + $0x49] sm:$0x1] 0.0
        %384 = vst [vmem:[#allocation4 + $0x59] sm:$0x1] 0.0
        %385 = vst [vmem:[#allocation4 + $0x69] sm:$0x1] 0.0
        %386 = vst [vmem:[#allocation4 + $0x79] sm:$0x1] 0.0
        %387 = vst [vmem:[#allocation4 + $0x89] sm:$0x1] 0.0
        %388 = vst [vmem:[#allocation4 + $0x99] sm:$0x1] 0.0
        %v389 = vld [vmem:[%s276] sm:$0xff]
        %v390 = vld [vmem:[%s276 + $0x8] sm:$0xff]
        %v391 = vld [vmem:[%s276 + $0x10] sm:$0xff]
        %v392 = vld [vmem:[%s276 + $0x18] sm:$0xff]
        %v393 = vld [vmem:[%s276 + $0x20] sm:$0xff]
        %v394 = vld [vmem:[%s276 + $0x28] sm:$0xff]
        %v395 = vld [vmem:[%s276 + $0x30] sm:$0xff]
        %v396 = vld [vmem:[%s276 + $0x38] sm:$0xff]
        %v397 = vld [vmem:[%s276 + $0x40] sm:$0xff]
        %v398 = vld [vmem:[%s276 + $0x48] sm:$0xff]
        %v399 = vld [vmem:[%s276 + $0x50] sm:$0xff]
        %v400 = vld [vmem:[%s276 + $0x58] sm:$0xff]
        %v401 = vld [vmem:[%s276 + $0x60] sm:$0xff]
        %v402 = vld [vmem:[%s276 + $0x68] sm:$0xff]
        %v403 = vld [vmem:[%s276 + $0x70] sm:$0xff]
        %v404 = vld [vmem:[%s276 + $0x78] sm:$0xff]
        %v405 = vld [vmem:[%s276 + $0x80] sm:$0xff]
        %v406 = vld [vmem:[%s276 + $0x88] sm:$0xff]
        %v407 = vld [vmem:[%s276 + $0x90] sm:$0xff]
        %v408 = vld [vmem:[%s276 + $0x98] sm:$0xff]
        %v409 = vld [vmem:[%s276 + $0xa0] sm:$0xff]
        %v410 = vld [vmem:[%s276 + $0xa8] sm:$0xff]
        %v411 = vld [vmem:[%s276 + $0xb0] sm:$0xff]
        %v412 = vld [vmem:[%s276 + $0xb8] sm:$0xff]
        %v413 = vld [vmem:[%s276 + $0xc0] sm:$0xff]
        %v414 = vld [vmem:[%s276 + $0xc8] sm:$0xff]
        %v415 = vld [vmem:[%s276 + $0xd0] sm:$0xff]
        %v416 = vld [vmem:[%s276 + $0xd8] sm:$0xff]
        %v417 = vld [vmem:[%s276 + $0xe0] sm:$0xff]
        %v418 = vld [vmem:[%s276 + $0xe8] sm:$0xff]
        %v419 = vld [vmem:[%s276 + $0xf0] sm:$0xff]
        %v420 = vld [vmem:[%s276 + $0xf8] sm:$0xff]
        %s421 = scalar_lea.vmem [#allocation2], 24
        %422 = vst [vmem:[%s421 + $0x1] sm:$0xff] %v389
        %423 = vst [vmem:[%s421 + $0x9] sm:$0xff] %v390
        %424 = vst [vmem:[%s421 + $0x19] sm:$0xff] %v391
        %425 = vst [vmem:[%s421 + $0x21] sm:$0xff] %v392
        %426 = vst [vmem:[%s421 + $0x31] sm:$0xff] %v393
        %427 = vst [vmem:[%s421 + $0x39] sm:$0xff] %v394
        %428 = vst [vmem:[%s421 + $0x49] sm:$0xff] %v395
        %429 = vst [vmem:[%s421 + $0x51] sm:$0xff] %v396
        %430 = vst [vmem:[%s421 + $0x61] sm:$0xff] %v397
        %431 = vst [vmem:[%s421 + $0x69] sm:$0xff] %v398
        %432 = vst [vmem:[%s421 + $0x79] sm:$0xff] %v399
        %433 = vst [vmem:[%s421 + $0x81] sm:$0xff] %v400
        %434 = vst [vmem:[%s421 + $0x91] sm:$0xff] %v401
        %435 = vst [vmem:[%s421 + $0x99] sm:$0xff] %v402
        %436 = vst [vmem:[%s421 + $0xa9] sm:$0xff] %v403
        %437 = vst [vmem:[%s421 + $0xb1] sm:$0xff] %v404
        %438 = vst [vmem:[%s421 + $0xc1] sm:$0xff] %v405
        %439 = vst [vmem:[%s421 + $0xc9] sm:$0xff] %v406
        %440 = vst [vmem:[%s421 + $0xd9] sm:$0xff] %v407
        %441 = vst [vmem:[%s421 + $0xe1] sm:$0xff] %v408
        %442 = vst [vmem:[%s421 + $0xf1] sm:$0xff] %v409
        %443 = vst [vmem:[%s421 + $0xf9] sm:$0xff] %v410
        %444 = vst [vmem:[%s421 + $0x109] sm:$0xff] %v411
        %445 = vst [vmem:[%s421 + $0x111] sm:$0xff] %v412
        %446 = vst [vmem:[%s421 + $0x121] sm:$0xff] %v413
        %447 = vst [vmem:[%s421 + $0x129] sm:$0xff] %v414
        %448 = vst [vmem:[%s421 + $0x139] sm:$0xff] %v415
        %449 = vst [vmem:[%s421 + $0x141] sm:$0xff] %v416
        %450 = vst [vmem:[%s421 + $0x151] sm:$0xff] %v417
        %451 = vst [vmem:[%s421 + $0x159] sm:$0xff] %v418
        %452 = vst [vmem:[%s421 + $0x169] sm:$0xff] %v419
        %453 = vst [vmem:[%s421 + $0x171] sm:$0xff] %v420
        %v454 = vld [vmem:[#allocation2] sm:$0xff]
        %v455 = vld [vmem:[#allocation2 + $0x8] sm:$0xff]
        %v456 = vld [vmem:[#allocation2 + $0x18] sm:$0xff]
        %v457 = vld [vmem:[#allocation2 + $0x20] sm:$0xff]
        %v458 = vld [vmem:[#allocation2 + $0x30] sm:$0xff]
        %v459 = vld [vmem:[#allocation2 + $0x38] sm:$0xff]
        %v460 = vld [vmem:[#allocation2 + $0x48] sm:$0xff]
        %v461 = vld [vmem:[#allocation2 + $0x50] sm:$0xff]
        %v462 = vld [vmem:[#allocation2 + $0x60] sm:$0xff]
        %v463 = vld [vmem:[#allocation2 + $0x68] sm:$0xff]
        %v464 = vld [vmem:[#allocation2 + $0x78] sm:$0xff]
        %v465 = vld [vmem:[#allocation2 + $0x80] sm:$0xff]
        %v466 = vld [vmem:[#allocation2 + $0x90] sm:$0xff]
        %v467 = vld [vmem:[#allocation2 + $0x98] sm:$0xff]
        %v468 = vld [vmem:[#allocation2 + $0xa8] sm:$0xff]
        %v469 = vld [vmem:[#allocation2 + $0xb0] sm:$0xff]
        %v470 = vld [vmem:[#allocation2 + $0xc0] sm:$0xff]
        %v471 = vld [vmem:[#allocation2 + $0xc8] sm:$0xff]
        %v472 = vld [vmem:[#allocation2 + $0xd8] sm:$0xff]
        %v473 = vld [vmem:[#allocation2 + $0xe0] sm:$0xff]
        %v474 = vld [vmem:[#allocation2 + $0xf0] sm:$0xff]
        %v475 = vld [vmem:[#allocation2 + $0xf8] sm:$0xff]
        %v476 = vld [vmem:[#allocation2 + $0x108] sm:$0xff]
        %v477 = vld [vmem:[#allocation2 + $0x110] sm:$0xff]
        %v478 = vld [vmem:[#allocation2 + $0x120] sm:$0xff]
        %v479 = vld [vmem:[#allocation2 + $0x128] sm:$0xff]
        %v480 = vld [vmem:[#allocation2 + $0x138] sm:$0xff]
        %v481 = vld [vmem:[#allocation2 + $0x140] sm:$0xff]
        %v482 = vld [vmem:[#allocation2 + $0x150] sm:$0xff]
        %v483 = vld [vmem:[#allocation2 + $0x158] sm:$0xff]
        %v484 = vld [vmem:[#allocation2 + $0x168] sm:$0xff]
        %v485 = vld [vmem:[#allocation2 + $0x170] sm:$0xff]
        %v486 = vld [vmem:[#allocation2 + $0x180] sm:$0xff]
        %v487 = vld [vmem:[#allocation2 + $0x188] sm:$0xff]
        %v488 = vld [vmem:[#allocation2 + $0x198] sm:$0xff]
        %v489 = vld [vmem:[#allocation2 + $0x1a0] sm:$0xff]
        %v490 = vld [vmem:[#allocation2 + $0x1] sm:$0xff]
        %v491 = vld [vmem:[#allocation2 + $0x9] sm:$0xff]
        %v492 = vld [vmem:[#allocation2 + $0x19] sm:$0xff]
        %v493 = vld [vmem:[#allocation2 + $0x21] sm:$0xff]
        %v494 = vld [vmem:[#allocation2 + $0x31] sm:$0xff]
        %v495 = vld [vmem:[#allocation2 + $0x39] sm:$0xff]
        %v496 = vld [vmem:[#allocation2 + $0x49] sm:$0xff]
        %v497 = vld [vmem:[#allocation2 + $0x51] sm:$0xff]
        %v498 = vld [vmem:[#allocation2 + $0x61] sm:$0xff]
        %v499 = vld [vmem:[#allocation2 + $0x69] sm:$0xff]
        %v500 = vld [vmem:[#allocation2 + $0x79] sm:$0xff]
        %v501 = vld [vmem:[#allocation2 + $0x81] sm:$0xff]
        %v502 = vld [vmem:[#allocation2 + $0x91] sm:$0xff]
        %v503 = vld [vmem:[#allocation2 + $0x99] sm:$0xff]
        %v504 = vld [vmem:[#allocation2 + $0xa9] sm:$0xff]
        %v505 = vld [vmem:[#allocation2 + $0xb1] sm:$0xff]
        %v506 = vld [vmem:[#allocation2 + $0xc1] sm:$0xff]
        %v507 = vld [vmem:[#allocation2 + $0xc9] sm:$0xff]
        %v508 = vld [vmem:[#allocation2 + $0xd9] sm:$0xff]
        %v509 = vld [vmem:[#allocation2 + $0xe1] sm:$0xff]
        %v510 = vld [vmem:[#allocation2 + $0xf1] sm:$0xff]
        %v511 = vld [vmem:[#allocation2 + $0xf9] sm:$0xff]
        %v512 = vld [vmem:[#allocation2 + $0x109] sm:$0xff]
        %v513 = vld [vmem:[#allocation2 + $0x111] sm:$0xff]
        %v514 = vld [vmem:[#allocation2 + $0x121] sm:$0xff]
        %v515 = vld [vmem:[#allocation2 + $0x129] sm:$0xff]
        %v516 = vld [vmem:[#allocation2 + $0x139] sm:$0xff]
        %v517 = vld [vmem:[#allocation2 + $0x141] sm:$0xff]
        %v518 = vld [vmem:[#allocation2 + $0x151] sm:$0xff]
        %v519 = vld [vmem:[#allocation2 + $0x159] sm:$0xff]
        %v520 = vld [vmem:[#allocation2 + $0x169] sm:$0xff]
        %v521 = vld [vmem:[#allocation2 + $0x171] sm:$0xff]
        %v522 = vld [vmem:[#allocation2 + $0x181] sm:$0xff]
        %v523 = vld [vmem:[#allocation2 + $0x189] sm:$0xff]
        %v524 = vld [vmem:[#allocation2 + $0x199] sm:$0xff]
        %v525 = vld [vmem:[#allocation2 + $0x1a1] sm:$0xff]
        %v526 = vpack.c.bf16 %v455, %v454
        %v527 = vpack.c.bf16 %v491, %v490
        %v528 = vpack.c.bf16 %v457, %v456
        %v529 = vpack.c.bf16 %v493, %v492
        %v530 = vpack.c.bf16 %v459, %v458
        %v531 = vpack.c.bf16 %v495, %v494
        %v532 = vpack.c.bf16 %v461, %v460
        %v533 = vpack.c.bf16 %v497, %v496
        %v534 = vpack.c.bf16 %v463, %v462
        %v535 = vpack.c.bf16 %v499, %v498
        %v536 = vpack.c.bf16 %v465, %v464
        %v537 = vpack.c.bf16 %v501, %v500
        %v538 = vpack.c.bf16 %v467, %v466
        %v539 = vpack.c.bf16 %v503, %v502
        %v540 = vpack.c.bf16 %v469, %v468
        %v541 = vpack.c.bf16 %v505, %v504
        %v542 = vpack.c.bf16 %v471, %v470
        %v543 = vpack.c.bf16 %v507, %v506
        %v544 = vpack.c.bf16 %v473, %v472
        %v545 = vpack.c.bf16 %v509, %v508
        %v546 = vpack.c.bf16 %v475, %v474
        %v547 = vpack.c.bf16 %v511, %v510
        %v548 = vpack.c.bf16 %v477, %v476
        %v549 = vpack.c.bf16 %v513, %v512
        %v550 = vpack.c.bf16 %v479, %v478
        %v551 = vpack.c.bf16 %v515, %v514
        %v552 = vpack.c.bf16 %v481, %v480
        %v553 = vpack.c.bf16 %v517, %v516
        %v554 = vpack.c.bf16 %v483, %v482
        %v555 = vpack.c.bf16 %v519, %v518
        %v556 = vpack.c.bf16 %v485, %v484
        %v557 = vpack.c.bf16 %v521, %v520
        %v558 = vpack.c.bf16 %v487, %v486
        %v559 = vpack.c.bf16 %v523, %v522
        %v560 = vpack.c.bf16 %v489, %v488
        %v561 = vpack.c.bf16 %v525, %v524
        %v562 = vld [vmem:[#allocation2 + $0x2] sm:$0xff]
        %v563 = vld [vmem:[#allocation2 + $0xa] sm:$0xff]
        %v564 = vld [vmem:[#allocation2 + $0x1a] sm:$0xff]
        %v565 = vld [vmem:[#allocation2 + $0x22] sm:$0xff]
        %v566 = vld [vmem:[#allocation2 + $0x32] sm:$0xff]
        %v567 = vld [vmem:[#allocation2 + $0x3a] sm:$0xff]
        %v568 = vld [vmem:[#allocation2 + $0x4a] sm:$0xff]
        %v569 = vld [vmem:[#allocation2 + $0x52] sm:$0xff]
        %v570 = vld [vmem:[#allocation2 + $0x62] sm:$0xff]
        %v571 = vld [vmem:[#allocation2 + $0x6a] sm:$0xff]
        %v572 = vld [vmem:[#allocation2 + $0x7a] sm:$0xff]
        %v573 = vld [vmem:[#allocation2 + $0x82] sm:$0xff]
        %v574 = vld [vmem:[#allocation2 + $0x92] sm:$0xff]
        %v575 = vld [vmem:[#allocation2 + $0x9a] sm:$0xff]
        %v576 = vld [vmem:[#allocation2 + $0xaa] sm:$0xff]
        %v577 = vld [vmem:[#allocation2 + $0xb2] sm:$0xff]
        %v578 = vld [vmem:[#allocation2 + $0xc2] sm:$0xff]
        %v579 = vld [vmem:[#allocation2 + $0xca] sm:$0xff]
        %v580 = vld [vmem:[#allocation2 + $0xda] sm:$0xff]
        %v581 = vld [vmem:[#allocation2 + $0xe2] sm:$0xff]
        %v582 = vld [vmem:[#allocation2 + $0xf2] sm:$0xff]
        %v583 = vld [vmem:[#allocation2 + $0xfa] sm:$0xff]
        %v584 = vld [vmem:[#allocation2 + $0x10a] sm:$0xff]
        %v585 = vld [vmem:[#allocation2 + $0x112] sm:$0xff]
        %v586 = vld [vmem:[#allocation2 + $0x122] sm:$0xff]
        %v587 = vld [vmem:[#allocation2 + $0x12a] sm:$0xff]
        %v588 = vld [vmem:[#allocation2 + $0x13a] sm:$0xff]
        %v589 = vld [vmem:[#allocation2 + $0x142] sm:$0xff]
        %v590 = vld [vmem:[#allocation2 + $0x152] sm:$0xff]
        %v591 = vld [vmem:[#allocation2 + $0x15a] sm:$0xff]
        %v592 = vld [vmem:[#allocation2 + $0x16a] sm:$0xff]
        %v593 = vld [vmem:[#allocation2 + $0x172] sm:$0xff]
        %v594 = vld [vmem:[#allocation2 + $0x182] sm:$0xff]
        %v595 = vld [vmem:[#allocation2 + $0x18a] sm:$0xff]
        %v596 = vld [vmem:[#allocation2 + $0x19a] sm:$0xff]
        %v597 = vld [vmem:[#allocation2 + $0x1a2] sm:$0xff]
        %v598 = vpack.c.bf16 %v563, %v562
        %v599 = vpack.c.bf16 %v565, %v564
        %v600 = vpack.c.bf16 %v567, %v566
        %v601 = vpack.c.bf16 %v569, %v568
        %v602 = vpack.c.bf16 %v571, %v570
        %v603 = vpack.c.bf16 %v573, %v572
        %v604 = vpack.c.bf16 %v575, %v574
        %v605 = vpack.c.bf16 %v577, %v576
        %v606 = vpack.c.bf16 %v579, %v578
        %v607 = vpack.c.bf16 %v581, %v580
        %v608 = vpack.c.bf16 %v583, %v582
        %v609 = vpack.c.bf16 %v585, %v584
        %v610 = vpack.c.bf16 %v587, %v586
        %v611 = vpack.c.bf16 %v589, %v588
        %v612 = vpack.c.bf16 %v591, %v590
        %v613 = vpack.c.bf16 %v593, %v592
        %v614 = vpack.c.bf16 %v595, %v594
        %v615 = vpack.c.bf16 %v597, %v596
        %v616 = vld [vmem:[%s1] sm:$0xf]
        %v617 = vld [vmem:[%s1 + $0x4] sm:$0xf]
        %v618 = vld [vmem:[%s1 + $0x8] sm:$0xf]
        %v619 = vld [vmem:[%s1 + $0xc] sm:$0xf]
        %v620 = vld [vmem:[%s1 + $0x10] sm:$0xf]
        %v621 = vld [vmem:[%s1 + $0x14] sm:$0xf]
        %v622 = vld [vmem:[%s1 + $0x18] sm:$0xf]
        %v623 = vld [vmem:[%s1 + $0x1c] sm:$0xf]
        %v624 = vld [vmem:[%s1 + $0x20] sm:$0xf]
        %v625 = vld [vmem:[%s1 + $0x24] sm:$0xf]
        %v626 = vld [vmem:[%s1 + $0x28] sm:$0xf]
        %v627 = vld [vmem:[%s1 + $0x2c] sm:$0xf]
        %v628 = vld [vmem:[%s1 + $0x30] sm:$0xf]
        %v629 = vld [vmem:[%s1 + $0x34] sm:$0xf]
        %v630 = vld [vmem:[%s1 + $0x38] sm:$0xf]
        %v631 = vld [vmem:[%s1 + $0x3c] sm:$0xf]
        %v632 = vld [vmem:[%s1 + $0x40] sm:$0xf]
        %v633 = vld [vmem:[%s1 + $0x44] sm:$0xf]
        %v634 = vld [vmem:[%s1 + $0x48] sm:$0xf]
        %v635 = vld [vmem:[%s1 + $0x4c] sm:$0xf]
        %v636 = vld [vmem:[%s1 + $0x50] sm:$0xf]
        %v637 = vld [vmem:[%s1 + $0x54] sm:$0xf]
        %v638 = vld [vmem:[%s1 + $0x58] sm:$0xf]
        %v639 = vld [vmem:[%s1 + $0x5c] sm:$0xf]
        %v640 = vld [vmem:[%s1 + $0x60] sm:$0xf]
        %v641 = vld [vmem:[%s1 + $0x64] sm:$0xf]
        %v642 = vld [vmem:[%s1 + $0x68] sm:$0xf]
        %v643 = vld [vmem:[%s1 + $0x6c] sm:$0xf]
        %v644 = vld [vmem:[%s1 + $0x70] sm:$0xf]
        %v645 = vld [vmem:[%s1 + $0x74] sm:$0xf]
        %v646 = vld [vmem:[%s1 + $0x78] sm:$0xf]
        %v647 = vld [vmem:[%s1 + $0x7c] sm:$0xf]
        %v648 = vld [vmem:[%s2] sm:$0xf]
        %v649 = vld [vmem:[%s2 + $0x4] sm:$0xf]
        %v650 = vld [vmem:[%s2 + $0x8] sm:$0xf]
        %v651 = vld [vmem:[%s2 + $0xc] sm:$0xf]
        %v652 = vld [vmem:[%s2 + $0x10] sm:$0xf]
        %v653 = vld [vmem:[%s2 + $0x14] sm:$0xf]
        %v654 = vld [vmem:[%s2 + $0x18] sm:$0xf]
        %v655 = vld [vmem:[%s2 + $0x1c] sm:$0xf]
        %v656 = vld [vmem:[%s2 + $0x20] sm:$0xf]
        %v657 = vld [vmem:[%s2 + $0x24] sm:$0xf]
        %v658 = vld [vmem:[%s2 + $0x28] sm:$0xf]
        %v659 = vld [vmem:[%s2 + $0x2c] sm:$0xf]
        %v660 = vld [vmem:[%s2 + $0x30] sm:$0xf]
        %v661 = vld [vmem:[%s2 + $0x34] sm:$0xf]
        %v662 = vld [vmem:[%s2 + $0x38] sm:$0xf]
        %v663 = vld [vmem:[%s2 + $0x3c] sm:$0xf]
        %v680 = vunpack.c.l.b16 %v648
        %v681 = vunpack.c.l.b16 %v649
        %v682 = vunpack.c.l.b16 %v650
        %v683 = vunpack.c.l.b16 %v651
        %v684 = vunpack.c.l.b16 %v652
        %v685 = vunpack.c.l.b16 %v653
        %v686 = vunpack.c.l.b16 %v654
        %v687 = vunpack.c.l.b16 %v655
        %v688 = vunpack.c.l.b16 %v656
        %v689 = vunpack.c.l.b16 %v657
        %v690 = vunpack.c.l.b16 %v658
        %v691 = vunpack.c.l.b16 %v659
        %v692 = vunpack.c.l.b16 %v660
        %v693 = vunpack.c.l.b16 %v661
        %v694 = vunpack.c.l.b16 %v662
        %v695 = vunpack.c.l.b16 %v663
        %v696 = vpack.c.b16 %v681, %v680
        %v697 = vpack.c.b16 %v683, %v682
        %v698 = vpack.c.b16 %v685, %v684
        %v699 = vpack.c.b16 %v687, %v686
        %v700 = vpack.c.b16 %v689, %v688
        %v701 = vpack.c.b16 %v691, %v690
        %v702 = vpack.c.b16 %v693, %v692
        %v703 = vpack.c.b16 %v695, %v694
        %712 = vmatprep.subr.bf16.mxu0 0
        %713 = vmatpush1.bf16.msra.mxu0 %v703
        %714 = vmatprep.subr.bf16.mxu0 0
        %715 = vmatpush1.bf16.msra.mxu0 %v702
        %716 = vmatprep.subr.bf16.mxu0 0
        %717 = vmatpush1.bf16.msra.mxu0 %v701
        %718 = vmatprep.subr.bf16.mxu0 0
        %719 = vmatpush1.bf16.msra.mxu0 %v700
        %720 = vmatprep.subr.bf16.mxu0 0
        %721 = vmatpush1.bf16.msra.mxu0 %v699
        %722 = vmatprep.subr.bf16.mxu0 0
        %723 = vmatpush1.bf16.msra.mxu0 %v698
        %724 = vmatprep.subr.bf16.mxu0 0
        %725 = vmatpush1.bf16.msra.mxu0 %v697
        %726 = vmatprep.subr.bf16.mxu0 0
        %727 = vmatpush1.bf16.msra.mxu0 %v696
        %728 = vmatprep.subr.bf16.mxu0 0
        %729 = vmatpush2.bf16.msra.mxu0 0
        %730 = vmatprep.subr.bf16.mxu0 0
        %731 = vmatpush2.bf16.msra.mxu0 0
        %732 = vmatprep.subr.bf16.mxu0 0
        %733 = vmatpush2.bf16.msra.mxu0 0
        %734 = vmatprep.subr.bf16.mxu0 0
        %735 = vmatpush2.bf16.msra.mxu0 0
        %736 = vmatprep.subr.bf16.mxu0 0
        %737 = vmatpush2.bf16.msra.mxu0 0
        %738 = vmatprep.subr.bf16.mxu0 0
        %739 = vmatpush2.bf16.msra.mxu0 0
        %740 = vmatprep.subr.bf16.mxu0 0
        %741 = vmatpush2.bf16.msra.mxu0 0
        %742 = vmatprep.subr.bf16.mxu0 0
        %743 = vmatpush2.bf16.msra.mxu0 0
        %744 = vmatprep.mubr.bf16.mxu0 0
        %745 = vmatmul.mubr.bf16.gmra.mxu0 %v598
        %v746 = vpop.f32.mrf.mxu0
        %v747 = vadd.f32 0.0, %v746
        %v748 = vpop.f32.mrf.mxu0
        %v749 = vpop.f32.mrf.mxu0
        %v750 = vadd.f32 0.0, %v749
        %v751 = vpop.f32.mrf.mxu0
        %752 = vmatprep.mubr.bf16.mxu0 0
        %753 = vmatmul.mubr.bf16.gmra.mxu0 %v599
        %v754 = vpop.f32.mrf.mxu0
        %v755 = vadd.f32 0.0, %v754
        %v756 = vpop.f32.mrf.mxu0
        %v757 = vpop.f32.mrf.mxu0
        %v758 = vadd.f32 0.0, %v757
        %v759 = vpop.f32.mrf.mxu0
        %760 = vmatprep.mubr.bf16.mxu0 0
        %761 = vmatmul.mubr.bf16.gmra.mxu0 %v600
        %v762 = vpop.f32.mrf.mxu0
        %v763 = vadd.f32 0.0, %v762
        %v764 = vpop.f32.mrf.mxu0
        %v765 = vpop.f32.mrf.mxu0
        %v766 = vadd.f32 0.0, %v765
        %v767 = vpop.f32.mrf.mxu0
        %768 = vmatprep.mubr.bf16.mxu0 0
        %769 = vmatmul.mubr.bf16.gmra.mxu0 %v601
        %v770 = vpop.f32.mrf.mxu0
        %v771 = vadd.f32 0.0, %v770
        %v772 = vpop.f32.mrf.mxu0
        %v773 = vpop.f32.mrf.mxu0
        %v774 = vadd.f32 0.0, %v773
        %v775 = vpop.f32.mrf.mxu0
        %776 = vmatprep.mubr.bf16.mxu0 0
        %777 = vmatmul.mubr.bf16.gmra.mxu0 %v602
        %v778 = vpop.f32.mrf.mxu0
        %v779 = vadd.f32 0.0, %v778
        %v780 = vpop.f32.mrf.mxu0
        %v781 = vpop.f32.mrf.mxu0
        %v782 = vadd.f32 0.0, %v781
        %v783 = vpop.f32.mrf.mxu0
        %784 = vmatprep.mubr.bf16.mxu0 0
        %785 = vmatmul.mubr.bf16.gmra.mxu0 %v603
        %v786 = vpop.f32.mrf.mxu0
        %v787 = vadd.f32 0.0, %v786
        %v788 = vpop.f32.mrf.mxu0
        %v789 = vpop.f32.mrf.mxu0
        %v790 = vadd.f32 0.0, %v789
        %v791 = vpop.f32.mrf.mxu0
        %792 = vmatprep.mubr.bf16.mxu0 0
        %793 = vmatmul.mubr.bf16.gmra.mxu0 %v604
        %v794 = vpop.f32.mrf.mxu0
        %v795 = vadd.f32 0.0, %v794
        %v796 = vpop.f32.mrf.mxu0
        %v797 = vpop.f32.mrf.mxu0
        %v798 = vadd.f32 0.0, %v797
        %v799 = vpop.f32.mrf.mxu0
        %800 = vmatprep.mubr.bf16.mxu0 0
        %801 = vmatmul.mubr.bf16.gmra.mxu0 %v605
        %v802 = vpop.f32.mrf.mxu0
        %v803 = vadd.f32 0.0, %v802
        %v804 = vpop.f32.mrf.mxu0
        %v805 = vpop.f32.mrf.mxu0
        %v806 = vadd.f32 0.0, %v805
        %v807 = vpop.f32.mrf.mxu0
        %808 = vmatprep.mubr.bf16.mxu0 0
        %809 = vmatmul.mubr.bf16.gmra.mxu0 %v606
        %v810 = vpop.f32.mrf.mxu0
        %v811 = vadd.f32 0.0, %v810
        %v812 = vpop.f32.mrf.mxu0
        %v813 = vpop.f32.mrf.mxu0
        %v814 = vadd.f32 0.0, %v813
        %v815 = vpop.f32.mrf.mxu0
        %816 = vmatprep.mubr.bf16.mxu0 0
        %817 = vmatmul.mubr.bf16.gmra.mxu0 %v607
        %v818 = vpop.f32.mrf.mxu0
        %v819 = vadd.f32 0.0, %v818
        %v820 = vpop.f32.mrf.mxu0
        %v821 = vpop.f32.mrf.mxu0
        %v822 = vadd.f32 0.0, %v821
        %v823 = vpop.f32.mrf.mxu0
        %824 = vmatprep.mubr.bf16.mxu0 0
        %825 = vmatmul.mubr.bf16.gmra.mxu0 %v608
        %v826 = vpop.f32.mrf.mxu0
        %v827 = vadd.f32 0.0, %v826
        %v828 = vpop.f32.mrf.mxu0
        %v829 = vpop.f32.mrf.mxu0
        %v830 = vadd.f32 0.0, %v829
        %v831 = vpop.f32.mrf.mxu0
        %832 = vmatprep.mubr.bf16.mxu0 0
        %833 = vmatmul.mubr.bf16.gmra.mxu0 %v609
        %v834 = vpop.f32.mrf.mxu0
        %v835 = vadd.f32 0.0, %v834
        %v836 = vpop.f32.mrf.mxu0
        %v837 = vpop.f32.mrf.mxu0
        %v838 = vadd.f32 0.0, %v837
        %v839 = vpop.f32.mrf.mxu0
        %840 = vmatprep.mubr.bf16.mxu0 0
        %841 = vmatmul.mubr.bf16.gmra.mxu0 %v610
        %v842 = vpop.f32.mrf.mxu0
        %v843 = vadd.f32 0.0, %v842
        %v844 = vpop.f32.mrf.mxu0
        %v845 = vpop.f32.mrf.mxu0
        %v846 = vadd.f32 0.0, %v845
        %v847 = vpop.f32.mrf.mxu0
        %848 = vmatprep.mubr.bf16.mxu0 0
        %849 = vmatmul.mubr.bf16.gmra.mxu0 %v611
        %v850 = vpop.f32.mrf.mxu0
        %v851 = vadd.f32 0.0, %v850
        %v852 = vpop.f32.mrf.mxu0
        %v853 = vpop.f32.mrf.mxu0
        %v854 = vadd.f32 0.0, %v853
        %v855 = vpop.f32.mrf.mxu0
        %856 = vmatprep.mubr.bf16.mxu0 0
        %857 = vmatmul.mubr.bf16.gmra.mxu0 %v612
        %v858 = vpop.f32.mrf.mxu0
        %v859 = vadd.f32 0.0, %v858
        %v860 = vpop.f32.mrf.mxu0
        %v861 = vpop.f32.mrf.mxu0
        %v862 = vadd.f32 0.0, %v861
        %v863 = vpop.f32.mrf.mxu0
        %864 = vmatprep.mubr.bf16.mxu0 0
        %865 = vmatmul.mubr.bf16.gmra.mxu0 %v613
        %v866 = vpop.f32.mrf.mxu0
        %v867 = vadd.f32 0.0, %v866
        %v868 = vpop.f32.mrf.mxu0
        %v869 = vpop.f32.mrf.mxu0
        %v870 = vadd.f32 0.0, %v869
        %v871 = vpop.f32.mrf.mxu0
        %872 = vdwg.mxu0
        %v905 = vunpack.c.l.b16 %v616
        %v906 = vunpack.c.l.b16 %v617
        %v907 = vunpack.c.l.b16 %v618
        %v908 = vunpack.c.l.b16 %v619
        %v909 = vunpack.c.l.b16 %v620
        %v910 = vunpack.c.l.b16 %v621
        %v911 = vunpack.c.l.b16 %v622
        %v912 = vunpack.c.l.b16 %v623
        %v913 = vunpack.c.l.b16 %v624
        %v914 = vunpack.c.l.b16 %v625
        %v915 = vunpack.c.l.b16 %v626
        %v916 = vunpack.c.l.b16 %v627
        %v917 = vunpack.c.l.b16 %v628
        %v918 = vunpack.c.l.b16 %v629
        %v919 = vunpack.c.l.b16 %v630
        %v920 = vunpack.c.l.b16 %v631
        %v921 = vunpack.c.l.b16 %v632
        %v922 = vunpack.c.l.b16 %v633
        %v923 = vunpack.c.l.b16 %v634
        %v924 = vunpack.c.l.b16 %v635
        %v925 = vunpack.c.l.b16 %v636
        %v926 = vunpack.c.l.b16 %v637
        %v927 = vunpack.c.l.b16 %v638
        %v928 = vunpack.c.l.b16 %v639
        %v929 = vunpack.c.l.b16 %v640
        %v930 = vunpack.c.l.b16 %v641
        %v931 = vunpack.c.l.b16 %v642
        %v932 = vunpack.c.l.b16 %v643
        %v933 = vunpack.c.l.b16 %v644
        %v934 = vunpack.c.l.b16 %v645
        %v935 = vunpack.c.l.b16 %v646
        %v936 = vunpack.c.l.b16 %v647
        %v937 = vpack.c.b16 %v906, %v905
        %v938 = vpack.c.b16 %v908, %v907
        %v939 = vpack.c.b16 %v910, %v909
        %v940 = vpack.c.b16 %v912, %v911
        %v941 = vpack.c.b16 %v914, %v913
        %v942 = vpack.c.b16 %v916, %v915
        %v943 = vpack.c.b16 %v918, %v917
        %v944 = vpack.c.b16 %v920, %v919
        %v945 = vpack.c.b16 %v922, %v921
        %v946 = vpack.c.b16 %v924, %v923
        %v947 = vpack.c.b16 %v926, %v925
        %v948 = vpack.c.b16 %v928, %v927
        %v949 = vpack.c.b16 %v930, %v929
        %v950 = vpack.c.b16 %v932, %v931
        %v951 = vpack.c.b16 %v934, %v933
        %v952 = vpack.c.b16 %v936, %v935
        %969 = vmatprep.subr.bf16.mxu0 0
        %970 = vmatpush1.bf16.msra.mxu0 %v944
        %971 = vmatprep.subr.bf16.mxu0 0
        %972 = vmatpush1.bf16.msra.mxu0 %v943
        %973 = vmatprep.subr.bf16.mxu0 0
        %974 = vmatpush1.bf16.msra.mxu0 %v942
        %975 = vmatprep.subr.bf16.mxu0 0
        %976 = vmatpush1.bf16.msra.mxu0 %v941
        %977 = vmatprep.subr.bf16.mxu0 0
        %978 = vmatpush1.bf16.msra.mxu0 %v940
        %979 = vmatprep.subr.bf16.mxu0 0
        %980 = vmatpush1.bf16.msra.mxu0 %v939
        %981 = vmatprep.subr.bf16.mxu0 0
        %982 = vmatpush1.bf16.msra.mxu0 %v938
        %983 = vmatprep.subr.bf16.mxu0 0
        %984 = vmatpush1.bf16.msra.mxu0 %v937
        %985 = vmatprep.subr.bf16.mxu0 0
        %986 = vmatpush2.bf16.msra.mxu0 %v952
        %987 = vmatprep.subr.bf16.mxu0 0
        %988 = vmatpush2.bf16.msra.mxu0 %v951
        %989 = vmatprep.subr.bf16.mxu0 0
        %990 = vmatpush2.bf16.msra.mxu0 %v950
        %991 = vmatprep.subr.bf16.mxu0 0
        %992 = vmatpush2.bf16.msra.mxu0 %v949
        %993 = vmatprep.subr.bf16.mxu0 0
        %994 = vmatpush2.bf16.msra.mxu0 %v948
        %995 = vmatprep.subr.bf16.mxu0 0
        %996 = vmatpush2.bf16.msra.mxu0 %v947
        %997 = vmatprep.subr.bf16.mxu0 0
        %998 = vmatpush2.bf16.msra.mxu0 %v946
        %999 = vmatprep.subr.bf16.mxu0 0
        %1000 = vmatpush2.bf16.msra.mxu0 %v945
        %1001 = vmatprep.mubr.bf16.mxu0 %v527
        %1002 = vmatmul.mubr.bf16.gmra.mxu0 %v526
        %v1003 = vpop.f32.mrf.mxu0
        %v1004 = vadd.f32 %v747, %v1003
        %v1005 = vpop.f32.mrf.mxu0
        %v1006 = vpop.f32.mrf.mxu0
        %v1007 = vadd.f32 %v750, %v1006
        %v1008 = vpop.f32.mrf.mxu0
        %1009 = vmatprep.mubr.bf16.mxu0 %v529
        %1010 = vmatmul.mubr.bf16.gmra.mxu0 %v528
        %v1011 = vpop.f32.mrf.mxu0
        %v1012 = vadd.f32 %v755, %v1011
        %v1013 = vpop.f32.mrf.mxu0
        %v1014 = vpop.f32.mrf.mxu0
        %v1015 = vadd.f32 %v758, %v1014
        %v1016 = vpop.f32.mrf.mxu0
        %1017 = vmatprep.mubr.bf16.mxu0 %v531
        %1018 = vmatmul.mubr.bf16.gmra.mxu0 %v530
        %v1019 = vpop.f32.mrf.mxu0
        %v1020 = vadd.f32 %v763, %v1019
        %v1021 = vpop.f32.mrf.mxu0
        %v1022 = vpop.f32.mrf.mxu0
        %v1023 = vadd.f32 %v766, %v1022
        %v1024 = vpop.f32.mrf.mxu0
        %1025 = vmatprep.mubr.bf16.mxu0 %v533
        %1026 = vmatmul.mubr.bf16.gmra.mxu0 %v532
        %v1027 = vpop.f32.mrf.mxu0
        %v1028 = vadd.f32 %v771, %v1027
        %v1029 = vpop.f32.mrf.mxu0
        %v1030 = vpop.f32.mrf.mxu0
        %v1031 = vadd.f32 %v774, %v1030
        %v1032 = vpop.f32.mrf.mxu0
        %1033 = vmatprep.mubr.bf16.mxu0 %v535
        %1034 = vmatmul.mubr.bf16.gmra.mxu0 %v534
        %v1035 = vpop.f32.mrf.mxu0
        %v1036 = vadd.f32 %v779, %v1035
        %v1037 = vpop.f32.mrf.mxu0
        %v1038 = vpop.f32.mrf.mxu0
        %v1039 = vadd.f32 %v782, %v1038
        %v1040 = vpop.f32.mrf.mxu0
        %1041 = vmatprep.mubr.bf16.mxu0 %v537
        %1042 = vmatmul.mubr.bf16.gmra.mxu0 %v536
        %v1043 = vpop.f32.mrf.mxu0
        %v1044 = vadd.f32 %v787, %v1043
        %v1045 = vpop.f32.mrf.mxu0
        %v1046 = vpop.f32.mrf.mxu0
        %v1047 = vadd.f32 %v790, %v1046
        %v1048 = vpop.f32.mrf.mxu0
        %1049 = vmatprep.mubr.bf16.mxu0 %v539
        %1050 = vmatmul.mubr.bf16.gmra.mxu0 %v538
        %v1051 = vpop.f32.mrf.mxu0
        %v1052 = vadd.f32 %v795, %v1051
        %v1053 = vpop.f32.mrf.mxu0
        %v1054 = vpop.f32.mrf.mxu0
        %v1055 = vadd.f32 %v798, %v1054
        %v1056 = vpop.f32.mrf.mxu0
        %1057 = vmatprep.mubr.bf16.mxu0 %v541
        %1058 = vmatmul.mubr.bf16.gmra.mxu0 %v540
        %v1059 = vpop.f32.mrf.mxu0
        %v1060 = vadd.f32 %v803, %v1059
        %v1061 = vpop.f32.mrf.mxu0
        %v1062 = vpop.f32.mrf.mxu0
        %v1063 = vadd.f32 %v806, %v1062
        %v1064 = vpop.f32.mrf.mxu0
        %1065 = vmatprep.mubr.bf16.mxu0 %v543
        %1066 = vmatmul.mubr.bf16.gmra.mxu0 %v542
        %v1067 = vpop.f32.mrf.mxu0
        %v1068 = vadd.f32 %v811, %v1067
        %v1069 = vpop.f32.mrf.mxu0
        %v1070 = vpop.f32.mrf.mxu0
        %v1071 = vadd.f32 %v814, %v1070
        %v1072 = vpop.f32.mrf.mxu0
        %1073 = vmatprep.mubr.bf16.mxu0 %v545
        %1074 = vmatmul.mubr.bf16.gmra.mxu0 %v544
        %v1075 = vpop.f32.mrf.mxu0
        %v1076 = vadd.f32 %v819, %v1075
        %v1077 = vpop.f32.mrf.mxu0
        %v1078 = vpop.f32.mrf.mxu0
        %v1079 = vadd.f32 %v822, %v1078
        %v1080 = vpop.f32.mrf.mxu0
        %1081 = vmatprep.mubr.bf16.mxu0 %v547
        %1082 = vmatmul.mubr.bf16.gmra.mxu0 %v546
        %v1083 = vpop.f32.mrf.mxu0
        %v1084 = vadd.f32 %v827, %v1083
        %v1085 = vpop.f32.mrf.mxu0
        %v1086 = vpop.f32.mrf.mxu0
        %v1087 = vadd.f32 %v830, %v1086
        %v1088 = vpop.f32.mrf.mxu0
        %1089 = vmatprep.mubr.bf16.mxu0 %v549
        %1090 = vmatmul.mubr.bf16.gmra.mxu0 %v548
        %v1091 = vpop.f32.mrf.mxu0
        %v1092 = vadd.f32 %v835, %v1091
        %v1093 = vpop.f32.mrf.mxu0
        %v1094 = vpop.f32.mrf.mxu0
        %v1095 = vadd.f32 %v838, %v1094
        %v1096 = vpop.f32.mrf.mxu0
        %1097 = vmatprep.mubr.bf16.mxu0 %v551
        %1098 = vmatmul.mubr.bf16.gmra.mxu0 %v550
        %v1099 = vpop.f32.mrf.mxu0
        %v1100 = vadd.f32 %v843, %v1099
        %v1101 = vpop.f32.mrf.mxu0
        %v1102 = vpop.f32.mrf.mxu0
        %v1103 = vadd.f32 %v846, %v1102
        %v1104 = vpop.f32.mrf.mxu0
        %1105 = vmatprep.mubr.bf16.mxu0 %v553
        %1106 = vmatmul.mubr.bf16.gmra.mxu0 %v552
        %v1107 = vpop.f32.mrf.mxu0
        %v1108 = vadd.f32 %v851, %v1107
        %v1109 = vpop.f32.mrf.mxu0
        %v1110 = vpop.f32.mrf.mxu0
        %v1111 = vadd.f32 %v854, %v1110
        %v1112 = vpop.f32.mrf.mxu0
        %1113 = vmatprep.mubr.bf16.mxu0 %v555
        %1114 = vmatmul.mubr.bf16.gmra.mxu0 %v554
        %v1115 = vpop.f32.mrf.mxu0
        %v1116 = vadd.f32 %v859, %v1115
        %v1117 = vpop.f32.mrf.mxu0
        %v1118 = vpop.f32.mrf.mxu0
        %v1119 = vadd.f32 %v862, %v1118
        %v1120 = vpop.f32.mrf.mxu0
        %1121 = vmatprep.mubr.bf16.mxu0 %v557
        %1122 = vmatmul.mubr.bf16.gmra.mxu0 %v556
        %v1123 = vpop.f32.mrf.mxu0
        %v1124 = vadd.f32 %v867, %v1123
        %v1125 = vpop.f32.mrf.mxu0
        %v1126 = vpop.f32.mrf.mxu0
        %v1127 = vadd.f32 %v870, %v1126
        %v1128 = vpop.f32.mrf.mxu0
        %1129 = vdwg.mxu0
        %s1130 = scalar_lea.vmem %s1, 128
        %v1131 = vld [vmem:[%s1130] sm:$0xf]
        %v1132 = vld [vmem:[%s1130 + $0x4] sm:$0xf]
        %v1133 = vld [vmem:[%s1130 + $0x8] sm:$0xf]
        %v1134 = vld [vmem:[%s1130 + $0xc] sm:$0xf]
        %v1135 = vld [vmem:[%s1130 + $0x10] sm:$0xf]
        %v1136 = vld [vmem:[%s1130 + $0x14] sm:$0xf]
        %v1137 = vld [vmem:[%s1130 + $0x18] sm:$0xf]
        %v1138 = vld [vmem:[%s1130 + $0x1c] sm:$0xf]
        %v1139 = vld [vmem:[%s1130 + $0x20] sm:$0xf]
        %v1140 = vld [vmem:[%s1130 + $0x24] sm:$0xf]
        %v1141 = vld [vmem:[%s1130 + $0x28] sm:$0xf]
        %v1142 = vld [vmem:[%s1130 + $0x2c] sm:$0xf]
        %v1143 = vld [vmem:[%s1130 + $0x30] sm:$0xf]
        %v1144 = vld [vmem:[%s1130 + $0x34] sm:$0xf]
        %v1145 = vld [vmem:[%s1130 + $0x38] sm:$0xf]
        %v1146 = vld [vmem:[%s1130 + $0x3c] sm:$0xf]
        %v1147 = vld [vmem:[%s1130 + $0x40] sm:$0xf]
        %v1148 = vld [vmem:[%s1130 + $0x44] sm:$0xf]
        %v1149 = vld [vmem:[%s1130 + $0x48] sm:$0xf]
        %v1150 = vld [vmem:[%s1130 + $0x4c] sm:$0xf]
        %v1151 = vld [vmem:[%s1130 + $0x50] sm:$0xf]
        %v1152 = vld [vmem:[%s1130 + $0x54] sm:$0xf]
        %v1153 = vld [vmem:[%s1130 + $0x58] sm:$0xf]
        %v1154 = vld [vmem:[%s1130 + $0x5c] sm:$0xf]
        %v1155 = vld [vmem:[%s1130 + $0x60] sm:$0xf]
        %v1156 = vld [vmem:[%s1130 + $0x64] sm:$0xf]
        %v1157 = vld [vmem:[%s1130 + $0x68] sm:$0xf]
        %v1158 = vld [vmem:[%s1130 + $0x6c] sm:$0xf]
        %v1159 = vld [vmem:[%s1130 + $0x70] sm:$0xf]
        %v1160 = vld [vmem:[%s1130 + $0x74] sm:$0xf]
        %v1161 = vld [vmem:[%s1130 + $0x78] sm:$0xf]
        %v1162 = vld [vmem:[%s1130 + $0x7c] sm:$0xf]
        %v1195 = vunpack.c.l.b16 %v1131
        %v1196 = vunpack.c.l.b16 %v1132
        %v1197 = vunpack.c.l.b16 %v1133
        %v1198 = vunpack.c.l.b16 %v1134
        %v1199 = vunpack.c.l.b16 %v1135
        %v1200 = vunpack.c.l.b16 %v1136
        %v1201 = vunpack.c.l.b16 %v1137
        %v1202 = vunpack.c.l.b16 %v1138
        %v1203 = vunpack.c.l.b16 %v1139
        %v1204 = vunpack.c.l.b16 %v1140
        %v1205 = vunpack.c.l.b16 %v1141
        %v1206 = vunpack.c.l.b16 %v1142
        %v1207 = vunpack.c.l.b16 %v1143
        %v1208 = vunpack.c.l.b16 %v1144
        %v1209 = vunpack.c.l.b16 %v1145
        %v1210 = vunpack.c.l.b16 %v1146
        %v1211 = vunpack.c.l.b16 %v1147
        %v1212 = vunpack.c.l.b16 %v1148
        %v1213 = vunpack.c.l.b16 %v1149
        %v1214 = vunpack.c.l.b16 %v1150
        %v1215 = vunpack.c.l.b16 %v1151
        %v1216 = vunpack.c.l.b16 %v1152
        %v1217 = vunpack.c.l.b16 %v1153
        %v1218 = vunpack.c.l.b16 %v1154
        %v1219 = vunpack.c.l.b16 %v1155
        %v1220 = vunpack.c.l.b16 %v1156
        %v1221 = vunpack.c.l.b16 %v1157
        %v1222 = vunpack.c.l.b16 %v1158
        %v1223 = vunpack.c.l.b16 %v1159
        %v1224 = vunpack.c.l.b16 %v1160
        %v1225 = vunpack.c.l.b16 %v1161
        %v1226 = vunpack.c.l.b16 %v1162
        %v1227 = vpack.c.b16 %v1196, %v1195
        %v1228 = vpack.c.b16 %v1198, %v1197
        %v1229 = vpack.c.b16 %v1200, %v1199
        %v1230 = vpack.c.b16 %v1202, %v1201
        %v1231 = vpack.c.b16 %v1204, %v1203
        %v1232 = vpack.c.b16 %v1206, %v1205
        %v1233 = vpack.c.b16 %v1208, %v1207
        %v1234 = vpack.c.b16 %v1210, %v1209
        %v1235 = vpack.c.b16 %v1212, %v1211
        %v1236 = vpack.c.b16 %v1214, %v1213
        %v1237 = vpack.c.b16 %v1216, %v1215
        %v1238 = vpack.c.b16 %v1218, %v1217
        %v1239 = vpack.c.b16 %v1220, %v1219
        %v1240 = vpack.c.b16 %v1222, %v1221
        %v1241 = vpack.c.b16 %v1224, %v1223
        %v1242 = vpack.c.b16 %v1226, %v1225
        %1259 = vmatprep.subr.bf16.mxu0 0
        %1260 = vmatpush1.bf16.msra.mxu0 %v1234
        %1261 = vmatprep.subr.bf16.mxu0 0
        %1262 = vmatpush1.bf16.msra.mxu0 %v1233
        %1263 = vmatprep.subr.bf16.mxu0 0
        %1264 = vmatpush1.bf16.msra.mxu0 %v1232
        %1265 = vmatprep.subr.bf16.mxu0 0
        %1266 = vmatpush1.bf16.msra.mxu0 %v1231
        %1267 = vmatprep.subr.bf16.mxu0 0
        %1268 = vmatpush1.bf16.msra.mxu0 %v1230
        %1269 = vmatprep.subr.bf16.mxu0 0
        %1270 = vmatpush1.bf16.msra.mxu0 %v1229
        %1271 = vmatprep.subr.bf16.mxu0 0
        %1272 = vmatpush1.bf16.msra.mxu0 %v1228
        %1273 = vmatprep.subr.bf16.mxu0 0
        %1274 = vmatpush1.bf16.msra.mxu0 %v1227
        %1275 = vmatprep.subr.bf16.mxu0 0
        %1276 = vmatpush2.bf16.msra.mxu0 %v1242
        %1277 = vmatprep.subr.bf16.mxu0 0
        %1278 = vmatpush2.bf16.msra.mxu0 %v1241
        %1279 = vmatprep.subr.bf16.mxu0 0
        %1280 = vmatpush2.bf16.msra.mxu0 %v1240
        %1281 = vmatprep.subr.bf16.mxu0 0
        %1282 = vmatpush2.bf16.msra.mxu0 %v1239
        %1283 = vmatprep.subr.bf16.mxu0 0
        %1284 = vmatpush2.bf16.msra.mxu0 %v1238
        %1285 = vmatprep.subr.bf16.mxu0 0
        %1286 = vmatpush2.bf16.msra.mxu0 %v1237
        %1287 = vmatprep.subr.bf16.mxu0 0
        %1288 = vmatpush2.bf16.msra.mxu0 %v1236
        %1289 = vmatprep.subr.bf16.mxu0 0
        %1290 = vmatpush2.bf16.msra.mxu0 %v1235
        %1291 = vmatprep.mubr.bf16.mxu0 %v529
        %1292 = vmatmul.mubr.bf16.gmra.mxu0 %v528
        %v1293 = vpop.f32.mrf.mxu0
        %v1294 = vadd.f32 0.0, %v1293
        %v1295 = vpop.f32.mrf.mxu0
        %v1296 = vpop.f32.mrf.mxu0
        %v1297 = vadd.f32 0.0, %v1296
        %v1298 = vpop.f32.mrf.mxu0
        %1299 = vmatprep.mubr.bf16.mxu0 %v531
        %1300 = vmatmul.mubr.bf16.gmra.mxu0 %v530
        %v1301 = vpop.f32.mrf.mxu0
        %v1302 = vadd.f32 0.0, %v1301
        %v1303 = vpop.f32.mrf.mxu0
        %v1304 = vpop.f32.mrf.mxu0
        %v1305 = vadd.f32 0.0, %v1304
        %v1306 = vpop.f32.mrf.mxu0
        %1307 = vmatprep.mubr.bf16.mxu0 %v533
        %1308 = vmatmul.mubr.bf16.gmra.mxu0 %v532
        %v1309 = vpop.f32.mrf.mxu0
        %v1310 = vadd.f32 0.0, %v1309
        %v1311 = vpop.f32.mrf.mxu0
        %v1312 = vpop.f32.mrf.mxu0
        %v1313 = vadd.f32 0.0, %v1312
        %v1314 = vpop.f32.mrf.mxu0
        %1315 = vmatprep.mubr.bf16.mxu0 %v535
        %1316 = vmatmul.mubr.bf16.gmra.mxu0 %v534
        %v1317 = vpop.f32.mrf.mxu0
        %v1318 = vadd.f32 0.0, %v1317
        %v1319 = vpop.f32.mrf.mxu0
        %v1320 = vpop.f32.mrf.mxu0
        %v1321 = vadd.f32 0.0, %v1320
        %v1322 = vpop.f32.mrf.mxu0
        %1323 = vmatprep.mubr.bf16.mxu0 %v537
        %1324 = vmatmul.mubr.bf16.gmra.mxu0 %v536
        %v1325 = vpop.f32.mrf.mxu0
        %v1326 = vadd.f32 0.0, %v1325
        %v1327 = vpop.f32.mrf.mxu0
        %v1328 = vpop.f32.mrf.mxu0
        %v1329 = vadd.f32 0.0, %v1328
        %v1330 = vpop.f32.mrf.mxu0
        %1331 = vmatprep.mubr.bf16.mxu0 %v539
        %1332 = vmatmul.mubr.bf16.gmra.mxu0 %v538
        %v1333 = vpop.f32.mrf.mxu0
        %v1334 = vadd.f32 0.0, %v1333
        %v1335 = vpop.f32.mrf.mxu0
        %v1336 = vpop.f32.mrf.mxu0
        %v1337 = vadd.f32 0.0, %v1336
        %v1338 = vpop.f32.mrf.mxu0
        %1339 = vmatprep.mubr.bf16.mxu0 %v541
        %1340 = vmatmul.mubr.bf16.gmra.mxu0 %v540
        %v1341 = vpop.f32.mrf.mxu0
        %v1342 = vadd.f32 0.0, %v1341
        %v1343 = vpop.f32.mrf.mxu0
        %v1344 = vpop.f32.mrf.mxu0
        %v1345 = vadd.f32 0.0, %v1344
        %v1346 = vpop.f32.mrf.mxu0
        %1347 = vmatprep.mubr.bf16.mxu0 %v543
        %1348 = vmatmul.mubr.bf16.gmra.mxu0 %v542
        %v1349 = vpop.f32.mrf.mxu0
        %v1350 = vadd.f32 0.0, %v1349
        %v1351 = vpop.f32.mrf.mxu0
        %v1352 = vpop.f32.mrf.mxu0
        %v1353 = vadd.f32 0.0, %v1352
        %v1354 = vpop.f32.mrf.mxu0
        %1355 = vmatprep.mubr.bf16.mxu0 %v545
        %1356 = vmatmul.mubr.bf16.gmra.mxu0 %v544
        %v1357 = vpop.f32.mrf.mxu0
        %v1358 = vadd.f32 0.0, %v1357
        %v1359 = vpop.f32.mrf.mxu0
        %v1360 = vpop.f32.mrf.mxu0
        %v1361 = vadd.f32 0.0, %v1360
        %v1362 = vpop.f32.mrf.mxu0
        %1363 = vmatprep.mubr.bf16.mxu0 %v547
        %1364 = vmatmul.mubr.bf16.gmra.mxu0 %v546
        %v1365 = vpop.f32.mrf.mxu0
        %v1366 = vadd.f32 0.0, %v1365
        %v1367 = vpop.f32.mrf.mxu0
        %v1368 = vpop.f32.mrf.mxu0
        %v1369 = vadd.f32 0.0, %v1368
        %v1370 = vpop.f32.mrf.mxu0
        %1371 = vmatprep.mubr.bf16.mxu0 %v549
        %1372 = vmatmul.mubr.bf16.gmra.mxu0 %v548
        %v1373 = vpop.f32.mrf.mxu0
        %v1374 = vadd.f32 0.0, %v1373
        %v1375 = vpop.f32.mrf.mxu0
        %v1376 = vpop.f32.mrf.mxu0
        %v1377 = vadd.f32 0.0, %v1376
        %v1378 = vpop.f32.mrf.mxu0
        %1379 = vmatprep.mubr.bf16.mxu0 %v551
        %1380 = vmatmul.mubr.bf16.gmra.mxu0 %v550
        %v1381 = vpop.f32.mrf.mxu0
        %v1382 = vadd.f32 0.0, %v1381
        %v1383 = vpop.f32.mrf.mxu0
        %v1384 = vpop.f32.mrf.mxu0
        %v1385 = vadd.f32 0.0, %v1384
        %v1386 = vpop.f32.mrf.mxu0
        %1387 = vmatprep.mubr.bf16.mxu0 %v553
        %1388 = vmatmul.mubr.bf16.gmra.mxu0 %v552
        %v1389 = vpop.f32.mrf.mxu0
        %v1390 = vadd.f32 0.0, %v1389
        %v1391 = vpop.f32.mrf.mxu0
        %v1392 = vpop.f32.mrf.mxu0
        %v1393 = vadd.f32 0.0, %v1392
        %v1394 = vpop.f32.mrf.mxu0
        %1395 = vmatprep.mubr.bf16.mxu0 %v555
        %1396 = vmatmul.mubr.bf16.gmra.mxu0 %v554
        %v1397 = vpop.f32.mrf.mxu0
        %v1398 = vadd.f32 0.0, %v1397
        %v1399 = vpop.f32.mrf.mxu0
        %v1400 = vpop.f32.mrf.mxu0
        %v1401 = vadd.f32 0.0, %v1400
        %v1402 = vpop.f32.mrf.mxu0
        %1403 = vmatprep.mubr.bf16.mxu0 %v557
        %1404 = vmatmul.mubr.bf16.gmra.mxu0 %v556
        %v1405 = vpop.f32.mrf.mxu0
        %v1406 = vadd.f32 0.0, %v1405
        %v1407 = vpop.f32.mrf.mxu0
        %v1408 = vpop.f32.mrf.mxu0
        %v1409 = vadd.f32 0.0, %v1408
        %v1410 = vpop.f32.mrf.mxu0
        %1411 = vmatprep.mubr.bf16.mxu0 %v559
        %1412 = vmatmul.mubr.bf16.gmra.mxu0 %v558
        %v1413 = vpop.f32.mrf.mxu0
        %v1414 = vadd.f32 0.0, %v1413
        %v1415 = vpop.f32.mrf.mxu0
        %v1416 = vpop.f32.mrf.mxu0
        %v1417 = vadd.f32 0.0, %v1416
        %v1418 = vpop.f32.mrf.mxu0
        %1419 = vdwg.mxu0
        %v1420 = vadd.f32 %v1004, %v1294
        %v1421 = vadd.f32 %v1007, %v1297
        %v1422 = vadd.f32 %v1012, %v1302
        %v1423 = vadd.f32 %v1015, %v1305
        %v1424 = vadd.f32 %v1020, %v1310
        %v1425 = vadd.f32 %v1023, %v1313
        %v1426 = vadd.f32 %v1028, %v1318
        %v1427 = vadd.f32 %v1031, %v1321
        %v1428 = vadd.f32 %v1036, %v1326
        %v1429 = vadd.f32 %v1039, %v1329
        %v1430 = vadd.f32 %v1044, %v1334
        %v1431 = vadd.f32 %v1047, %v1337
        %v1432 = vadd.f32 %v1052, %v1342
        %v1433 = vadd.f32 %v1055, %v1345
        %v1434 = vadd.f32 %v1060, %v1350
        %v1435 = vadd.f32 %v1063, %v1353
        %v1436 = vadd.f32 %v1068, %v1358
        %v1437 = vadd.f32 %v1071, %v1361
        %v1438 = vadd.f32 %v1076, %v1366
        %v1439 = vadd.f32 %v1079, %v1369
        %v1440 = vadd.f32 %v1084, %v1374
        %v1441 = vadd.f32 %v1087, %v1377
        %v1442 = vadd.f32 %v1092, %v1382
        %v1443 = vadd.f32 %v1095, %v1385
        %v1444 = vadd.f32 %v1100, %v1390
        %v1445 = vadd.f32 %v1103, %v1393
        %v1446 = vadd.f32 %v1108, %v1398
        %v1447 = vadd.f32 %v1111, %v1401
        %v1448 = vadd.f32 %v1116, %v1406
        %v1449 = vadd.f32 %v1119, %v1409
        %v1450 = vadd.f32 %v1124, %v1414
        %v1451 = vadd.f32 %v1127, %v1417
        %s1452 = scalar_lea.vmem %s2, 64
        %v1453 = vld [vmem:[%s1452] sm:$0xf]
        %v1454 = vld [vmem:[%s1452 + $0x4] sm:$0xf]
        %v1455 = vld [vmem:[%s1452 + $0x8] sm:$0xf]
        %v1456 = vld [vmem:[%s1452 + $0xc] sm:$0xf]
        %v1457 = vld [vmem:[%s1452 + $0x10] sm:$0xf]
        %v1458 = vld [vmem:[%s1452 + $0x14] sm:$0xf]
        %v1459 = vld [vmem:[%s1452 + $0x18] sm:$0xf]
        %v1460 = vld [vmem:[%s1452 + $0x1c] sm:$0xf]
        %v1461 = vld [vmem:[%s1452 + $0x20] sm:$0xf]
        %v1462 = vld [vmem:[%s1452 + $0x24] sm:$0xf]
        %v1463 = vld [vmem:[%s1452 + $0x28] sm:$0xf]
        %v1464 = vld [vmem:[%s1452 + $0x2c] sm:$0xf]
        %v1465 = vld [vmem:[%s1452 + $0x30] sm:$0xf]
        %v1466 = vld [vmem:[%s1452 + $0x34] sm:$0xf]
        %v1467 = vld [vmem:[%s1452 + $0x38] sm:$0xf]
        %v1468 = vld [vmem:[%s1452 + $0x3c] sm:$0xf]
        %v1485 = vunpack.c.l.b16 %v1453
        %v1486 = vunpack.c.l.b16 %v1454
        %v1487 = vunpack.c.l.b16 %v1455
        %v1488 = vunpack.c.l.b16 %v1456
        %v1489 = vunpack.c.l.b16 %v1457
        %v1490 = vunpack.c.l.b16 %v1458
        %v1491 = vunpack.c.l.b16 %v1459
        %v1492 = vunpack.c.l.b16 %v1460
        %v1493 = vunpack.c.l.b16 %v1461
        %v1494 = vunpack.c.l.b16 %v1462
        %v1495 = vunpack.c.l.b16 %v1463
        %v1496 = vunpack.c.l.b16 %v1464
        %v1497 = vunpack.c.l.b16 %v1465
        %v1498 = vunpack.c.l.b16 %v1466
        %v1499 = vunpack.c.l.b16 %v1467
        %v1500 = vunpack.c.l.b16 %v1468
        %v1501 = vpack.c.b16 %v1486, %v1485
        %v1502 = vpack.c.b16 %v1488, %v1487
        %v1503 = vpack.c.b16 %v1490, %v1489
        %v1504 = vpack.c.b16 %v1492, %v1491
        %v1505 = vpack.c.b16 %v1494, %v1493
        %v1506 = vpack.c.b16 %v1496, %v1495
        %v1507 = vpack.c.b16 %v1498, %v1497
        %v1508 = vpack.c.b16 %v1500, %v1499
        %1517 = vmatprep.subr.bf16.mxu0 0
        %1518 = vmatpush1.bf16.msra.mxu0 %v1508
        %1519 = vmatprep.subr.bf16.mxu0 0
        %1520 = vmatpush1.bf16.msra.mxu0 %v1507
        %1521 = vmatprep.subr.bf16.mxu0 0
        %1522 = vmatpush1.bf16.msra.mxu0 %v1506
        %1523 = vmatprep.subr.bf16.mxu0 0
        %1524 = vmatpush1.bf16.msra.mxu0 %v1505
        %1525 = vmatprep.subr.bf16.mxu0 0
        %1526 = vmatpush1.bf16.msra.mxu0 %v1504
        %1527 = vmatprep.subr.bf16.mxu0 0
        %1528 = vmatpush1.bf16.msra.mxu0 %v1503
        %1529 = vmatprep.subr.bf16.mxu0 0
        %1530 = vmatpush1.bf16.msra.mxu0 %v1502
        %1531 = vmatprep.subr.bf16.mxu0 0
        %1532 = vmatpush1.bf16.msra.mxu0 %v1501
        %1533 = vmatprep.subr.bf16.mxu0 0
        %1534 = vmatpush2.bf16.msra.mxu0 0
        %1535 = vmatprep.subr.bf16.mxu0 0
        %1536 = vmatpush2.bf16.msra.mxu0 0
        %1537 = vmatprep.subr.bf16.mxu0 0
        %1538 = vmatpush2.bf16.msra.mxu0 0
        %1539 = vmatprep.subr.bf16.mxu0 0
        %1540 = vmatpush2.bf16.msra.mxu0 0
        %1541 = vmatprep.subr.bf16.mxu0 0
        %1542 = vmatpush2.bf16.msra.mxu0 0
        %1543 = vmatprep.subr.bf16.mxu0 0
        %1544 = vmatpush2.bf16.msra.mxu0 0
        %1545 = vmatprep.subr.bf16.mxu0 0
        %1546 = vmatpush2.bf16.msra.mxu0 0
        %1547 = vmatprep.subr.bf16.mxu0 0
        %1548 = vmatpush2.bf16.msra.mxu0 0
        %1549 = vmatprep.mubr.bf16.mxu0 0
        %1550 = vmatmul.mubr.bf16.gmra.mxu0 %v599
        %v1551 = vpop.f32.mrf.mxu0
        %v1552 = vadd.f32 0.0, %v1551
        %v1553 = vpop.f32.mrf.mxu0
        %v1554 = vpop.f32.mrf.mxu0
        %v1555 = vadd.f32 0.0, %v1554
        %v1556 = vpop.f32.mrf.mxu0
        %1557 = vmatprep.mubr.bf16.mxu0 0
        %1558 = vmatmul.mubr.bf16.gmra.mxu0 %v600
        %v1559 = vpop.f32.mrf.mxu0
        %v1560 = vadd.f32 0.0, %v1559
        %v1561 = vpop.f32.mrf.mxu0
        %v1562 = vpop.f32.mrf.mxu0
        %v1563 = vadd.f32 0.0, %v1562
        %v1564 = vpop.f32.mrf.mxu0
        %1565 = vmatprep.mubr.bf16.mxu0 0
        %1566 = vmatmul.mubr.bf16.gmra.mxu0 %v601
        %v1567 = vpop.f32.mrf.mxu0
        %v1568 = vadd.f32 0.0, %v1567
        %v1569 = vpop.f32.mrf.mxu0
        %v1570 = vpop.f32.mrf.mxu0
        %v1571 = vadd.f32 0.0, %v1570
        %v1572 = vpop.f32.mrf.mxu0
        %1573 = vmatprep.mubr.bf16.mxu0 0
        %1574 = vmatmul.mubr.bf16.gmra.mxu0 %v602
        %v1575 = vpop.f32.mrf.mxu0
        %v1576 = vadd.f32 0.0, %v1575
        %v1577 = vpop.f32.mrf.mxu0
        %v1578 = vpop.f32.mrf.mxu0
        %v1579 = vadd.f32 0.0, %v1578
        %v1580 = vpop.f32.mrf.mxu0
        %1581 = vmatprep.mubr.bf16.mxu0 0
        %1582 = vmatmul.mubr.bf16.gmra.mxu0 %v603
        %v1583 = vpop.f32.mrf.mxu0
        %v1584 = vadd.f32 0.0, %v1583
        %v1585 = vpop.f32.mrf.mxu0
        %v1586 = vpop.f32.mrf.mxu0
        %v1587 = vadd.f32 0.0, %v1586
        %v1588 = vpop.f32.mrf.mxu0
        %1589 = vmatprep.mubr.bf16.mxu0 0
        %1590 = vmatmul.mubr.bf16.gmra.mxu0 %v604
        %v1591 = vpop.f32.mrf.mxu0
        %v1592 = vadd.f32 0.0, %v1591
        %v1593 = vpop.f32.mrf.mxu0
        %v1594 = vpop.f32.mrf.mxu0
        %v1595 = vadd.f32 0.0, %v1594
        %v1596 = vpop.f32.mrf.mxu0
        %1597 = vmatprep.mubr.bf16.mxu0 0
        %1598 = vmatmul.mubr.bf16.gmra.mxu0 %v605
        %v1599 = vpop.f32.mrf.mxu0
        %v1600 = vadd.f32 0.0, %v1599
        %v1601 = vpop.f32.mrf.mxu0
        %v1602 = vpop.f32.mrf.mxu0
        %v1603 = vadd.f32 0.0, %v1602
        %v1604 = vpop.f32.mrf.mxu0
        %1605 = vmatprep.mubr.bf16.mxu0 0
        %1606 = vmatmul.mubr.bf16.gmra.mxu0 %v606
        %v1607 = vpop.f32.mrf.mxu0
        %v1608 = vadd.f32 0.0, %v1607
        %v1609 = vpop.f32.mrf.mxu0
        %v1610 = vpop.f32.mrf.mxu0
        %v1611 = vadd.f32 0.0, %v1610
        %v1612 = vpop.f32.mrf.mxu0
        %1613 = vmatprep.mubr.bf16.mxu0 0
        %1614 = vmatmul.mubr.bf16.gmra.mxu0 %v607
        %v1615 = vpop.f32.mrf.mxu0
        %v1616 = vadd.f32 0.0, %v1615
        %v1617 = vpop.f32.mrf.mxu0
        %v1618 = vpop.f32.mrf.mxu0
        %v1619 = vadd.f32 0.0, %v1618
        %v1620 = vpop.f32.mrf.mxu0
        %1621 = vmatprep.mubr.bf16.mxu0 0
        %1622 = vmatmul.mubr.bf16.gmra.mxu0 %v608
        %v1623 = vpop.f32.mrf.mxu0
        %v1624 = vadd.f32 0.0, %v1623
        %v1625 = vpop.f32.mrf.mxu0
        %v1626 = vpop.f32.mrf.mxu0
        %v1627 = vadd.f32 0.0, %v1626
        %v1628 = vpop.f32.mrf.mxu0
        %1629 = vmatprep.mubr.bf16.mxu0 0
        %1630 = vmatmul.mubr.bf16.gmra.mxu0 %v609
        %v1631 = vpop.f32.mrf.mxu0
        %v1632 = vadd.f32 0.0, %v1631
        %v1633 = vpop.f32.mrf.mxu0
        %v1634 = vpop.f32.mrf.mxu0
        %v1635 = vadd.f32 0.0, %v1634
        %v1636 = vpop.f32.mrf.mxu0
        %1637 = vmatprep.mubr.bf16.mxu0 0
        %1638 = vmatmul.mubr.bf16.gmra.mxu0 %v610
        %v1639 = vpop.f32.mrf.mxu0
        %v1640 = vadd.f32 0.0, %v1639
        %v1641 = vpop.f32.mrf.mxu0
        %v1642 = vpop.f32.mrf.mxu0
        %v1643 = vadd.f32 0.0, %v1642
        %v1644 = vpop.f32.mrf.mxu0
        %1645 = vmatprep.mubr.bf16.mxu0 0
        %1646 = vmatmul.mubr.bf16.gmra.mxu0 %v611
        %v1647 = vpop.f32.mrf.mxu0
        %v1648 = vadd.f32 0.0, %v1647
        %v1649 = vpop.f32.mrf.mxu0
        %v1650 = vpop.f32.mrf.mxu0
        %v1651 = vadd.f32 0.0, %v1650
        %v1652 = vpop.f32.mrf.mxu0
        %1653 = vmatprep.mubr.bf16.mxu0 0
        %1654 = vmatmul.mubr.bf16.gmra.mxu0 %v612
        %v1655 = vpop.f32.mrf.mxu0
        %v1656 = vadd.f32 0.0, %v1655
        %v1657 = vpop.f32.mrf.mxu0
        %v1658 = vpop.f32.mrf.mxu0
        %v1659 = vadd.f32 0.0, %v1658
        %v1660 = vpop.f32.mrf.mxu0
        %1661 = vmatprep.mubr.bf16.mxu0 0
        %1662 = vmatmul.mubr.bf16.gmra.mxu0 %v613
        %v1663 = vpop.f32.mrf.mxu0
        %v1664 = vadd.f32 0.0, %v1663
        %v1665 = vpop.f32.mrf.mxu0
        %v1666 = vpop.f32.mrf.mxu0
        %v1667 = vadd.f32 0.0, %v1666
        %v1668 = vpop.f32.mrf.mxu0
        %1669 = vmatprep.mubr.bf16.mxu0 0
        %1670 = vmatmul.mubr.bf16.gmra.mxu0 %v614
        %v1671 = vpop.f32.mrf.mxu0
        %v1672 = vadd.f32 0.0, %v1671
        %v1673 = vpop.f32.mrf.mxu0
        %v1674 = vpop.f32.mrf.mxu0
        %v1675 = vadd.f32 0.0, %v1674
        %v1676 = vpop.f32.mrf.mxu0
        %1677 = vdwg.mxu0
        %v1678 = vadd.f32 %v1420, %v1552
        %v1679 = vadd.f32 %v1421, %v1555
        %v1680 = vadd.f32 %v1422, %v1560
        %v1681 = vadd.f32 %v1423, %v1563
        %v1682 = vadd.f32 %v1424, %v1568
        %v1683 = vadd.f32 %v1425, %v1571
        %v1684 = vadd.f32 %v1426, %v1576
        %v1685 = vadd.f32 %v1427, %v1579
        %v1686 = vadd.f32 %v1428, %v1584
        %v1687 = vadd.f32 %v1429, %v1587
        %v1688 = vadd.f32 %v1430, %v1592
        %v1689 = vadd.f32 %v1431, %v1595
        %v1690 = vadd.f32 %v1432, %v1600
        %v1691 = vadd.f32 %v1433, %v1603
        %v1692 = vadd.f32 %v1434, %v1608
        %v1693 = vadd.f32 %v1435, %v1611
        %v1694 = vadd.f32 %v1436, %v1616
        %v1695 = vadd.f32 %v1437, %v1619
        %v1696 = vadd.f32 %v1438, %v1624
        %v1697 = vadd.f32 %v1439, %v1627
        %v1698 = vadd.f32 %v1440, %v1632
        %v1699 = vadd.f32 %v1441, %v1635
        %v1700 = vadd.f32 %v1442, %v1640
        %v1701 = vadd.f32 %v1443, %v1643
        %v1702 = vadd.f32 %v1444, %v1648
        %v1703 = vadd.f32 %v1445, %v1651
        %v1704 = vadd.f32 %v1446, %v1656
        %v1705 = vadd.f32 %v1447, %v1659
        %v1706 = vadd.f32 %v1448, %v1664
        %v1707 = vadd.f32 %v1449, %v1667
        %v1708 = vadd.f32 %v1450, %v1672
        %v1709 = vadd.f32 %v1451, %v1675
        %s1710 = scalar_lea.vmem %s1, 256
        %v1711 = vld [vmem:[%s1710] sm:$0xf]
        %v1712 = vld [vmem:[%s1710 + $0x4] sm:$0xf]
        %v1713 = vld [vmem:[%s1710 + $0x8] sm:$0xf]
        %v1714 = vld [vmem:[%s1710 + $0xc] sm:$0xf]
        %v1715 = vld [vmem:[%s1710 + $0x10] sm:$0xf]
        %v1716 = vld [vmem:[%s1710 + $0x14] sm:$0xf]
        %v1717 = vld [vmem:[%s1710 + $0x18] sm:$0xf]
        %v1718 = vld [vmem:[%s1710 + $0x1c] sm:$0xf]
        %v1719 = vld [vmem:[%s1710 + $0x20] sm:$0xf]
        %v1720 = vld [vmem:[%s1710 + $0x24] sm:$0xf]
        %v1721 = vld [vmem:[%s1710 + $0x28] sm:$0xf]
        %v1722 = vld [vmem:[%s1710 + $0x2c] sm:$0xf]
        %v1723 = vld [vmem:[%s1710 + $0x30] sm:$0xf]
        %v1724 = vld [vmem:[%s1710 + $0x34] sm:$0xf]
        %v1725 = vld [vmem:[%s1710 + $0x38] sm:$0xf]
        %v1726 = vld [vmem:[%s1710 + $0x3c] sm:$0xf]
        %v1727 = vld [vmem:[%s1710 + $0x40] sm:$0xf]
        %v1728 = vld [vmem:[%s1710 + $0x44] sm:$0xf]
        %v1729 = vld [vmem:[%s1710 + $0x48] sm:$0xf]
        %v1730 = vld [vmem:[%s1710 + $0x4c] sm:$0xf]
        %v1731 = vld [vmem:[%s1710 + $0x50] sm:$0xf]
        %v1732 = vld [vmem:[%s1710 + $0x54] sm:$0xf]
        %v1733 = vld [vmem:[%s1710 + $0x58] sm:$0xf]
        %v1734 = vld [vmem:[%s1710 + $0x5c] sm:$0xf]
        %v1735 = vld [vmem:[%s1710 + $0x60] sm:$0xf]
        %v1736 = vld [vmem:[%s1710 + $0x64] sm:$0xf]
        %v1737 = vld [vmem:[%s1710 + $0x68] sm:$0xf]
        %v1738 = vld [vmem:[%s1710 + $0x6c] sm:$0xf]
        %v1739 = vld [vmem:[%s1710 + $0x70] sm:$0xf]
        %v1740 = vld [vmem:[%s1710 + $0x74] sm:$0xf]
        %v1741 = vld [vmem:[%s1710 + $0x78] sm:$0xf]
        %v1742 = vld [vmem:[%s1710 + $0x7c] sm:$0xf]
        %v1775 = vunpack.c.l.b16 %v1711
        %v1776 = vunpack.c.l.b16 %v1712
        %v1777 = vunpack.c.l.b16 %v1713
        %v1778 = vunpack.c.l.b16 %v1714
        %v1779 = vunpack.c.l.b16 %v1715
        %v1780 = vunpack.c.l.b16 %v1716
        %v1781 = vunpack.c.l.b16 %v1717
        %v1782 = vunpack.c.l.b16 %v1718
        %v1783 = vunpack.c.l.b16 %v1719
        %v1784 = vunpack.c.l.b16 %v1720
        %v1785 = vunpack.c.l.b16 %v1721
        %v1786 = vunpack.c.l.b16 %v1722
        %v1787 = vunpack.c.l.b16 %v1723
        %v1788 = vunpack.c.l.b16 %v1724
        %v1789 = vunpack.c.l.b16 %v1725
        %v1790 = vunpack.c.l.b16 %v1726
        %v1791 = vunpack.c.l.b16 %v1727
        %v1792 = vunpack.c.l.b16 %v1728
        %v1793 = vunpack.c.l.b16 %v1729
        %v1794 = vunpack.c.l.b16 %v1730
        %v1795 = vunpack.c.l.b16 %v1731
        %v1796 = vunpack.c.l.b16 %v1732
        %v1797 = vunpack.c.l.b16 %v1733
        %v1798 = vunpack.c.l.b16 %v1734
        %v1799 = vunpack.c.l.b16 %v1735
        %v1800 = vunpack.c.l.b16 %v1736
        %v1801 = vunpack.c.l.b16 %v1737
        %v1802 = vunpack.c.l.b16 %v1738
        %v1803 = vunpack.c.l.b16 %v1739
        %v1804 = vunpack.c.l.b16 %v1740
        %v1805 = vunpack.c.l.b16 %v1741
        %v1806 = vunpack.c.l.b16 %v1742
        %v1807 = vpack.c.b16 %v1776, %v1775
        %v1808 = vpack.c.b16 %v1778, %v1777
        %v1809 = vpack.c.b16 %v1780, %v1779
        %v1810 = vpack.c.b16 %v1782, %v1781
        %v1811 = vpack.c.b16 %v1784, %v1783
        %v1812 = vpack.c.b16 %v1786, %v1785
        %v1813 = vpack.c.b16 %v1788, %v1787
        %v1814 = vpack.c.b16 %v1790, %v1789
        %v1815 = vpack.c.b16 %v1792, %v1791
        %v1816 = vpack.c.b16 %v1794, %v1793
        %v1817 = vpack.c.b16 %v1796, %v1795
        %v1818 = vpack.c.b16 %v1798, %v1797
        %v1819 = vpack.c.b16 %v1800, %v1799
        %v1820 = vpack.c.b16 %v1802, %v1801
        %v1821 = vpack.c.b16 %v1804, %v1803
        %v1822 = vpack.c.b16 %v1806, %v1805
        %1839 = vmatprep.subr.bf16.mxu0 0
        %1840 = vmatpush1.bf16.msra.mxu0 %v1814
        %1841 = vmatprep.subr.bf16.mxu0 0
        %1842 = vmatpush1.bf16.msra.mxu0 %v1813
        %1843 = vmatprep.subr.bf16.mxu0 0
        %1844 = vmatpush1.bf16.msra.mxu0 %v1812
        %1845 = vmatprep.subr.bf16.mxu0 0
        %1846 = vmatpush1.bf16.msra.mxu0 %v1811
        %1847 = vmatprep.subr.bf16.mxu0 0
        %1848 = vmatpush1.bf16.msra.mxu0 %v1810
        %1849 = vmatprep.subr.bf16.mxu0 0
        %1850 = vmatpush1.bf16.msra.mxu0 %v1809
        %1851 = vmatprep.subr.bf16.mxu0 0
        %1852 = vmatpush1.bf16.msra.mxu0 %v1808
        %1853 = vmatprep.subr.bf16.mxu0 0
        %1854 = vmatpush1.bf16.msra.mxu0 %v1807
        %1855 = vmatprep.subr.bf16.mxu0 0
        %1856 = vmatpush2.bf16.msra.mxu0 %v1822
        %1857 = vmatprep.subr.bf16.mxu0 0
        %1858 = vmatpush2.bf16.msra.mxu0 %v1821
        %1859 = vmatprep.subr.bf16.mxu0 0
        %1860 = vmatpush2.bf16.msra.mxu0 %v1820
        %1861 = vmatprep.subr.bf16.mxu0 0
        %1862 = vmatpush2.bf16.msra.mxu0 %v1819
        %1863 = vmatprep.subr.bf16.mxu0 0
        %1864 = vmatpush2.bf16.msra.mxu0 %v1818
        %1865 = vmatprep.subr.bf16.mxu0 0
        %1866 = vmatpush2.bf16.msra.mxu0 %v1817
        %1867 = vmatprep.subr.bf16.mxu0 0
        %1868 = vmatpush2.bf16.msra.mxu0 %v1816
        %1869 = vmatprep.subr.bf16.mxu0 0
        %1870 = vmatpush2.bf16.msra.mxu0 %v1815
        %1871 = vmatprep.mubr.bf16.mxu0 %v531
        %1872 = vmatmul.mubr.bf16.gmra.mxu0 %v530
        %v1873 = vpop.f32.mrf.mxu0
        %v1874 = vadd.f32 0.0, %v1873
        %v1875 = vpop.f32.mrf.mxu0
        %v1876 = vpop.f32.mrf.mxu0
        %v1877 = vadd.f32 0.0, %v1876
        %v1878 = vpop.f32.mrf.mxu0
        %1879 = vmatprep.mubr.bf16.mxu0 %v533
        %1880 = vmatmul.mubr.bf16.gmra.mxu0 %v532
        %v1881 = vpop.f32.mrf.mxu0
        %v1882 = vadd.f32 0.0, %v1881
        %v1883 = vpop.f32.mrf.mxu0
        %v1884 = vpop.f32.mrf.mxu0
        %v1885 = vadd.f32 0.0, %v1884
        %v1886 = vpop.f32.mrf.mxu0
        %1887 = vmatprep.mubr.bf16.mxu0 %v535
        %1888 = vmatmul.mubr.bf16.gmra.mxu0 %v534
        %v1889 = vpop.f32.mrf.mxu0
        %v1890 = vadd.f32 0.0, %v1889
        %v1891 = vpop.f32.mrf.mxu0
        %v1892 = vpop.f32.mrf.mxu0
        %v1893 = vadd.f32 0.0, %v1892
        %v1894 = vpop.f32.mrf.mxu0
        %1895 = vmatprep.mubr.bf16.mxu0 %v537
        %1896 = vmatmul.mubr.bf16.gmra.mxu0 %v536
        %v1897 = vpop.f32.mrf.mxu0
        %v1898 = vadd.f32 0.0, %v1897
        %v1899 = vpop.f32.mrf.mxu0
        %v1900 = vpop.f32.mrf.mxu0
        %v1901 = vadd.f32 0.0, %v1900
        %v1902 = vpop.f32.mrf.mxu0
        %1903 = vmatprep.mubr.bf16.mxu0 %v539
        %1904 = vmatmul.mubr.bf16.gmra.mxu0 %v538
        %v1905 = vpop.f32.mrf.mxu0
        %v1906 = vadd.f32 0.0, %v1905
        %v1907 = vpop.f32.mrf.mxu0
        %v1908 = vpop.f32.mrf.mxu0
        %v1909 = vadd.f32 0.0, %v1908
        %v1910 = vpop.f32.mrf.mxu0
        %1911 = vmatprep.mubr.bf16.mxu0 %v541
        %1912 = vmatmul.mubr.bf16.gmra.mxu0 %v540
        %v1913 = vpop.f32.mrf.mxu0
        %v1914 = vadd.f32 0.0, %v1913
        %v1915 = vpop.f32.mrf.mxu0
        %v1916 = vpop.f32.mrf.mxu0
        %v1917 = vadd.f32 0.0, %v1916
        %v1918 = vpop.f32.mrf.mxu0
        %1919 = vmatprep.mubr.bf16.mxu0 %v543
        %1920 = vmatmul.mubr.bf16.gmra.mxu0 %v542
        %v1921 = vpop.f32.mrf.mxu0
        %v1922 = vadd.f32 0.0, %v1921
        %v1923 = vpop.f32.mrf.mxu0
        %v1924 = vpop.f32.mrf.mxu0
        %v1925 = vadd.f32 0.0, %v1924
        %v1926 = vpop.f32.mrf.mxu0
        %1927 = vmatprep.mubr.bf16.mxu0 %v545
        %1928 = vmatmul.mubr.bf16.gmra.mxu0 %v544
        %v1929 = vpop.f32.mrf.mxu0
        %v1930 = vadd.f32 0.0, %v1929
        %v1931 = vpop.f32.mrf.mxu0
        %v1932 = vpop.f32.mrf.mxu0
        %v1933 = vadd.f32 0.0, %v1932
        %v1934 = vpop.f32.mrf.mxu0
        %1935 = vmatprep.mubr.bf16.mxu0 %v547
        %1936 = vmatmul.mubr.bf16.gmra.mxu0 %v546
        %v1937 = vpop.f32.mrf.mxu0
        %v1938 = vadd.f32 0.0, %v1937
        %v1939 = vpop.f32.mrf.mxu0
        %v1940 = vpop.f32.mrf.mxu0
        %v1941 = vadd.f32 0.0, %v1940
        %v1942 = vpop.f32.mrf.mxu0
        %1943 = vmatprep.mubr.bf16.mxu0 %v549
        %1944 = vmatmul.mubr.bf16.gmra.mxu0 %v548
        %v1945 = vpop.f32.mrf.mxu0
        %v1946 = vadd.f32 0.0, %v1945
        %v1947 = vpop.f32.mrf.mxu0
        %v1948 = vpop.f32.mrf.mxu0
        %v1949 = vadd.f32 0.0, %v1948
        %v1950 = vpop.f32.mrf.mxu0
        %1951 = vmatprep.mubr.bf16.mxu0 %v551
        %1952 = vmatmul.mubr.bf16.gmra.mxu0 %v550
        %v1953 = vpop.f32.mrf.mxu0
        %v1954 = vadd.f32 0.0, %v1953
        %v1955 = vpop.f32.mrf.mxu0
        %v1956 = vpop.f32.mrf.mxu0
        %v1957 = vadd.f32 0.0, %v1956
        %v1958 = vpop.f32.mrf.mxu0
        %1959 = vmatprep.mubr.bf16.mxu0 %v553
        %1960 = vmatmul.mubr.bf16.gmra.mxu0 %v552
        %v1961 = vpop.f32.mrf.mxu0
        %v1962 = vadd.f32 0.0, %v1961
        %v1963 = vpop.f32.mrf.mxu0
        %v1964 = vpop.f32.mrf.mxu0
        %v1965 = vadd.f32 0.0, %v1964
        %v1966 = vpop.f32.mrf.mxu0
        %1967 = vmatprep.mubr.bf16.mxu0 %v555
        %1968 = vmatmul.mubr.bf16.gmra.mxu0 %v554
        %v1969 = vpop.f32.mrf.mxu0
        %v1970 = vadd.f32 0.0, %v1969
        %v1971 = vpop.f32.mrf.mxu0
        %v1972 = vpop.f32.mrf.mxu0
        %v1973 = vadd.f32 0.0, %v1972
        %v1974 = vpop.f32.mrf.mxu0
        %1975 = vmatprep.mubr.bf16.mxu0 %v557
        %1976 = vmatmul.mubr.bf16.gmra.mxu0 %v556
        %v1977 = vpop.f32.mrf.mxu0
        %v1978 = vadd.f32 0.0, %v1977
        %v1979 = vpop.f32.mrf.mxu0
        %v1980 = vpop.f32.mrf.mxu0
        %v1981 = vadd.f32 0.0, %v1980
        %v1982 = vpop.f32.mrf.mxu0
        %1983 = vmatprep.mubr.bf16.mxu0 %v559
        %1984 = vmatmul.mubr.bf16.gmra.mxu0 %v558
        %v1985 = vpop.f32.mrf.mxu0
        %v1986 = vadd.f32 0.0, %v1985
        %v1987 = vpop.f32.mrf.mxu0
        %v1988 = vpop.f32.mrf.mxu0
        %v1989 = vadd.f32 0.0, %v1988
        %v1990 = vpop.f32.mrf.mxu0
        %1991 = vmatprep.mubr.bf16.mxu0 %v561
        %1992 = vmatmul.mubr.bf16.gmra.mxu0 %v560
        %v1993 = vpop.f32.mrf.mxu0
        %v1994 = vadd.f32 0.0, %v1993
        %v1995 = vpop.f32.mrf.mxu0
        %v1996 = vpop.f32.mrf.mxu0
        %v1997 = vadd.f32 0.0, %v1996
        %v1998 = vpop.f32.mrf.mxu0
        %1999 = vdwg.mxu0
        %v2000 = vadd.f32 %v1678, %v1874
        %v2001 = vadd.f32 %v1679, %v1877
        %v2002 = vadd.f32 %v1680, %v1882
        %v2003 = vadd.f32 %v1681, %v1885
        %v2004 = vadd.f32 %v1682, %v1890
        %v2005 = vadd.f32 %v1683, %v1893
        %v2006 = vadd.f32 %v1684, %v1898
        %v2007 = vadd.f32 %v1685, %v1901
        %v2008 = vadd.f32 %v1686, %v1906
        %v2009 = vadd.f32 %v1687, %v1909
        %v2010 = vadd.f32 %v1688, %v1914
        %v2011 = vadd.f32 %v1689, %v1917
        %v2012 = vadd.f32 %v1690, %v1922
        %v2013 = vadd.f32 %v1691, %v1925
        %v2014 = vadd.f32 %v1692, %v1930
        %v2015 = vadd.f32 %v1693, %v1933
        %v2016 = vadd.f32 %v1694, %v1938
        %v2017 = vadd.f32 %v1695, %v1941
        %v2018 = vadd.f32 %v1696, %v1946
        %v2019 = vadd.f32 %v1697, %v1949
        %v2020 = vadd.f32 %v1698, %v1954
        %v2021 = vadd.f32 %v1699, %v1957
        %v2022 = vadd.f32 %v1700, %v1962
        %v2023 = vadd.f32 %v1701, %v1965
        %v2024 = vadd.f32 %v1702, %v1970
        %v2025 = vadd.f32 %v1703, %v1973
        %v2026 = vadd.f32 %v1704, %v1978
        %v2027 = vadd.f32 %v1705, %v1981
        %v2028 = vadd.f32 %v1706, %v1986
        %v2029 = vadd.f32 %v1707, %v1989
        %v2030 = vadd.f32 %v1708, %v1994
        %v2031 = vadd.f32 %v1709, %v1997
        %s2032 = scalar_lea.vmem %s2, 128
        %v2033 = vld [vmem:[%s2032] sm:$0xf]
        %v2034 = vld [vmem:[%s2032 + $0x4] sm:$0xf]
        %v2035 = vld [vmem:[%s2032 + $0x8] sm:$0xf]
        %v2036 = vld [vmem:[%s2032 + $0xc] sm:$0xf]
        %v2037 = vld [vmem:[%s2032 + $0x10] sm:$0xf]
        %v2038 = vld [vmem:[%s2032 + $0x14] sm:$0xf]
        %v2039 = vld [vmem:[%s2032 + $0x18] sm:$0xf]
        %v2040 = vld [vmem:[%s2032 + $0x1c] sm:$0xf]
        %v2041 = vld [vmem:[%s2032 + $0x20] sm:$0xf]
        %v2042 = vld [vmem:[%s2032 + $0x24] sm:$0xf]
        %v2043 = vld [vmem:[%s2032 + $0x28] sm:$0xf]
        %v2044 = vld [vmem:[%s2032 + $0x2c] sm:$0xf]
        %v2045 = vld [vmem:[%s2032 + $0x30] sm:$0xf]
        %v2046 = vld [vmem:[%s2032 + $0x34] sm:$0xf]
        %v2047 = vld [vmem:[%s2032 + $0x38] sm:$0xf]
        %v2048 = vld [vmem:[%s2032 + $0x3c] sm:$0xf]
        %v2065 = vunpack.c.l.b16 %v2033
        %v2066 = vunpack.c.l.b16 %v2034
        %v2067 = vunpack.c.l.b16 %v2035
        %v2068 = vunpack.c.l.b16 %v2036
        %v2069 = vunpack.c.l.b16 %v2037
        %v2070 = vunpack.c.l.b16 %v2038
        %v2071 = vunpack.c.l.b16 %v2039
        %v2072 = vunpack.c.l.b16 %v2040
        %v2073 = vunpack.c.l.b16 %v2041
        %v2074 = vunpack.c.l.b16 %v2042
        %v2075 = vunpack.c.l.b16 %v2043
        %v2076 = vunpack.c.l.b16 %v2044
        %v2077 = vunpack.c.l.b16 %v2045
        %v2078 = vunpack.c.l.b16 %v2046
        %v2079 = vunpack.c.l.b16 %v2047
        %v2080 = vunpack.c.l.b16 %v2048
        %v2081 = vpack.c.b16 %v2066, %v2065
        %v2082 = vpack.c.b16 %v2068, %v2067
        %v2083 = vpack.c.b16 %v2070, %v2069
        %v2084 = vpack.c.b16 %v2072, %v2071
        %v2085 = vpack.c.b16 %v2074, %v2073
        %v2086 = vpack.c.b16 %v2076, %v2075
        %v2087 = vpack.c.b16 %v2078, %v2077
        %v2088 = vpack.c.b16 %v2080, %v2079
        %2097 = vmatprep.subr.bf16.mxu0 0
        %2098 = vmatpush1.bf16.msra.mxu0 %v2088
        %2099 = vmatprep.subr.bf16.mxu0 0
        %2100 = vmatpush1.bf16.msra.mxu0 %v2087
        %2101 = vmatprep.subr.bf16.mxu0 0
        %2102 = vmatpush1.bf16.msra.mxu0 %v2086
        %2103 = vmatprep.subr.bf16.mxu0 0
        %2104 = vmatpush1.bf16.msra.mxu0 %v2085
        %2105 = vmatprep.subr.bf16.mxu0 0
        %2106 = vmatpush1.bf16.msra.mxu0 %v2084
        %2107 = vmatprep.subr.bf16.mxu0 0
        %2108 = vmatpush1.bf16.msra.mxu0 %v2083
        %2109 = vmatprep.subr.bf16.mxu0 0
        %2110 = vmatpush1.bf16.msra.mxu0 %v2082
        %2111 = vmatprep.subr.bf16.mxu0 0
        %2112 = vmatpush1.bf16.msra.mxu0 %v2081
        %2113 = vmatprep.subr.bf16.mxu0 0
        %2114 = vmatpush2.bf16.msra.mxu0 0
        %2115 = vmatprep.subr.bf16.mxu0 0
        %2116 = vmatpush2.bf16.msra.mxu0 0
        %2117 = vmatprep.subr.bf16.mxu0 0
        %2118 = vmatpush2.bf16.msra.mxu0 0
        %2119 = vmatprep.subr.bf16.mxu0 0
        %2120 = vmatpush2.bf16.msra.mxu0 0
        %2121 = vmatprep.subr.bf16.mxu0 0
        %2122 = vmatpush2.bf16.msra.mxu0 0
        %2123 = vmatprep.subr.bf16.mxu0 0
        %2124 = vmatpush2.bf16.msra.mxu0 0
        %2125 = vmatprep.subr.bf16.mxu0 0
        %2126 = vmatpush2.bf16.msra.mxu0 0
        %2127 = vmatprep.subr.bf16.mxu0 0
        %2128 = vmatpush2.bf16.msra.mxu0 0
        %2129 = vmatprep.mubr.bf16.mxu0 0
        %2130 = vmatmul.mubr.bf16.gmra.mxu0 %v600
        %v2131 = vpop.f32.mrf.mxu0
        %v2132 = vadd.f32 0.0, %v2131
        %v2133 = vpop.f32.mrf.mxu0
        %v2134 = vpop.f32.mrf.mxu0
        %v2135 = vadd.f32 0.0, %v2134
        %v2136 = vpop.f32.mrf.mxu0
        %2137 = vmatprep.mubr.bf16.mxu0 0
        %2138 = vmatmul.mubr.bf16.gmra.mxu0 %v601
        %v2139 = vpop.f32.mrf.mxu0
        %v2140 = vadd.f32 0.0, %v2139
        %v2141 = vpop.f32.mrf.mxu0
        %v2142 = vpop.f32.mrf.mxu0
        %v2143 = vadd.f32 0.0, %v2142
        %v2144 = vpop.f32.mrf.mxu0
        %2145 = vmatprep.mubr.bf16.mxu0 0
        %2146 = vmatmul.mubr.bf16.gmra.mxu0 %v602
        %v2147 = vpop.f32.mrf.mxu0
        %v2148 = vadd.f32 0.0, %v2147
        %v2149 = vpop.f32.mrf.mxu0
        %v2150 = vpop.f32.mrf.mxu0
        %v2151 = vadd.f32 0.0, %v2150
        %v2152 = vpop.f32.mrf.mxu0
        %2153 = vmatprep.mubr.bf16.mxu0 0
        %2154 = vmatmul.mubr.bf16.gmra.mxu0 %v603
        %v2155 = vpop.f32.mrf.mxu0
        %v2156 = vadd.f32 0.0, %v2155
        %v2157 = vpop.f32.mrf.mxu0
        %v2158 = vpop.f32.mrf.mxu0
        %v2159 = vadd.f32 0.0, %v2158
        %v2160 = vpop.f32.mrf.mxu0
        %2161 = vmatprep.mubr.bf16.mxu0 0
        %2162 = vmatmul.mubr.bf16.gmra.mxu0 %v604
        %v2163 = vpop.f32.mrf.mxu0
        %v2164 = vadd.f32 0.0, %v2163
        %v2165 = vpop.f32.mrf.mxu0
        %v2166 = vpop.f32.mrf.mxu0
        %v2167 = vadd.f32 0.0, %v2166
        %v2168 = vpop.f32.mrf.mxu0
        %2169 = vmatprep.mubr.bf16.mxu0 0
        %2170 = vmatmul.mubr.bf16.gmra.mxu0 %v605
        %v2171 = vpop.f32.mrf.mxu0
        %v2172 = vadd.f32 0.0, %v2171
        %v2173 = vpop.f32.mrf.mxu0
        %v2174 = vpop.f32.mrf.mxu0
        %v2175 = vadd.f32 0.0, %v2174
        %v2176 = vpop.f32.mrf.mxu0
        %2177 = vmatprep.mubr.bf16.mxu0 0
        %2178 = vmatmul.mubr.bf16.gmra.mxu0 %v606
        %v2179 = vpop.f32.mrf.mxu0
        %v2180 = vadd.f32 0.0, %v2179
        %v2181 = vpop.f32.mrf.mxu0
        %v2182 = vpop.f32.mrf.mxu0
        %v2183 = vadd.f32 0.0, %v2182
        %v2184 = vpop.f32.mrf.mxu0
        %2185 = vmatprep.mubr.bf16.mxu0 0
        %2186 = vmatmul.mubr.bf16.gmra.mxu0 %v607
        %v2187 = vpop.f32.mrf.mxu0
        %v2188 = vadd.f32 0.0, %v2187
        %v2189 = vpop.f32.mrf.mxu0
        %v2190 = vpop.f32.mrf.mxu0
        %v2191 = vadd.f32 0.0, %v2190
        %v2192 = vpop.f32.mrf.mxu0
        %2193 = vmatprep.mubr.bf16.mxu0 0
        %2194 = vmatmul.mubr.bf16.gmra.mxu0 %v608
        %v2195 = vpop.f32.mrf.mxu0
        %v2196 = vadd.f32 0.0, %v2195
        %v2197 = vpop.f32.mrf.mxu0
        %v2198 = vpop.f32.mrf.mxu0
        %v2199 = vadd.f32 0.0, %v2198
        %v2200 = vpop.f32.mrf.mxu0
        %2201 = vmatprep.mubr.bf16.mxu0 0
        %2202 = vmatmul.mubr.bf16.gmra.mxu0 %v609
        %v2203 = vpop.f32.mrf.mxu0
        %v2204 = vadd.f32 0.0, %v2203
        %v2205 = vpop.f32.mrf.mxu0
        %v2206 = vpop.f32.mrf.mxu0
        %v2207 = vadd.f32 0.0, %v2206
        %v2208 = vpop.f32.mrf.mxu0
        %2209 = vmatprep.mubr.bf16.mxu0 0
        %2210 = vmatmul.mubr.bf16.gmra.mxu0 %v610
        %v2211 = vpop.f32.mrf.mxu0
        %v2212 = vadd.f32 0.0, %v2211
        %v2213 = vpop.f32.mrf.mxu0
        %v2214 = vpop.f32.mrf.mxu0
        %v2215 = vadd.f32 0.0, %v2214
        %v2216 = vpop.f32.mrf.mxu0
        %2217 = vmatprep.mubr.bf16.mxu0 0
        %2218 = vmatmul.mubr.bf16.gmra.mxu0 %v611
        %v2219 = vpop.f32.mrf.mxu0
        %v2220 = vadd.f32 0.0, %v2219
        %v2221 = vpop.f32.mrf.mxu0
        %v2222 = vpop.f32.mrf.mxu0
        %v2223 = vadd.f32 0.0, %v2222
        %v2224 = vpop.f32.mrf.mxu0
        %2225 = vmatprep.mubr.bf16.mxu0 0
        %2226 = vmatmul.mubr.bf16.gmra.mxu0 %v612
        %v2227 = vpop.f32.mrf.mxu0
        %v2228 = vadd.f32 0.0, %v2227
        %v2229 = vpop.f32.mrf.mxu0
        %v2230 = vpop.f32.mrf.mxu0
        %v2231 = vadd.f32 0.0, %v2230
        %v2232 = vpop.f32.mrf.mxu0
        %2233 = vmatprep.mubr.bf16.mxu0 0
        %2234 = vmatmul.mubr.bf16.gmra.mxu0 %v613
        %v2235 = vpop.f32.mrf.mxu0
        %v2236 = vadd.f32 0.0, %v2235
        %v2237 = vpop.f32.mrf.mxu0
        %v2238 = vpop.f32.mrf.mxu0
        %v2239 = vadd.f32 0.0, %v2238
        %v2240 = vpop.f32.mrf.mxu0
        %2241 = vmatprep.mubr.bf16.mxu0 0
        %2242 = vmatmul.mubr.bf16.gmra.mxu0 %v614
        %v2243 = vpop.f32.mrf.mxu0
        %v2244 = vadd.f32 0.0, %v2243
        %v2245 = vpop.f32.mrf.mxu0
        %v2246 = vpop.f32.mrf.mxu0
        %v2247 = vadd.f32 0.0, %v2246
        %v2248 = vpop.f32.mrf.mxu0
        %2249 = vmatprep.mubr.bf16.mxu0 0
        %2250 = vmatmul.mubr.bf16.gmra.mxu0 %v615
        %v2251 = vpop.f32.mrf.mxu0
        %v2252 = vadd.f32 0.0, %v2251
        %v2253 = vpop.f32.mrf.mxu0
        %v2254 = vpop.f32.mrf.mxu0
        %v2255 = vadd.f32 0.0, %v2254
        %v2256 = vpop.f32.mrf.mxu0
        %2257 = vdwg.mxu0
        %v2258 = vadd.f32 %v2000, %v2132
        %v2259 = vadd.f32 %v2001, %v2135
        %v2260 = vadd.f32 %v2002, %v2140
        %v2261 = vadd.f32 %v2003, %v2143
        %v2262 = vadd.f32 %v2004, %v2148
        %v2263 = vadd.f32 %v2005, %v2151
        %v2264 = vadd.f32 %v2006, %v2156
        %v2265 = vadd.f32 %v2007, %v2159
        %v2266 = vadd.f32 %v2008, %v2164
        %v2267 = vadd.f32 %v2009, %v2167
        %v2268 = vadd.f32 %v2010, %v2172
        %v2269 = vadd.f32 %v2011, %v2175
        %v2270 = vadd.f32 %v2012, %v2180
        %v2271 = vadd.f32 %v2013, %v2183
        %v2272 = vadd.f32 %v2014, %v2188
        %v2273 = vadd.f32 %v2015, %v2191
        %v2274 = vadd.f32 %v2016, %v2196
        %v2275 = vadd.f32 %v2017, %v2199
        %v2276 = vadd.f32 %v2018, %v2204
        %v2277 = vadd.f32 %v2019, %v2207
        %v2278 = vadd.f32 %v2020, %v2212
        %v2279 = vadd.f32 %v2021, %v2215
        %v2280 = vadd.f32 %v2022, %v2220
        %v2281 = vadd.f32 %v2023, %v2223
        %v2282 = vadd.f32 %v2024, %v2228
        %v2283 = vadd.f32 %v2025, %v2231
        %v2284 = vadd.f32 %v2026, %v2236
        %v2285 = vadd.f32 %v2027, %v2239
        %v2286 = vadd.f32 %v2028, %v2244
        %v2287 = vadd.f32 %v2029, %v2247
        %v2288 = vadd.f32 %v2030, %v2252
        %v2289 = vadd.f32 %v2031, %v2255
        %v2290 = vmax.f32 %v2258, 0.0
        %v2291 = vmax.f32 %v2259, 0.0
        %v2292 = vmax.f32 %v2260, 0.0
        %v2293 = vmax.f32 %v2261, 0.0
        %v2294 = vmax.f32 %v2262, 0.0
        %v2295 = vmax.f32 %v2263, 0.0
        %v2296 = vmax.f32 %v2264, 0.0
        %v2297 = vmax.f32 %v2265, 0.0
        %v2298 = vmax.f32 %v2266, 0.0
        %v2299 = vmax.f32 %v2267, 0.0
        %v2300 = vmax.f32 %v2268, 0.0
        %v2301 = vmax.f32 %v2269, 0.0
        %v2302 = vmax.f32 %v2270, 0.0
        %v2303 = vmax.f32 %v2271, 0.0
        %v2304 = vmax.f32 %v2272, 0.0
        %v2305 = vmax.f32 %v2273, 0.0
        %v2306 = vmax.f32 %v2274, 0.0
        %v2307 = vmax.f32 %v2275, 0.0
        %v2308 = vmax.f32 %v2276, 0.0
        %v2309 = vmax.f32 %v2277, 0.0
        %v2310 = vmax.f32 %v2278, 0.0
        %v2311 = vmax.f32 %v2279, 0.0
        %v2312 = vmax.f32 %v2280, 0.0
        %v2313 = vmax.f32 %v2281, 0.0
        %v2314 = vmax.f32 %v2282, 0.0
        %v2315 = vmax.f32 %v2283, 0.0
        %v2316 = vmax.f32 %v2284, 0.0
        %v2317 = vmax.f32 %v2285, 0.0
        %v2318 = vmax.f32 %v2286, 0.0
        %v2319 = vmax.f32 %v2287, 0.0
        %v2320 = vmax.f32 %v2288, 0.0
        %v2321 = vmax.f32 %v2289, 0.0
        %s2322 = scalar_lea.vmem [#allocation3], 24
        %2323 = vst [vmem:[%s2322 + $0x1] sm:$0xff] %v2290
        %2324 = vst [vmem:[%s2322 + $0x9] sm:$0xff] %v2291
        %2325 = vst [vmem:[%s2322 + $0x19] sm:$0xff] %v2292
        %2326 = vst [vmem:[%s2322 + $0x21] sm:$0xff] %v2293
        %2327 = vst [vmem:[%s2322 + $0x31] sm:$0xff] %v2294
        %2328 = vst [vmem:[%s2322 + $0x39] sm:$0xff] %v2295
        %2329 = vst [vmem:[%s2322 + $0x49] sm:$0xff] %v2296
        %2330 = vst [vmem:[%s2322 + $0x51] sm:$0xff] %v2297
        %2331 = vst [vmem:[%s2322 + $0x61] sm:$0xff] %v2298
        %2332 = vst [vmem:[%s2322 + $0x69] sm:$0xff] %v2299
        %2333 = vst [vmem:[%s2322 + $0x79] sm:$0xff] %v2300
        %2334 = vst [vmem:[%s2322 + $0x81] sm:$0xff] %v2301
        %2335 = vst [vmem:[%s2322 + $0x91] sm:$0xff] %v2302
        %2336 = vst [vmem:[%s2322 + $0x99] sm:$0xff] %v2303
        %2337 = vst [vmem:[%s2322 + $0xa9] sm:$0xff] %v2304
        %2338 = vst [vmem:[%s2322 + $0xb1] sm:$0xff] %v2305
        %2339 = vst [vmem:[%s2322 + $0xc1] sm:$0xff] %v2306
        %2340 = vst [vmem:[%s2322 + $0xc9] sm:$0xff] %v2307
        %2341 = vst [vmem:[%s2322 + $0xd9] sm:$0xff] %v2308
        %2342 = vst [vmem:[%s2322 + $0xe1] sm:$0xff] %v2309
        %2343 = vst [vmem:[%s2322 + $0xf1] sm:$0xff] %v2310
        %2344 = vst [vmem:[%s2322 + $0xf9] sm:$0xff] %v2311
        %2345 = vst [vmem:[%s2322 + $0x109] sm:$0xff] %v2312
        %2346 = vst [vmem:[%s2322 + $0x111] sm:$0xff] %v2313
        %2347 = vst [vmem:[%s2322 + $0x121] sm:$0xff] %v2314
        %2348 = vst [vmem:[%s2322 + $0x129] sm:$0xff] %v2315
        %2349 = vst [vmem:[%s2322 + $0x139] sm:$0xff] %v2316
        %2350 = vst [vmem:[%s2322 + $0x141] sm:$0xff] %v2317
        %2351 = vst [vmem:[%s2322 + $0x151] sm:$0xff] %v2318
        %2352 = vst [vmem:[%s2322 + $0x159] sm:$0xff] %v2319
        %2353 = vst [vmem:[%s2322 + $0x169] sm:$0xff] %v2320
        %2354 = vst [vmem:[%s2322 + $0x171] sm:$0xff] %v2321
        %v2355 = vld [vmem:[#allocation3] ss:$2 sm:$0xff]
        %s2356 = scalar_lea.vmem [#allocation3], 24
        %v2357 = vld [vmem:[%s2356] ss:$2 sm:$0xff]
        %s2358 = scalar_lea.vmem [#allocation3], 48
        %v2359 = vld [vmem:[%s2358] ss:$2 sm:$0xff]
        %s2360 = scalar_lea.vmem [#allocation3], 72
        %v2361 = vld [vmem:[%s2360] ss:$2 sm:$0xff]
        %s2362 = scalar_lea.vmem [#allocation3], 96
        %v2363 = vld [vmem:[%s2362] ss:$2 sm:$0xff]
        %s2364 = scalar_lea.vmem [#allocation3], 120
        %v2365 = vld [vmem:[%s2364] ss:$2 sm:$0xff]
        %s2366 = scalar_lea.vmem [#allocation3], 144
        %v2367 = vld [vmem:[%s2366] ss:$2 sm:$0xff]
        %s2368 = scalar_lea.vmem [#allocation3], 168
        %v2369 = vld [vmem:[%s2368] ss:$2 sm:$0xff]
        %s2370 = scalar_lea.vmem [#allocation3], 192
        %v2371 = vld [vmem:[%s2370] ss:$2 sm:$0xff]
        %s2372 = scalar_lea.vmem [#allocation3], 216
        %v2373 = vld [vmem:[%s2372] ss:$2 sm:$0xff]
        %s2374 = scalar_lea.vmem [#allocation3], 240
        %v2375 = vld [vmem:[%s2374] ss:$2 sm:$0xff]
        %s2376 = scalar_lea.vmem [#allocation3], 264
        %v2377 = vld [vmem:[%s2376] ss:$2 sm:$0xff]
        %s2378 = scalar_lea.vmem [#allocation3], 288
        %v2379 = vld [vmem:[%s2378] ss:$2 sm:$0xff]
        %s2380 = scalar_lea.vmem [#allocation3], 312
        %v2381 = vld [vmem:[%s2380] ss:$2 sm:$0xff]
        %s2382 = scalar_lea.vmem [#allocation3], 336
        %v2383 = vld [vmem:[%s2382] ss:$2 sm:$0xff]
        %s2384 = scalar_lea.vmem [#allocation3], 360
        %v2385 = vld [vmem:[%s2384] ss:$2 sm:$0xff]
        %s2386 = scalar_lea.vmem [#allocation3], 384
        %v2387 = vld [vmem:[%s2386] ss:$2 sm:$0xff]
        %s2388 = scalar_lea.vmem [#allocation3], 1
        %v2389 = vld [vmem:[%s2388] ss:$2 sm:$0xff]
        %s2390 = scalar_lea.vmem [#allocation3], 25
        %v2391 = vld [vmem:[%s2390] ss:$2 sm:$0xff]
        %s2392 = scalar_lea.vmem [#allocation3], 49
        %v2393 = vld [vmem:[%s2392] ss:$2 sm:$0xff]
        %s2394 = scalar_lea.vmem [#allocation3], 73
        %v2395 = vld [vmem:[%s2394] ss:$2 sm:$0xff]
        %s2396 = scalar_lea.vmem [#allocation3], 97
        %v2397 = vld [vmem:[%s2396] ss:$2 sm:$0xff]
        %s2398 = scalar_lea.vmem [#allocation3], 121
        %v2399 = vld [vmem:[%s2398] ss:$2 sm:$0xff]
        %s2400 = scalar_lea.vmem [#allocation3], 145
        %v2401 = vld [vmem:[%s2400] ss:$2 sm:$0xff]
        %s2402 = scalar_lea.vmem [#allocation3], 169
        %v2403 = vld [vmem:[%s2402] ss:$2 sm:$0xff]
        %s2404 = scalar_lea.vmem [#allocation3], 193
        %v2405 = vld [vmem:[%s2404] ss:$2 sm:$0xff]
        %s2406 = scalar_lea.vmem [#allocation3], 217
        %v2407 = vld [vmem:[%s2406] ss:$2 sm:$0xff]
        %s2408 = scalar_lea.vmem [#allocation3], 241
        %v2409 = vld [vmem:[%s2408] ss:$2 sm:$0xff]
        %s2410 = scalar_lea.vmem [#allocation3], 265
        %v2411 = vld [vmem:[%s2410] ss:$2 sm:$0xff]
        %s2412 = scalar_lea.vmem [#allocation3], 289
        %v2413 = vld [vmem:[%s2412] ss:$2 sm:$0xff]
        %s2414 = scalar_lea.vmem [#allocation3], 313
        %v2415 = vld [vmem:[%s2414] ss:$2 sm:$0xff]
        %s2416 = scalar_lea.vmem [#allocation3], 337
        %v2417 = vld [vmem:[%s2416] ss:$2 sm:$0xff]
        %s2418 = scalar_lea.vmem [#allocation3], 361
        %v2419 = vld [vmem:[%s2418] ss:$2 sm:$0xff]
        %s2420 = scalar_lea.vmem [#allocation3], 385
        %v2421 = vld [vmem:[%s2420] ss:$2 sm:$0xff]
        %v2422 = vpack.c.bf16 %v2355, %v2355
        %v2423 = vpack.c.bf16 %v2389, %v2389
        %v2424 = vpack.c.bf16 %v2357, %v2357
        %v2425 = vpack.c.bf16 %v2391, %v2391
        %v2426 = vpack.c.bf16 %v2359, %v2359
        %v2427 = vpack.c.bf16 %v2393, %v2393
        %v2428 = vpack.c.bf16 %v2361, %v2361
        %v2429 = vpack.c.bf16 %v2395, %v2395
        %v2430 = vpack.c.bf16 %v2363, %v2363
        %v2431 = vpack.c.bf16 %v2397, %v2397
        %v2432 = vpack.c.bf16 %v2365, %v2365
        %v2433 = vpack.c.bf16 %v2399, %v2399
        %v2434 = vpack.c.bf16 %v2367, %v2367
        %v2435 = vpack.c.bf16 %v2401, %v2401
        %v2436 = vpack.c.bf16 %v2369, %v2369
        %v2437 = vpack.c.bf16 %v2403, %v2403
        %v2438 = vpack.c.bf16 %v2371, %v2371
        %v2439 = vpack.c.bf16 %v2405, %v2405
        %v2440 = vpack.c.bf16 %v2373, %v2373
        %v2441 = vpack.c.bf16 %v2407, %v2407
        %v2442 = vpack.c.bf16 %v2375, %v2375
        %v2443 = vpack.c.bf16 %v2409, %v2409
        %v2444 = vpack.c.bf16 %v2377, %v2377
        %v2445 = vpack.c.bf16 %v2411, %v2411
        %v2446 = vpack.c.bf16 %v2379, %v2379
        %v2447 = vpack.c.bf16 %v2413, %v2413
        %v2448 = vpack.c.bf16 %v2381, %v2381
        %v2449 = vpack.c.bf16 %v2415, %v2415
        %v2450 = vpack.c.bf16 %v2383, %v2383
        %v2451 = vpack.c.bf16 %v2417, %v2417
        %v2452 = vpack.c.bf16 %v2385, %v2385
        %v2453 = vpack.c.bf16 %v2419, %v2419
        %v2454 = vpack.c.bf16 %v2387, %v2387
        %v2455 = vpack.c.bf16 %v2421, %v2421
        %s2456 = scalar_lea.vmem [#allocation3], 2
        %v2457 = vld [vmem:[%s2456] ss:$2 sm:$0xff]
        %s2458 = scalar_lea.vmem [#allocation3], 26
        %v2459 = vld [vmem:[%s2458] ss:$2 sm:$0xff]
        %s2460 = scalar_lea.vmem [#allocation3], 50
        %v2461 = vld [vmem:[%s2460] ss:$2 sm:$0xff]
        %s2462 = scalar_lea.vmem [#allocation3], 74
        %v2463 = vld [vmem:[%s2462] ss:$2 sm:$0xff]
        %s2464 = scalar_lea.vmem [#allocation3], 98
        %v2465 = vld [vmem:[%s2464] ss:$2 sm:$0xff]
        %s2466 = scalar_lea.vmem [#allocation3], 122
        %v2467 = vld [vmem:[%s2466] ss:$2 sm:$0xff]
        %s2468 = scalar_lea.vmem [#allocation3], 146
        %v2469 = vld [vmem:[%s2468] ss:$2 sm:$0xff]
        %s2470 = scalar_lea.vmem [#allocation3], 170
        %v2471 = vld [vmem:[%s2470] ss:$2 sm:$0xff]
        %s2472 = scalar_lea.vmem [#allocation3], 194
        %v2473 = vld [vmem:[%s2472] ss:$2 sm:$0xff]
        %s2474 = scalar_lea.vmem [#allocation3], 218
        %v2475 = vld [vmem:[%s2474] ss:$2 sm:$0xff]
        %s2476 = scalar_lea.vmem [#allocation3], 242
        %v2477 = vld [vmem:[%s2476] ss:$2 sm:$0xff]
        %s2478 = scalar_lea.vmem [#allocation3], 266
        %v2479 = vld [vmem:[%s2478] ss:$2 sm:$0xff]
        %s2480 = scalar_lea.vmem [#allocation3], 290
        %v2481 = vld [vmem:[%s2480] ss:$2 sm:$0xff]
        %s2482 = scalar_lea.vmem [#allocation3], 314
        %v2483 = vld [vmem:[%s2482] ss:$2 sm:$0xff]
        %s2484 = scalar_lea.vmem [#allocation3], 338
        %v2485 = vld [vmem:[%s2484] ss:$2 sm:$0xff]
        %s2486 = scalar_lea.vmem [#allocation3], 362
        %v2487 = vld [vmem:[%s2486] ss:$2 sm:$0xff]
        %s2488 = scalar_lea.vmem [#allocation3], 386
        %v2489 = vld [vmem:[%s2488] ss:$2 sm:$0xff]
        %v2490 = vpack.c.bf16 %v2457, %v2457
        %v2491 = vpack.c.bf16 %v2459, %v2459
        %v2492 = vpack.c.bf16 %v2461, %v2461
        %v2493 = vpack.c.bf16 %v2463, %v2463
        %v2494 = vpack.c.bf16 %v2465, %v2465
        %v2495 = vpack.c.bf16 %v2467, %v2467
        %v2496 = vpack.c.bf16 %v2469, %v2469
        %v2497 = vpack.c.bf16 %v2471, %v2471
        %v2498 = vpack.c.bf16 %v2473, %v2473
        %v2499 = vpack.c.bf16 %v2475, %v2475
        %v2500 = vpack.c.bf16 %v2477, %v2477
        %v2501 = vpack.c.bf16 %v2479, %v2479
        %v2502 = vpack.c.bf16 %v2481, %v2481
        %v2503 = vpack.c.bf16 %v2483, %v2483
        %v2504 = vpack.c.bf16 %v2485, %v2485
        %v2505 = vpack.c.bf16 %v2487, %v2487
        %v2506 = vpack.c.bf16 %v2489, %v2489
        %v2523 = vunpack.c.l.b16 %v2422
        %v2524 = vunpack.c.l.b16 %v2423
        %v2525 = vunpack.c.l.b16 %v2426
        %v2526 = vunpack.c.l.b16 %v2427
        %v2527 = vunpack.c.l.b16 %v2430
        %v2528 = vunpack.c.l.b16 %v2431
        %v2529 = vunpack.c.l.b16 %v2434
        %v2530 = vunpack.c.l.b16 %v2435
        %v2531 = vunpack.c.l.b16 %v2438
        %v2532 = vunpack.c.l.b16 %v2439
        %v2533 = vunpack.c.l.b16 %v2442
        %v2534 = vunpack.c.l.b16 %v2443
        %v2535 = vunpack.c.l.b16 %v2446
        %v2536 = vunpack.c.l.b16 %v2447
        %v2537 = vunpack.c.l.b16 %v2450
        %v2538 = vunpack.c.l.b16 %v2451
        %v2539 = vld [vmem:[%s3] sm:$0xf]
        %v2540 = vld [vmem:[%s3 + $0x4] sm:$0xf]
        %v2541 = vld [vmem:[%s3 + $0x8] sm:$0xf]
        %v2542 = vld [vmem:[%s3 + $0xc] sm:$0xf]
        %v2543 = vld [vmem:[%s3 + $0x10] sm:$0xf]
        %v2544 = vld [vmem:[%s3 + $0x14] sm:$0xf]
        %v2545 = vld [vmem:[%s3 + $0x18] sm:$0xf]
        %v2546 = vld [vmem:[%s3 + $0x1c] sm:$0xf]
        %v2547 = vld [vmem:[%s3 + $0x20] sm:$0xf]
        %v2548 = vld [vmem:[%s3 + $0x24] sm:$0xf]
        %v2549 = vld [vmem:[%s3 + $0x28] sm:$0xf]
        %v2550 = vld [vmem:[%s3 + $0x2c] sm:$0xf]
        %v2551 = vld [vmem:[%s3 + $0x30] sm:$0xf]
        %v2552 = vld [vmem:[%s3 + $0x34] sm:$0xf]
        %v2553 = vld [vmem:[%s3 + $0x38] sm:$0xf]
        %v2554 = vld [vmem:[%s3 + $0x3c] sm:$0xf]
        %v2555 = vld [vmem:[%s3 + $0x40] sm:$0xf]
        %v2556 = vld [vmem:[%s3 + $0x44] sm:$0xf]
        %v2557 = vld [vmem:[%s3 + $0x48] sm:$0xf]
        %v2558 = vld [vmem:[%s3 + $0x4c] sm:$0xf]
        %v2559 = vld [vmem:[%s3 + $0x50] sm:$0xf]
        %v2560 = vld [vmem:[%s3 + $0x54] sm:$0xf]
        %v2561 = vld [vmem:[%s3 + $0x58] sm:$0xf]
        %v2562 = vld [vmem:[%s3 + $0x5c] sm:$0xf]
        %v2563 = vld [vmem:[%s3 + $0x60] sm:$0xf]
        %v2564 = vld [vmem:[%s3 + $0x64] sm:$0xf]
        %v2565 = vld [vmem:[%s3 + $0x68] sm:$0xf]
        %v2566 = vld [vmem:[%s3 + $0x6c] sm:$0xf]
        %v2567 = vld [vmem:[%s3 + $0x70] sm:$0xf]
        %v2568 = vld [vmem:[%s3 + $0x74] sm:$0xf]
        %v2569 = vld [vmem:[%s3 + $0x78] sm:$0xf]
        %v2570 = vld [vmem:[%s3 + $0x7c] sm:$0xf]
        %v2571 = vld [vmem:[%s4] sm:$0xf]
        %v2572 = vld [vmem:[%s4 + $0x4] sm:$0xf]
        %v2573 = vld [vmem:[%s4 + $0x8] sm:$0xf]
        %v2574 = vld [vmem:[%s4 + $0xc] sm:$0xf]
        %v2575 = vld [vmem:[%s4 + $0x10] sm:$0xf]
        %v2576 = vld [vmem:[%s4 + $0x14] sm:$0xf]
        %v2577 = vld [vmem:[%s4 + $0x18] sm:$0xf]
        %v2578 = vld [vmem:[%s4 + $0x1c] sm:$0xf]
        %v2579 = vld [vmem:[%s4 + $0x20] sm:$0xf]
        %v2580 = vld [vmem:[%s4 + $0x24] sm:$0xf]
        %v2581 = vld [vmem:[%s4 + $0x28] sm:$0xf]
        %v2582 = vld [vmem:[%s4 + $0x2c] sm:$0xf]
        %v2583 = vld [vmem:[%s4 + $0x30] sm:$0xf]
        %v2584 = vld [vmem:[%s4 + $0x34] sm:$0xf]
        %v2585 = vld [vmem:[%s4 + $0x38] sm:$0xf]
        %v2586 = vld [vmem:[%s4 + $0x3c] sm:$0xf]
        %v2595 = vunpack.c.l.b16 %v2490
        %v2596 = vunpack.c.l.b16 %v2492
        %v2597 = vunpack.c.l.b16 %v2494
        %v2598 = vunpack.c.l.b16 %v2496
        %v2599 = vunpack.c.l.b16 %v2498
        %v2600 = vunpack.c.l.b16 %v2500
        %v2601 = vunpack.c.l.b16 %v2502
        %v2602 = vunpack.c.l.b16 %v2504
        %v2603 = vpack.c.b16 %v2596, %v2595
        %v2604 = vpack.c.b16 %v2598, %v2597
        %v2605 = vpack.c.b16 %v2600, %v2599
        %v2606 = vpack.c.b16 %v2602, %v2601
        %v2627 = vunpack.c.l.b16 %v2571
        %v2628 = vunpack.c.l.b16 %v2572
        %v2629 = vunpack.c.l.b16 %v2573
        %v2630 = vunpack.c.l.b16 %v2574
        %v2631 = vunpack.c.l.b16 %v2575
        %v2632 = vunpack.c.l.b16 %v2576
        %v2633 = vunpack.c.l.b16 %v2577
        %v2634 = vunpack.c.l.b16 %v2578
        %v2635 = vunpack.c.l.b16 %v2579
        %v2636 = vunpack.c.l.b16 %v2580
        %v2637 = vunpack.c.l.b16 %v2581
        %v2638 = vunpack.c.l.b16 %v2582
        %v2639 = vunpack.c.l.b16 %v2583
        %v2640 = vunpack.c.l.b16 %v2584
        %v2641 = vunpack.c.l.b16 %v2585
        %v2642 = vunpack.c.l.b16 %v2586
        %v2643 = vpack.c.b16 %v2628, %v2627
        %v2644 = vpack.c.b16 %v2630, %v2629
        %v2645 = vpack.c.b16 %v2632, %v2631
        %v2646 = vpack.c.b16 %v2634, %v2633
        %v2647 = vpack.c.b16 %v2636, %v2635
        %v2648 = vpack.c.b16 %v2638, %v2637
        %v2649 = vpack.c.b16 %v2640, %v2639
        %v2650 = vpack.c.b16 %v2642, %v2641
        %2659 = vmatprep.subr.bf16.mxu0 0
        %2660 = vmatpush1.bf16.msra.mxu0 %v2650
        %2661 = vmatprep.subr.bf16.mxu0 0
        %2662 = vmatpush1.bf16.msra.mxu0 %v2649
        %2663 = vmatprep.subr.bf16.mxu0 0
        %2664 = vmatpush1.bf16.msra.mxu0 %v2648
        %2665 = vmatprep.subr.bf16.mxu0 0
        %2666 = vmatpush1.bf16.msra.mxu0 %v2647
        %2667 = vmatprep.subr.bf16.mxu0 0
        %2668 = vmatpush1.bf16.msra.mxu0 %v2646
        %2669 = vmatprep.subr.bf16.mxu0 0
        %2670 = vmatpush1.bf16.msra.mxu0 %v2645
        %2671 = vmatprep.subr.bf16.mxu0 0
        %2672 = vmatpush1.bf16.msra.mxu0 %v2644
        %2673 = vmatprep.subr.bf16.mxu0 0
        %2674 = vmatpush1.bf16.msra.mxu0 %v2643
        %2675 = vmatprep.subr.bf16.mxu0 0
        %2676 = vmatpush2.bf16.msra.mxu0 0
        %2677 = vmatprep.subr.bf16.mxu0 0
        %2678 = vmatpush2.bf16.msra.mxu0 0
        %2679 = vmatprep.subr.bf16.mxu0 0
        %2680 = vmatpush2.bf16.msra.mxu0 0
        %2681 = vmatprep.subr.bf16.mxu0 0
        %2682 = vmatpush2.bf16.msra.mxu0 0
        %2683 = vmatprep.subr.bf16.mxu0 0
        %2684 = vmatpush2.bf16.msra.mxu0 0
        %2685 = vmatprep.subr.bf16.mxu0 0
        %2686 = vmatpush2.bf16.msra.mxu0 0
        %2687 = vmatprep.subr.bf16.mxu0 0
        %2688 = vmatpush2.bf16.msra.mxu0 0
        %2689 = vmatprep.subr.bf16.mxu0 0
        %2690 = vmatpush2.bf16.msra.mxu0 0
        %2691 = vmatprep.mubr.bf16.mxu0 0
        %2692 = vmatmul.mubr.bf16.gmra.mxu0 %v2603
        %v2693 = vpop.f32.mrf.mxu0
        %v2694 = vadd.f32 0.0, %v2693
        %v2695 = vpop.f32.mrf.mxu0
        %v2696 = vpop.f32.mrf.mxu0
        %v2697 = vadd.f32 0.0, %v2696
        %v2698 = vpop.f32.mrf.mxu0
        %2699 = vmatprep.mubr.bf16.mxu0 0
        %2700 = vmatmul.mubr.bf16.gmra.mxu0 %v2604
        %v2701 = vpop.f32.mrf.mxu0
        %v2702 = vadd.f32 0.0, %v2701
        %v2703 = vpop.f32.mrf.mxu0
        %v2704 = vpop.f32.mrf.mxu0
        %v2705 = vadd.f32 0.0, %v2704
        %v2706 = vpop.f32.mrf.mxu0
        %2707 = vmatprep.mubr.bf16.mxu0 0
        %2708 = vmatmul.mubr.bf16.gmra.mxu0 %v2605
        %v2709 = vpop.f32.mrf.mxu0
        %v2710 = vadd.f32 0.0, %v2709
        %v2711 = vpop.f32.mrf.mxu0
        %v2712 = vpop.f32.mrf.mxu0
        %v2713 = vadd.f32 0.0, %v2712
        %v2714 = vpop.f32.mrf.mxu0
        %2715 = vmatprep.mubr.bf16.mxu0 0
        %2716 = vmatmul.mubr.bf16.gmra.mxu0 %v2606
        %v2717 = vpop.f32.mrf.mxu0
        %v2718 = vadd.f32 0.0, %v2717
        %v2719 = vpop.f32.mrf.mxu0
        %v2720 = vpop.f32.mrf.mxu0
        %v2721 = vadd.f32 0.0, %v2720
        %v2722 = vpop.f32.mrf.mxu0
        %2723 = vdwg.mxu0
        %v2724 = vpack.c.b16 %v2525, %v2523
        %v2725 = vpack.c.b16 %v2526, %v2524
        %v2726 = vpack.c.b16 %v2529, %v2527
        %v2727 = vpack.c.b16 %v2530, %v2528
        %v2728 = vpack.c.b16 %v2533, %v2531
        %v2729 = vpack.c.b16 %v2534, %v2532
        %v2730 = vpack.c.b16 %v2537, %v2535
        %v2731 = vpack.c.b16 %v2538, %v2536
        %v2772 = vunpack.c.l.b16 %v2539
        %v2773 = vunpack.c.l.b16 %v2540
        %v2774 = vunpack.c.l.b16 %v2541
        %v2775 = vunpack.c.l.b16 %v2542
        %v2776 = vunpack.c.l.b16 %v2543
        %v2777 = vunpack.c.l.b16 %v2544
        %v2778 = vunpack.c.l.b16 %v2545
        %v2779 = vunpack.c.l.b16 %v2546
        %v2780 = vunpack.c.l.b16 %v2547
        %v2781 = vunpack.c.l.b16 %v2548
        %v2782 = vunpack.c.l.b16 %v2549
        %v2783 = vunpack.c.l.b16 %v2550
        %v2784 = vunpack.c.l.b16 %v2551
        %v2785 = vunpack.c.l.b16 %v2552
        %v2786 = vunpack.c.l.b16 %v2553
        %v2787 = vunpack.c.l.b16 %v2554
        %v2788 = vunpack.c.l.b16 %v2555
        %v2789 = vunpack.c.l.b16 %v2556
        %v2790 = vunpack.c.l.b16 %v2557
        %v2791 = vunpack.c.l.b16 %v2558
        %v2792 = vunpack.c.l.b16 %v2559
        %v2793 = vunpack.c.l.b16 %v2560
        %v2794 = vunpack.c.l.b16 %v2561
        %v2795 = vunpack.c.l.b16 %v2562
        %v2796 = vunpack.c.l.b16 %v2563
        %v2797 = vunpack.c.l.b16 %v2564
        %v2798 = vunpack.c.l.b16 %v2565
        %v2799 = vunpack.c.l.b16 %v2566
        %v2800 = vunpack.c.l.b16 %v2567
        %v2801 = vunpack.c.l.b16 %v2568
        %v2802 = vunpack.c.l.b16 %v2569
        %v2803 = vunpack.c.l.b16 %v2570
        %v2804 = vpack.c.b16 %v2773, %v2772
        %v2805 = vpack.c.b16 %v2775, %v2774
        %v2806 = vpack.c.b16 %v2777, %v2776
        %v2807 = vpack.c.b16 %v2779, %v2778
        %v2808 = vpack.c.b16 %v2781, %v2780
        %v2809 = vpack.c.b16 %v2783, %v2782
        %v2810 = vpack.c.b16 %v2785, %v2784
        %v2811 = vpack.c.b16 %v2787, %v2786
        %v2812 = vpack.c.b16 %v2789, %v2788
        %v2813 = vpack.c.b16 %v2791, %v2790
        %v2814 = vpack.c.b16 %v2793, %v2792
        %v2815 = vpack.c.b16 %v2795, %v2794
        %v2816 = vpack.c.b16 %v2797, %v2796
        %v2817 = vpack.c.b16 %v2799, %v2798
        %v2818 = vpack.c.b16 %v2801, %v2800
        %v2819 = vpack.c.b16 %v2803, %v2802
        %2836 = vmatprep.subr.bf16.mxu0 0
        %2837 = vmatpush1.bf16.msra.mxu0 %v2811
        %2838 = vmatprep.subr.bf16.mxu0 0
        %2839 = vmatpush1.bf16.msra.mxu0 %v2810
        %2840 = vmatprep.subr.bf16.mxu0 0
        %2841 = vmatpush1.bf16.msra.mxu0 %v2809
        %2842 = vmatprep.subr.bf16.mxu0 0
        %2843 = vmatpush1.bf16.msra.mxu0 %v2808
        %2844 = vmatprep.subr.bf16.mxu0 0
        %2845 = vmatpush1.bf16.msra.mxu0 %v2807
        %2846 = vmatprep.subr.bf16.mxu0 0
        %2847 = vmatpush1.bf16.msra.mxu0 %v2806
        %2848 = vmatprep.subr.bf16.mxu0 0
        %2849 = vmatpush1.bf16.msra.mxu0 %v2805
        %2850 = vmatprep.subr.bf16.mxu0 0
        %2851 = vmatpush1.bf16.msra.mxu0 %v2804
        %2852 = vmatprep.subr.bf16.mxu0 0
        %2853 = vmatpush2.bf16.msra.mxu0 %v2819
        %2854 = vmatprep.subr.bf16.mxu0 0
        %2855 = vmatpush2.bf16.msra.mxu0 %v2818
        %2856 = vmatprep.subr.bf16.mxu0 0
        %2857 = vmatpush2.bf16.msra.mxu0 %v2817
        %2858 = vmatprep.subr.bf16.mxu0 0
        %2859 = vmatpush2.bf16.msra.mxu0 %v2816
        %2860 = vmatprep.subr.bf16.mxu0 0
        %2861 = vmatpush2.bf16.msra.mxu0 %v2815
        %2862 = vmatprep.subr.bf16.mxu0 0
        %2863 = vmatpush2.bf16.msra.mxu0 %v2814
        %2864 = vmatprep.subr.bf16.mxu0 0
        %2865 = vmatpush2.bf16.msra.mxu0 %v2813
        %2866 = vmatprep.subr.bf16.mxu0 0
        %2867 = vmatpush2.bf16.msra.mxu0 %v2812
        %2868 = vmatprep.mubr.bf16.mxu0 %v2725
        %2869 = vmatmul.mubr.bf16.gmra.mxu0 %v2724
        %v2870 = vpop.f32.mrf.mxu0
        %v2871 = vadd.f32 %v2694, %v2870
        %v2872 = vpop.f32.mrf.mxu0
        %v2873 = vpop.f32.mrf.mxu0
        %v2874 = vadd.f32 %v2697, %v2873
        %v2875 = vpop.f32.mrf.mxu0
        %2876 = vmatprep.mubr.bf16.mxu0 %v2727
        %2877 = vmatmul.mubr.bf16.gmra.mxu0 %v2726
        %v2878 = vpop.f32.mrf.mxu0
        %v2879 = vadd.f32 %v2702, %v2878
        %v2880 = vpop.f32.mrf.mxu0
        %v2881 = vpop.f32.mrf.mxu0
        %v2882 = vadd.f32 %v2705, %v2881
        %v2883 = vpop.f32.mrf.mxu0
        %2884 = vmatprep.mubr.bf16.mxu0 %v2729
        %2885 = vmatmul.mubr.bf16.gmra.mxu0 %v2728
        %v2886 = vpop.f32.mrf.mxu0
        %v2887 = vadd.f32 %v2710, %v2886
        %v2888 = vpop.f32.mrf.mxu0
        %v2889 = vpop.f32.mrf.mxu0
        %v2890 = vadd.f32 %v2713, %v2889
        %v2891 = vpop.f32.mrf.mxu0
        %2892 = vmatprep.mubr.bf16.mxu0 %v2731
        %2893 = vmatmul.mubr.bf16.gmra.mxu0 %v2730
        %v2894 = vpop.f32.mrf.mxu0
        %v2895 = vadd.f32 %v2718, %v2894
        %v2896 = vpop.f32.mrf.mxu0
        %v2897 = vpop.f32.mrf.mxu0
        %v2898 = vadd.f32 %v2721, %v2897
        %v2899 = vpop.f32.mrf.mxu0
        %2900 = vdwg.mxu0
        %v2917 = vunpack.c.l.b16 %v2424
        %v2918 = vunpack.c.l.b16 %v2425
        %v2919 = vunpack.c.l.b16 %v2428
        %v2920 = vunpack.c.l.b16 %v2429
        %v2921 = vunpack.c.l.b16 %v2432
        %v2922 = vunpack.c.l.b16 %v2433
        %v2923 = vunpack.c.l.b16 %v2436
        %v2924 = vunpack.c.l.b16 %v2437
        %v2925 = vunpack.c.l.b16 %v2440
        %v2926 = vunpack.c.l.b16 %v2441
        %v2927 = vunpack.c.l.b16 %v2444
        %v2928 = vunpack.c.l.b16 %v2445
        %v2929 = vunpack.c.l.b16 %v2448
        %v2930 = vunpack.c.l.b16 %v2449
        %v2931 = vunpack.c.l.b16 %v2452
        %v2932 = vunpack.c.l.b16 %v2453
        %s2933 = scalar_lea.vmem %s3, 128
        %v2934 = vld [vmem:[%s2933] sm:$0xf]
        %v2935 = vld [vmem:[%s2933 + $0x4] sm:$0xf]
        %v2936 = vld [vmem:[%s2933 + $0x8] sm:$0xf]
        %v2937 = vld [vmem:[%s2933 + $0xc] sm:$0xf]
        %v2938 = vld [vmem:[%s2933 + $0x10] sm:$0xf]
        %v2939 = vld [vmem:[%s2933 + $0x14] sm:$0xf]
        %v2940 = vld [vmem:[%s2933 + $0x18] sm:$0xf]
        %v2941 = vld [vmem:[%s2933 + $0x1c] sm:$0xf]
        %v2942 = vld [vmem:[%s2933 + $0x20] sm:$0xf]
        %v2943 = vld [vmem:[%s2933 + $0x24] sm:$0xf]
        %v2944 = vld [vmem:[%s2933 + $0x28] sm:$0xf]
        %v2945 = vld [vmem:[%s2933 + $0x2c] sm:$0xf]
        %v2946 = vld [vmem:[%s2933 + $0x30] sm:$0xf]
        %v2947 = vld [vmem:[%s2933 + $0x34] sm:$0xf]
        %v2948 = vld [vmem:[%s2933 + $0x38] sm:$0xf]
        %v2949 = vld [vmem:[%s2933 + $0x3c] sm:$0xf]
        %v2950 = vld [vmem:[%s2933 + $0x40] sm:$0xf]
        %v2951 = vld [vmem:[%s2933 + $0x44] sm:$0xf]
        %v2952 = vld [vmem:[%s2933 + $0x48] sm:$0xf]
        %v2953 = vld [vmem:[%s2933 + $0x4c] sm:$0xf]
        %v2954 = vld [vmem:[%s2933 + $0x50] sm:$0xf]
        %v2955 = vld [vmem:[%s2933 + $0x54] sm:$0xf]
        %v2956 = vld [vmem:[%s2933 + $0x58] sm:$0xf]
        %v2957 = vld [vmem:[%s2933 + $0x5c] sm:$0xf]
        %v2958 = vld [vmem:[%s2933 + $0x60] sm:$0xf]
        %v2959 = vld [vmem:[%s2933 + $0x64] sm:$0xf]
        %v2960 = vld [vmem:[%s2933 + $0x68] sm:$0xf]
        %v2961 = vld [vmem:[%s2933 + $0x6c] sm:$0xf]
        %v2962 = vld [vmem:[%s2933 + $0x70] sm:$0xf]
        %v2963 = vld [vmem:[%s2933 + $0x74] sm:$0xf]
        %v2964 = vld [vmem:[%s2933 + $0x78] sm:$0xf]
        %v2965 = vld [vmem:[%s2933 + $0x7c] sm:$0xf]
        %v2966 = vpack.c.b16 %v2919, %v2917
        %v2967 = vpack.c.b16 %v2920, %v2918
        %v2968 = vpack.c.b16 %v2923, %v2921
        %v2969 = vpack.c.b16 %v2924, %v2922
        %v2970 = vpack.c.b16 %v2927, %v2925
        %v2971 = vpack.c.b16 %v2928, %v2926
        %v2972 = vpack.c.b16 %v2931, %v2929
        %v2973 = vpack.c.b16 %v2932, %v2930
        %v3014 = vunpack.c.l.b16 %v2934
        %v3015 = vunpack.c.l.b16 %v2935
        %v3016 = vunpack.c.l.b16 %v2936
        %v3017 = vunpack.c.l.b16 %v2937
        %v3018 = vunpack.c.l.b16 %v2938
        %v3019 = vunpack.c.l.b16 %v2939
        %v3020 = vunpack.c.l.b16 %v2940
        %v3021 = vunpack.c.l.b16 %v2941
        %v3022 = vunpack.c.l.b16 %v2942
        %v3023 = vunpack.c.l.b16 %v2943
        %v3024 = vunpack.c.l.b16 %v2944
        %v3025 = vunpack.c.l.b16 %v2945
        %v3026 = vunpack.c.l.b16 %v2946
        %v3027 = vunpack.c.l.b16 %v2947
        %v3028 = vunpack.c.l.b16 %v2948
        %v3029 = vunpack.c.l.b16 %v2949
        %v3030 = vunpack.c.l.b16 %v2950
        %v3031 = vunpack.c.l.b16 %v2951
        %v3032 = vunpack.c.l.b16 %v2952
        %v3033 = vunpack.c.l.b16 %v2953
        %v3034 = vunpack.c.l.b16 %v2954
        %v3035 = vunpack.c.l.b16 %v2955
        %v3036 = vunpack.c.l.b16 %v2956
        %v3037 = vunpack.c.l.b16 %v2957
        %v3038 = vunpack.c.l.b16 %v2958
        %v3039 = vunpack.c.l.b16 %v2959
        %v3040 = vunpack.c.l.b16 %v2960
        %v3041 = vunpack.c.l.b16 %v2961
        %v3042 = vunpack.c.l.b16 %v2962
        %v3043 = vunpack.c.l.b16 %v2963
        %v3044 = vunpack.c.l.b16 %v2964
        %v3045 = vunpack.c.l.b16 %v2965
        %v3046 = vpack.c.b16 %v3015, %v3014
        %v3047 = vpack.c.b16 %v3017, %v3016
        %v3048 = vpack.c.b16 %v3019, %v3018
        %v3049 = vpack.c.b16 %v3021, %v3020
        %v3050 = vpack.c.b16 %v3023, %v3022
        %v3051 = vpack.c.b16 %v3025, %v3024
        %v3052 = vpack.c.b16 %v3027, %v3026
        %v3053 = vpack.c.b16 %v3029, %v3028
        %v3054 = vpack.c.b16 %v3031, %v3030
        %v3055 = vpack.c.b16 %v3033, %v3032
        %v3056 = vpack.c.b16 %v3035, %v3034
        %v3057 = vpack.c.b16 %v3037, %v3036
        %v3058 = vpack.c.b16 %v3039, %v3038
        %v3059 = vpack.c.b16 %v3041, %v3040
        %v3060 = vpack.c.b16 %v3043, %v3042
        %v3061 = vpack.c.b16 %v3045, %v3044
        %3078 = vmatprep.subr.bf16.mxu0 0
        %3079 = vmatpush1.bf16.msra.mxu0 %v3053
        %3080 = vmatprep.subr.bf16.mxu0 0
        %3081 = vmatpush1.bf16.msra.mxu0 %v3052
        %3082 = vmatprep.subr.bf16.mxu0 0
        %3083 = vmatpush1.bf16.msra.mxu0 %v3051
        %3084 = vmatprep.subr.bf16.mxu0 0
        %3085 = vmatpush1.bf16.msra.mxu0 %v3050
        %3086 = vmatprep.subr.bf16.mxu0 0
        %3087 = vmatpush1.bf16.msra.mxu0 %v3049
        %3088 = vmatprep.subr.bf16.mxu0 0
        %3089 = vmatpush1.bf16.msra.mxu0 %v3048
        %3090 = vmatprep.subr.bf16.mxu0 0
        %3091 = vmatpush1.bf16.msra.mxu0 %v3047
        %3092 = vmatprep.subr.bf16.mxu0 0
        %3093 = vmatpush1.bf16.msra.mxu0 %v3046
        %3094 = vmatprep.subr.bf16.mxu0 0
        %3095 = vmatpush2.bf16.msra.mxu0 %v3061
        %3096 = vmatprep.subr.bf16.mxu0 0
        %3097 = vmatpush2.bf16.msra.mxu0 %v3060
        %3098 = vmatprep.subr.bf16.mxu0 0
        %3099 = vmatpush2.bf16.msra.mxu0 %v3059
        %3100 = vmatprep.subr.bf16.mxu0 0
        %3101 = vmatpush2.bf16.msra.mxu0 %v3058
        %3102 = vmatprep.subr.bf16.mxu0 0
        %3103 = vmatpush2.bf16.msra.mxu0 %v3057
        %3104 = vmatprep.subr.bf16.mxu0 0
        %3105 = vmatpush2.bf16.msra.mxu0 %v3056
        %3106 = vmatprep.subr.bf16.mxu0 0
        %3107 = vmatpush2.bf16.msra.mxu0 %v3055
        %3108 = vmatprep.subr.bf16.mxu0 0
        %3109 = vmatpush2.bf16.msra.mxu0 %v3054
        %3110 = vmatprep.mubr.bf16.mxu0 %v2967
        %3111 = vmatmul.mubr.bf16.gmra.mxu0 %v2966
        %v3112 = vpop.f32.mrf.mxu0
        %v3113 = vadd.f32 0.0, %v3112
        %v3114 = vpop.f32.mrf.mxu0
        %v3115 = vpop.f32.mrf.mxu0
        %v3116 = vadd.f32 0.0, %v3115
        %v3117 = vpop.f32.mrf.mxu0
        %3118 = vmatprep.mubr.bf16.mxu0 %v2969
        %3119 = vmatmul.mubr.bf16.gmra.mxu0 %v2968
        %v3120 = vpop.f32.mrf.mxu0
        %v3121 = vadd.f32 0.0, %v3120
        %v3122 = vpop.f32.mrf.mxu0
        %v3123 = vpop.f32.mrf.mxu0
        %v3124 = vadd.f32 0.0, %v3123
        %v3125 = vpop.f32.mrf.mxu0
        %3126 = vmatprep.mubr.bf16.mxu0 %v2971
        %3127 = vmatmul.mubr.bf16.gmra.mxu0 %v2970
        %v3128 = vpop.f32.mrf.mxu0
        %v3129 = vadd.f32 0.0, %v3128
        %v3130 = vpop.f32.mrf.mxu0
        %v3131 = vpop.f32.mrf.mxu0
        %v3132 = vadd.f32 0.0, %v3131
        %v3133 = vpop.f32.mrf.mxu0
        %3134 = vmatprep.mubr.bf16.mxu0 %v2973
        %3135 = vmatmul.mubr.bf16.gmra.mxu0 %v2972
        %v3136 = vpop.f32.mrf.mxu0
        %v3137 = vadd.f32 0.0, %v3136
        %v3138 = vpop.f32.mrf.mxu0
        %v3139 = vpop.f32.mrf.mxu0
        %v3140 = vadd.f32 0.0, %v3139
        %v3141 = vpop.f32.mrf.mxu0
        %3142 = vdwg.mxu0
        %v3143 = vadd.f32 %v2871, %v3113
        %v3144 = vadd.f32 %v2874, %v3116
        %v3145 = vadd.f32 %v2879, %v3121
        %v3146 = vadd.f32 %v2882, %v3124
        %v3147 = vadd.f32 %v2887, %v3129
        %v3148 = vadd.f32 %v2890, %v3132
        %v3149 = vadd.f32 %v2895, %v3137
        %v3150 = vadd.f32 %v2898, %v3140
        %s3151 = scalar_lea.vmem %s4, 64
        %v3152 = vld [vmem:[%s3151] sm:$0xf]
        %v3153 = vld [vmem:[%s3151 + $0x4] sm:$0xf]
        %v3154 = vld [vmem:[%s3151 + $0x8] sm:$0xf]
        %v3155 = vld [vmem:[%s3151 + $0xc] sm:$0xf]
        %v3156 = vld [vmem:[%s3151 + $0x10] sm:$0xf]
        %v3157 = vld [vmem:[%s3151 + $0x14] sm:$0xf]
        %v3158 = vld [vmem:[%s3151 + $0x18] sm:$0xf]
        %v3159 = vld [vmem:[%s3151 + $0x1c] sm:$0xf]
        %v3160 = vld [vmem:[%s3151 + $0x20] sm:$0xf]
        %v3161 = vld [vmem:[%s3151 + $0x24] sm:$0xf]
        %v3162 = vld [vmem:[%s3151 + $0x28] sm:$0xf]
        %v3163 = vld [vmem:[%s3151 + $0x2c] sm:$0xf]
        %v3164 = vld [vmem:[%s3151 + $0x30] sm:$0xf]
        %v3165 = vld [vmem:[%s3151 + $0x34] sm:$0xf]
        %v3166 = vld [vmem:[%s3151 + $0x38] sm:$0xf]
        %v3167 = vld [vmem:[%s3151 + $0x3c] sm:$0xf]
        %v3176 = vunpack.c.l.b16 %v2491
        %v3177 = vunpack.c.l.b16 %v2493
        %v3178 = vunpack.c.l.b16 %v2495
        %v3179 = vunpack.c.l.b16 %v2497
        %v3180 = vunpack.c.l.b16 %v2499
        %v3181 = vunpack.c.l.b16 %v2501
        %v3182 = vunpack.c.l.b16 %v2503
        %v3183 = vunpack.c.l.b16 %v2505
        %v3184 = vpack.c.b16 %v3177, %v3176
        %v3185 = vpack.c.b16 %v3179, %v3178
        %v3186 = vpack.c.b16 %v3181, %v3180
        %v3187 = vpack.c.b16 %v3183, %v3182
        %v3208 = vunpack.c.l.b16 %v3152
        %v3209 = vunpack.c.l.b16 %v3153
        %v3210 = vunpack.c.l.b16 %v3154
        %v3211 = vunpack.c.l.b16 %v3155
        %v3212 = vunpack.c.l.b16 %v3156
        %v3213 = vunpack.c.l.b16 %v3157
        %v3214 = vunpack.c.l.b16 %v3158
        %v3215 = vunpack.c.l.b16 %v3159
        %v3216 = vunpack.c.l.b16 %v3160
        %v3217 = vunpack.c.l.b16 %v3161
        %v3218 = vunpack.c.l.b16 %v3162
        %v3219 = vunpack.c.l.b16 %v3163
        %v3220 = vunpack.c.l.b16 %v3164
        %v3221 = vunpack.c.l.b16 %v3165
        %v3222 = vunpack.c.l.b16 %v3166
        %v3223 = vunpack.c.l.b16 %v3167
        %v3224 = vpack.c.b16 %v3209, %v3208
        %v3225 = vpack.c.b16 %v3211, %v3210
        %v3226 = vpack.c.b16 %v3213, %v3212
        %v3227 = vpack.c.b16 %v3215, %v3214
        %v3228 = vpack.c.b16 %v3217, %v3216
        %v3229 = vpack.c.b16 %v3219, %v3218
        %v3230 = vpack.c.b16 %v3221, %v3220
        %v3231 = vpack.c.b16 %v3223, %v3222
        %3240 = vmatprep.subr.bf16.mxu0 0
        %3241 = vmatpush1.bf16.msra.mxu0 %v3231
        %3242 = vmatprep.subr.bf16.mxu0 0
        %3243 = vmatpush1.bf16.msra.mxu0 %v3230
        %3244 = vmatprep.subr.bf16.mxu0 0
        %3245 = vmatpush1.bf16.msra.mxu0 %v3229
        %3246 = vmatprep.subr.bf16.mxu0 0
        %3247 = vmatpush1.bf16.msra.mxu0 %v3228
        %3248 = vmatprep.subr.bf16.mxu0 0
        %3249 = vmatpush1.bf16.msra.mxu0 %v3227
        %3250 = vmatprep.subr.bf16.mxu0 0
        %3251 = vmatpush1.bf16.msra.mxu0 %v3226
        %3252 = vmatprep.subr.bf16.mxu0 0
        %3253 = vmatpush1.bf16.msra.mxu0 %v3225
        %3254 = vmatprep.subr.bf16.mxu0 0
        %3255 = vmatpush1.bf16.msra.mxu0 %v3224
        %3256 = vmatprep.subr.bf16.mxu0 0
        %3257 = vmatpush2.bf16.msra.mxu0 0
        %3258 = vmatprep.subr.bf16.mxu0 0
        %3259 = vmatpush2.bf16.msra.mxu0 0
        %3260 = vmatprep.subr.bf16.mxu0 0
        %3261 = vmatpush2.bf16.msra.mxu0 0
        %3262 = vmatprep.subr.bf16.mxu0 0
        %3263 = vmatpush2.bf16.msra.mxu0 0
        %3264 = vmatprep.subr.bf16.mxu0 0
        %3265 = vmatpush2.bf16.msra.mxu0 0
        %3266 = vmatprep.subr.bf16.mxu0 0
        %3267 = vmatpush2.bf16.msra.mxu0 0
        %3268 = vmatprep.subr.bf16.mxu0 0
        %3269 = vmatpush2.bf16.msra.mxu0 0
        %3270 = vmatprep.subr.bf16.mxu0 0
        %3271 = vmatpush2.bf16.msra.mxu0 0
        %3272 = vmatprep.mubr.bf16.mxu0 0
        %3273 = vmatmul.mubr.bf16.gmra.mxu0 %v3184
        %v3274 = vpop.f32.mrf.mxu0
        %v3275 = vadd.f32 0.0, %v3274
        %v3276 = vpop.f32.mrf.mxu0
        %v3277 = vpop.f32.mrf.mxu0
        %v3278 = vadd.f32 0.0, %v3277
        %v3279 = vpop.f32.mrf.mxu0
        %3280 = vmatprep.mubr.bf16.mxu0 0
        %3281 = vmatmul.mubr.bf16.gmra.mxu0 %v3185
        %v3282 = vpop.f32.mrf.mxu0
        %v3283 = vadd.f32 0.0, %v3282
        %v3284 = vpop.f32.mrf.mxu0
        %v3285 = vpop.f32.mrf.mxu0
        %v3286 = vadd.f32 0.0, %v3285
        %v3287 = vpop.f32.mrf.mxu0
        %3288 = vmatprep.mubr.bf16.mxu0 0
        %3289 = vmatmul.mubr.bf16.gmra.mxu0 %v3186
        %v3290 = vpop.f32.mrf.mxu0
        %v3291 = vadd.f32 0.0, %v3290
        %v3292 = vpop.f32.mrf.mxu0
        %v3293 = vpop.f32.mrf.mxu0
        %v3294 = vadd.f32 0.0, %v3293
        %v3295 = vpop.f32.mrf.mxu0
        %3296 = vmatprep.mubr.bf16.mxu0 0
        %3297 = vmatmul.mubr.bf16.gmra.mxu0 %v3187
        %v3298 = vpop.f32.mrf.mxu0
        %v3299 = vadd.f32 0.0, %v3298
        %v3300 = vpop.f32.mrf.mxu0
        %v3301 = vpop.f32.mrf.mxu0
        %v3302 = vadd.f32 0.0, %v3301
        %v3303 = vpop.f32.mrf.mxu0
        %3304 = vdwg.mxu0
        %v3305 = vadd.f32 %v3143, %v3275
        %v3306 = vadd.f32 %v3144, %v3278
        %v3307 = vadd.f32 %v3145, %v3283
        %v3308 = vadd.f32 %v3146, %v3286
        %v3309 = vadd.f32 %v3147, %v3291
        %v3310 = vadd.f32 %v3148, %v3294
        %v3311 = vadd.f32 %v3149, %v3299
        %v3312 = vadd.f32 %v3150, %v3302
        %v3315 = vunpack.c.l.b16 %v2454
        %v3316 = vunpack.c.l.b16 %v2455
        %s3317 = scalar_lea.vmem %s3, 256
        %v3318 = vld [vmem:[%s3317] sm:$0xf]
        %v3319 = vld [vmem:[%s3317 + $0x4] sm:$0xf]
        %v3320 = vld [vmem:[%s3317 + $0x8] sm:$0xf]
        %v3321 = vld [vmem:[%s3317 + $0xc] sm:$0xf]
        %v3322 = vld [vmem:[%s3317 + $0x10] sm:$0xf]
        %v3323 = vld [vmem:[%s3317 + $0x14] sm:$0xf]
        %v3324 = vld [vmem:[%s3317 + $0x18] sm:$0xf]
        %v3325 = vld [vmem:[%s3317 + $0x1c] sm:$0xf]
        %v3326 = vld [vmem:[%s3317 + $0x20] sm:$0xf]
        %v3327 = vld [vmem:[%s3317 + $0x24] sm:$0xf]
        %v3328 = vld [vmem:[%s3317 + $0x28] sm:$0xf]
        %v3329 = vld [vmem:[%s3317 + $0x2c] sm:$0xf]
        %v3330 = vld [vmem:[%s3317 + $0x30] sm:$0xf]
        %v3331 = vld [vmem:[%s3317 + $0x34] sm:$0xf]
        %v3332 = vld [vmem:[%s3317 + $0x38] sm:$0xf]
        %v3333 = vld [vmem:[%s3317 + $0x3c] sm:$0xf]
        %v3334 = vld [vmem:[%s3317 + $0x40] sm:$0xf]
        %v3335 = vld [vmem:[%s3317 + $0x44] sm:$0xf]
        %v3336 = vld [vmem:[%s3317 + $0x48] sm:$0xf]
        %v3337 = vld [vmem:[%s3317 + $0x4c] sm:$0xf]
        %v3338 = vld [vmem:[%s3317 + $0x50] sm:$0xf]
        %v3339 = vld [vmem:[%s3317 + $0x54] sm:$0xf]
        %v3340 = vld [vmem:[%s3317 + $0x58] sm:$0xf]
        %v3341 = vld [vmem:[%s3317 + $0x5c] sm:$0xf]
        %v3342 = vld [vmem:[%s3317 + $0x60] sm:$0xf]
        %v3343 = vld [vmem:[%s3317 + $0x64] sm:$0xf]
        %v3344 = vld [vmem:[%s3317 + $0x68] sm:$0xf]
        %v3345 = vld [vmem:[%s3317 + $0x6c] sm:$0xf]
        %v3346 = vld [vmem:[%s3317 + $0x70] sm:$0xf]
        %v3347 = vld [vmem:[%s3317 + $0x74] sm:$0xf]
        %v3348 = vld [vmem:[%s3317 + $0x78] sm:$0xf]
        %v3349 = vld [vmem:[%s3317 + $0x7c] sm:$0xf]
        %v3350 = vpack.c.b16 %v2527, %v2525
        %v3351 = vpack.c.b16 %v2528, %v2526
        %v3352 = vpack.c.b16 %v2531, %v2529
        %v3353 = vpack.c.b16 %v2532, %v2530
        %v3354 = vpack.c.b16 %v2535, %v2533
        %v3355 = vpack.c.b16 %v2536, %v2534
        %v3356 = vpack.c.b16 %v3315, %v2537
        %v3357 = vpack.c.b16 %v3316, %v2538
        %v3398 = vunpack.c.l.b16 %v3318
        %v3399 = vunpack.c.l.b16 %v3319
        %v3400 = vunpack.c.l.b16 %v3320
        %v3401 = vunpack.c.l.b16 %v3321
        %v3402 = vunpack.c.l.b16 %v3322
        %v3403 = vunpack.c.l.b16 %v3323
        %v3404 = vunpack.c.l.b16 %v3324
        %v3405 = vunpack.c.l.b16 %v3325
        %v3406 = vunpack.c.l.b16 %v3326
        %v3407 = vunpack.c.l.b16 %v3327
        %v3408 = vunpack.c.l.b16 %v3328
        %v3409 = vunpack.c.l.b16 %v3329
        %v3410 = vunpack.c.l.b16 %v3330
        %v3411 = vunpack.c.l.b16 %v3331
        %v3412 = vunpack.c.l.b16 %v3332
        %v3413 = vunpack.c.l.b16 %v3333
        %v3414 = vunpack.c.l.b16 %v3334
        %v3415 = vunpack.c.l.b16 %v3335
        %v3416 = vunpack.c.l.b16 %v3336
        %v3417 = vunpack.c.l.b16 %v3337
        %v3418 = vunpack.c.l.b16 %v3338
        %v3419 = vunpack.c.l.b16 %v3339
        %v3420 = vunpack.c.l.b16 %v3340
        %v3421 = vunpack.c.l.b16 %v3341
        %v3422 = vunpack.c.l.b16 %v3342
        %v3423 = vunpack.c.l.b16 %v3343
        %v3424 = vunpack.c.l.b16 %v3344
        %v3425 = vunpack.c.l.b16 %v3345
        %v3426 = vunpack.c.l.b16 %v3346
        %v3427 = vunpack.c.l.b16 %v3347
        %v3428 = vunpack.c.l.b16 %v3348
        %v3429 = vunpack.c.l.b16 %v3349
        %v3430 = vpack.c.b16 %v3399, %v3398
        %v3431 = vpack.c.b16 %v3401, %v3400
        %v3432 = vpack.c.b16 %v3403, %v3402
        %v3433 = vpack.c.b16 %v3405, %v3404
        %v3434 = vpack.c.b16 %v3407, %v3406
        %v3435 = vpack.c.b16 %v3409, %v3408
        %v3436 = vpack.c.b16 %v3411, %v3410
        %v3437 = vpack.c.b16 %v3413, %v3412
        %v3438 = vpack.c.b16 %v3415, %v3414
        %v3439 = vpack.c.b16 %v3417, %v3416
        %v3440 = vpack.c.b16 %v3419, %v3418
        %v3441 = vpack.c.b16 %v3421, %v3420
        %v3442 = vpack.c.b16 %v3423, %v3422
        %v3443 = vpack.c.b16 %v3425, %v3424
        %v3444 = vpack.c.b16 %v3427, %v3426
        %v3445 = vpack.c.b16 %v3429, %v3428
        %3462 = vmatprep.subr.bf16.mxu0 0
        %3463 = vmatpush1.bf16.msra.mxu0 %v3437
        %3464 = vmatprep.subr.bf16.mxu0 0
        %3465 = vmatpush1.bf16.msra.mxu0 %v3436
        %3466 = vmatprep.subr.bf16.mxu0 0
        %3467 = vmatpush1.bf16.msra.mxu0 %v3435
        %3468 = vmatprep.subr.bf16.mxu0 0
        %3469 = vmatpush1.bf16.msra.mxu0 %v3434
        %3470 = vmatprep.subr.bf16.mxu0 0
        %3471 = vmatpush1.bf16.msra.mxu0 %v3433
        %3472 = vmatprep.subr.bf16.mxu0 0
        %3473 = vmatpush1.bf16.msra.mxu0 %v3432
        %3474 = vmatprep.subr.bf16.mxu0 0
        %3475 = vmatpush1.bf16.msra.mxu0 %v3431
        %3476 = vmatprep.subr.bf16.mxu0 0
        %3477 = vmatpush1.bf16.msra.mxu0 %v3430
        %3478 = vmatprep.subr.bf16.mxu0 0
        %3479 = vmatpush2.bf16.msra.mxu0 %v3445
        %3480 = vmatprep.subr.bf16.mxu0 0
        %3481 = vmatpush2.bf16.msra.mxu0 %v3444
        %3482 = vmatprep.subr.bf16.mxu0 0
        %3483 = vmatpush2.bf16.msra.mxu0 %v3443
        %3484 = vmatprep.subr.bf16.mxu0 0
        %3485 = vmatpush2.bf16.msra.mxu0 %v3442
        %3486 = vmatprep.subr.bf16.mxu0 0
        %3487 = vmatpush2.bf16.msra.mxu0 %v3441
        %3488 = vmatprep.subr.bf16.mxu0 0
        %3489 = vmatpush2.bf16.msra.mxu0 %v3440
        %3490 = vmatprep.subr.bf16.mxu0 0
        %3491 = vmatpush2.bf16.msra.mxu0 %v3439
        %3492 = vmatprep.subr.bf16.mxu0 0
        %3493 = vmatpush2.bf16.msra.mxu0 %v3438
        %3494 = vmatprep.mubr.bf16.mxu0 %v3351
        %3495 = vmatmul.mubr.bf16.gmra.mxu0 %v3350
        %v3496 = vpop.f32.mrf.mxu0
        %v3497 = vadd.f32 0.0, %v3496
        %v3498 = vpop.f32.mrf.mxu0
        %v3499 = vpop.f32.mrf.mxu0
        %v3500 = vadd.f32 0.0, %v3499
        %v3501 = vpop.f32.mrf.mxu0
        %3502 = vmatprep.mubr.bf16.mxu0 %v3353
        %3503 = vmatmul.mubr.bf16.gmra.mxu0 %v3352
        %v3504 = vpop.f32.mrf.mxu0
        %v3505 = vadd.f32 0.0, %v3504
        %v3506 = vpop.f32.mrf.mxu0
        %v3507 = vpop.f32.mrf.mxu0
        %v3508 = vadd.f32 0.0, %v3507
        %v3509 = vpop.f32.mrf.mxu0
        %3510 = vmatprep.mubr.bf16.mxu0 %v3355
        %3511 = vmatmul.mubr.bf16.gmra.mxu0 %v3354
        %v3512 = vpop.f32.mrf.mxu0
        %v3513 = vadd.f32 0.0, %v3512
        %v3514 = vpop.f32.mrf.mxu0
        %v3515 = vpop.f32.mrf.mxu0
        %v3516 = vadd.f32 0.0, %v3515
        %v3517 = vpop.f32.mrf.mxu0
        %3518 = vmatprep.mubr.bf16.mxu0 %v3357
        %3519 = vmatmul.mubr.bf16.gmra.mxu0 %v3356
        %v3520 = vpop.f32.mrf.mxu0
        %v3521 = vadd.f32 0.0, %v3520
        %v3522 = vpop.f32.mrf.mxu0
        %v3523 = vpop.f32.mrf.mxu0
        %v3524 = vadd.f32 0.0, %v3523
        %v3525 = vpop.f32.mrf.mxu0
        %3526 = vdwg.mxu0
        %v3527 = vadd.f32 %v3305, %v3497
        %v3528 = vadd.f32 %v3306, %v3500
        %v3529 = vadd.f32 %v3307, %v3505
        %v3530 = vadd.f32 %v3308, %v3508
        %v3531 = vadd.f32 %v3309, %v3513
        %v3532 = vadd.f32 %v3310, %v3516
        %v3533 = vadd.f32 %v3311, %v3521
        %v3534 = vadd.f32 %v3312, %v3524
        %s3535 = scalar_lea.vmem %s4, 128
        %v3536 = vld [vmem:[%s3535] sm:$0xf]
        %v3537 = vld [vmem:[%s3535 + $0x4] sm:$0xf]
        %v3538 = vld [vmem:[%s3535 + $0x8] sm:$0xf]
        %v3539 = vld [vmem:[%s3535 + $0xc] sm:$0xf]
        %v3540 = vld [vmem:[%s3535 + $0x10] sm:$0xf]
        %v3541 = vld [vmem:[%s3535 + $0x14] sm:$0xf]
        %v3542 = vld [vmem:[%s3535 + $0x18] sm:$0xf]
        %v3543 = vld [vmem:[%s3535 + $0x1c] sm:$0xf]
        %v3544 = vld [vmem:[%s3535 + $0x20] sm:$0xf]
        %v3545 = vld [vmem:[%s3535 + $0x24] sm:$0xf]
        %v3546 = vld [vmem:[%s3535 + $0x28] sm:$0xf]
        %v3547 = vld [vmem:[%s3535 + $0x2c] sm:$0xf]
        %v3548 = vld [vmem:[%s3535 + $0x30] sm:$0xf]
        %v3549 = vld [vmem:[%s3535 + $0x34] sm:$0xf]
        %v3550 = vld [vmem:[%s3535 + $0x38] sm:$0xf]
        %v3551 = vld [vmem:[%s3535 + $0x3c] sm:$0xf]
        %v3553 = vunpack.c.l.b16 %v2506
        %v3554 = vpack.c.b16 %v2597, %v2596
        %v3555 = vpack.c.b16 %v2599, %v2598
        %v3556 = vpack.c.b16 %v2601, %v2600
        %v3557 = vpack.c.b16 %v3553, %v2602
        %v3578 = vunpack.c.l.b16 %v3536
        %v3579 = vunpack.c.l.b16 %v3537
        %v3580 = vunpack.c.l.b16 %v3538
        %v3581 = vunpack.c.l.b16 %v3539
        %v3582 = vunpack.c.l.b16 %v3540
        %v3583 = vunpack.c.l.b16 %v3541
        %v3584 = vunpack.c.l.b16 %v3542
        %v3585 = vunpack.c.l.b16 %v3543
        %v3586 = vunpack.c.l.b16 %v3544
        %v3587 = vunpack.c.l.b16 %v3545
        %v3588 = vunpack.c.l.b16 %v3546
        %v3589 = vunpack.c.l.b16 %v3547
        %v3590 = vunpack.c.l.b16 %v3548
        %v3591 = vunpack.c.l.b16 %v3549
        %v3592 = vunpack.c.l.b16 %v3550
        %v3593 = vunpack.c.l.b16 %v3551
        %v3594 = vpack.c.b16 %v3579, %v3578
        %v3595 = vpack.c.b16 %v3581, %v3580
        %v3596 = vpack.c.b16 %v3583, %v3582
        %v3597 = vpack.c.b16 %v3585, %v3584
        %v3598 = vpack.c.b16 %v3587, %v3586
        %v3599 = vpack.c.b16 %v3589, %v3588
        %v3600 = vpack.c.b16 %v3591, %v3590
        %v3601 = vpack.c.b16 %v3593, %v3592
        %3610 = vmatprep.subr.bf16.mxu0 0
        %3611 = vmatpush1.bf16.msra.mxu0 %v3601
        %3612 = vmatprep.subr.bf16.mxu0 0
        %3613 = vmatpush1.bf16.msra.mxu0 %v3600
        %3614 = vmatprep.subr.bf16.mxu0 0
        %3615 = vmatpush1.bf16.msra.mxu0 %v3599
        %3616 = vmatprep.subr.bf16.mxu0 0
        %3617 = vmatpush1.bf16.msra.mxu0 %v3598
        %3618 = vmatprep.subr.bf16.mxu0 0
        %3619 = vmatpush1.bf16.msra.mxu0 %v3597
        %3620 = vmatprep.subr.bf16.mxu0 0
        %3621 = vmatpush1.bf16.msra.mxu0 %v3596
        %3622 = vmatprep.subr.bf16.mxu0 0
        %3623 = vmatpush1.bf16.msra.mxu0 %v3595
        %3624 = vmatprep.subr.bf16.mxu0 0
        %3625 = vmatpush1.bf16.msra.mxu0 %v3594
        %3626 = vmatprep.subr.bf16.mxu0 0
        %3627 = vmatpush2.bf16.msra.mxu0 0
        %3628 = vmatprep.subr.bf16.mxu0 0
        %3629 = vmatpush2.bf16.msra.mxu0 0
        %3630 = vmatprep.subr.bf16.mxu0 0
        %3631 = vmatpush2.bf16.msra.mxu0 0
        %3632 = vmatprep.subr.bf16.mxu0 0
        %3633 = vmatpush2.bf16.msra.mxu0 0
        %3634 = vmatprep.subr.bf16.mxu0 0
        %3635 = vmatpush2.bf16.msra.mxu0 0
        %3636 = vmatprep.subr.bf16.mxu0 0
        %3637 = vmatpush2.bf16.msra.mxu0 0
        %3638 = vmatprep.subr.bf16.mxu0 0
        %3639 = vmatpush2.bf16.msra.mxu0 0
        %3640 = vmatprep.subr.bf16.mxu0 0
        %3641 = vmatpush2.bf16.msra.mxu0 0
        %3642 = vmatprep.mubr.bf16.mxu0 0
        %3643 = vmatmul.mubr.bf16.gmra.mxu0 %v3554
        %v3644 = vpop.f32.mrf.mxu0
        %v3645 = vadd.f32 0.0, %v3644
        %v3646 = vpop.f32.mrf.mxu0
        %v3647 = vpop.f32.mrf.mxu0
        %v3648 = vadd.f32 0.0, %v3647
        %v3649 = vpop.f32.mrf.mxu0
        %3650 = vmatprep.mubr.bf16.mxu0 0
        %3651 = vmatmul.mubr.bf16.gmra.mxu0 %v3555
        %v3652 = vpop.f32.mrf.mxu0
        %v3653 = vadd.f32 0.0, %v3652
        %v3654 = vpop.f32.mrf.mxu0
        %v3655 = vpop.f32.mrf.mxu0
        %v3656 = vadd.f32 0.0, %v3655
        %v3657 = vpop.f32.mrf.mxu0
        %3658 = vmatprep.mubr.bf16.mxu0 0
        %3659 = vmatmul.mubr.bf16.gmra.mxu0 %v3556
        %v3660 = vpop.f32.mrf.mxu0
        %v3661 = vadd.f32 0.0, %v3660
        %v3662 = vpop.f32.mrf.mxu0
        %v3663 = vpop.f32.mrf.mxu0
        %v3664 = vadd.f32 0.0, %v3663
        %v3665 = vpop.f32.mrf.mxu0
        %3666 = vmatprep.mubr.bf16.mxu0 0
        %3667 = vmatmul.mubr.bf16.gmra.mxu0 %v3557
        %v3668 = vpop.f32.mrf.mxu0
        %v3669 = vadd.f32 0.0, %v3668
        %v3670 = vpop.f32.mrf.mxu0
        %v3671 = vpop.f32.mrf.mxu0
        %v3672 = vadd.f32 0.0, %v3671
        %v3673 = vpop.f32.mrf.mxu0
        %3674 = vdwg.mxu0
        %v3675 = vadd.f32 %v3527, %v3645
        %v3676 = vadd.f32 %v3528, %v3648
        %v3677 = vadd.f32 %v3529, %v3653
        %v3678 = vadd.f32 %v3530, %v3656
        %v3679 = vadd.f32 %v3531, %v3661
        %v3680 = vadd.f32 %v3532, %v3664
        %v3681 = vadd.f32 %v3533, %v3669
        %v3682 = vadd.f32 %v3534, %v3672
        %v3683 = vmax.f32 %v3675, 0.0
        %v3684 = vmax.f32 %v3676, 0.0
        %v3685 = vmax.f32 %v3677, 0.0
        %v3686 = vmax.f32 %v3678, 0.0
        %v3687 = vmax.f32 %v3679, 0.0
        %v3688 = vmax.f32 %v3680, 0.0
        %v3689 = vmax.f32 %v3681, 0.0
        %v3690 = vmax.f32 %v3682, 0.0
        %s3691 = scalar_lea.vmem [#allocation4], 16
        %3692 = vst [vmem:[%s3691 + $0x1] sm:$0xff] %v3683
        %3693 = vst [vmem:[%s3691 + $0x11] sm:$0xff] %v3684
        %3694 = vst [vmem:[%s3691 + $0x21] sm:$0xff] %v3685
        %3695 = vst [vmem:[%s3691 + $0x31] sm:$0xff] %v3686
        %3696 = vst [vmem:[%s3691 + $0x41] sm:$0xff] %v3687
        %3697 = vst [vmem:[%s3691 + $0x51] sm:$0xff] %v3688
        %3698 = vst [vmem:[%s3691 + $0x61] sm:$0xff] %v3689
        %3699 = vst [vmem:[%s3691 + $0x71] sm:$0xff] %v3690
        %v3700 = vld [vmem:[#allocation4] sm:$0xff]
        %v3701 = vld [vmem:[#allocation4 + $0x10] sm:$0xff]
        %v3702 = vld [vmem:[#allocation4 + $0x20] sm:$0xff]
        %v3703 = vld [vmem:[#allocation4 + $0x30] sm:$0xff]
        %v3704 = vld [vmem:[#allocation4 + $0x40] sm:$0xff]
        %v3705 = vld [vmem:[#allocation4 + $0x50] sm:$0xff]
        %v3706 = vld [vmem:[#allocation4 + $0x60] sm:$0xff]
        %v3707 = vld [vmem:[#allocation4 + $0x70] sm:$0xff]
        %v3708 = vld [vmem:[#allocation4 + $0x80] sm:$0xff]
        %v3709 = vld [vmem:[#allocation4 + $0x90] sm:$0xff]
        %v3710 = vld [vmem:[#allocation4 + $0x1] sm:$0xff]
        %v3711 = vld [vmem:[#allocation4 + $0x11] sm:$0xff]
        %v3712 = vld [vmem:[#allocation4 + $0x21] sm:$0xff]
        %v3713 = vld [vmem:[#allocation4 + $0x31] sm:$0xff]
        %v3714 = vld [vmem:[#allocation4 + $0x41] sm:$0xff]
        %v3715 = vld [vmem:[#allocation4 + $0x51] sm:$0xff]
        %v3716 = vld [vmem:[#allocation4 + $0x61] sm:$0xff]
        %v3717 = vld [vmem:[#allocation4 + $0x71] sm:$0xff]
        %v3718 = vld [vmem:[#allocation4 + $0x81] sm:$0xff]
        %v3719 = vld [vmem:[#allocation4 + $0x91] sm:$0xff]
        %v3720 = vpack.c.bf16 %v3700, %v3700
        %v3721 = vpack.c.bf16 %v3710, %v3710
        %v3722 = vpack.c.bf16 %v3701, %v3701
        %v3723 = vpack.c.bf16 %v3711, %v3711
        %v3724 = vpack.c.bf16 %v3702, %v3702
        %v3725 = vpack.c.bf16 %v3712, %v3712
        %v3726 = vpack.c.bf16 %v3703, %v3703
        %v3727 = vpack.c.bf16 %v3713, %v3713
        %v3728 = vpack.c.bf16 %v3704, %v3704
        %v3729 = vpack.c.bf16 %v3714, %v3714
        %v3730 = vpack.c.bf16 %v3705, %v3705
        %v3731 = vpack.c.bf16 %v3715, %v3715
        %v3732 = vpack.c.bf16 %v3706, %v3706
        %v3733 = vpack.c.bf16 %v3716, %v3716
        %v3734 = vpack.c.bf16 %v3707, %v3707
        %v3735 = vpack.c.bf16 %v3717, %v3717
        %v3736 = vpack.c.bf16 %v3708, %v3708
        %v3737 = vpack.c.bf16 %v3718, %v3718
        %v3738 = vpack.c.bf16 %v3709, %v3709
        %v3739 = vpack.c.bf16 %v3719, %v3719
        %v3740 = vld [vmem:[#allocation4 + $0x2] sm:$0xff]
        %v3741 = vld [vmem:[#allocation4 + $0x12] sm:$0xff]
        %v3742 = vld [vmem:[#allocation4 + $0x22] sm:$0xff]
        %v3743 = vld [vmem:[#allocation4 + $0x32] sm:$0xff]
        %v3744 = vld [vmem:[#allocation4 + $0x42] sm:$0xff]
        %v3745 = vld [vmem:[#allocation4 + $0x52] sm:$0xff]
        %v3746 = vld [vmem:[#allocation4 + $0x62] sm:$0xff]
        %v3747 = vld [vmem:[#allocation4 + $0x72] sm:$0xff]
        %v3748 = vld [vmem:[#allocation4 + $0x82] sm:$0xff]
        %v3749 = vld [vmem:[#allocation4 + $0x92] sm:$0xff]
        %v3750 = vpack.c.bf16 %v3740, %v3740
        %v3751 = vpack.c.bf16 %v3741, %v3741
        %v3752 = vpack.c.bf16 %v3742, %v3742
        %v3753 = vpack.c.bf16 %v3743, %v3743
        %v3754 = vpack.c.bf16 %v3744, %v3744
        %v3755 = vpack.c.bf16 %v3745, %v3745
        %v3756 = vpack.c.bf16 %v3746, %v3746
        %v3757 = vpack.c.bf16 %v3747, %v3747
        %v3758 = vpack.c.bf16 %v3748, %v3748
        %v3759 = vpack.c.bf16 %v3749, %v3749
        %v3776 = vunpack.c.l.b16 %v3720
        %v3777 = vunpack.c.l.b16 %v3721
        %v3778 = vunpack.c.l.b16 %v3722
        %v3779 = vunpack.c.l.b16 %v3723
        %v3780 = vunpack.c.l.b16 %v3724
        %v3781 = vunpack.c.l.b16 %v3725
        %v3782 = vunpack.c.l.b16 %v3726
        %v3783 = vunpack.c.l.b16 %v3727
        %v3784 = vunpack.c.l.b16 %v3728
        %v3785 = vunpack.c.l.b16 %v3729
        %v3786 = vunpack.c.l.b16 %v3730
        %v3787 = vunpack.c.l.b16 %v3731
        %v3788 = vunpack.c.l.b16 %v3732
        %v3789 = vunpack.c.l.b16 %v3733
        %v3790 = vunpack.c.l.b16 %v3734
        %v3791 = vunpack.c.l.b16 %v3735
        %v3792 = vld [vmem:[%s5] sm:$0xf]
        %v3793 = vld [vmem:[%s5 + $0x4] sm:$0xf]
        %v3794 = vld [vmem:[%s5 + $0x8] sm:$0xf]
        %v3795 = vld [vmem:[%s5 + $0xc] sm:$0xf]
        %v3796 = vld [vmem:[%s5 + $0x10] sm:$0xf]
        %v3797 = vld [vmem:[%s5 + $0x14] sm:$0xf]
        %v3798 = vld [vmem:[%s5 + $0x18] sm:$0xf]
        %v3799 = vld [vmem:[%s5 + $0x1c] sm:$0xf]
        %v3800 = vld [vmem:[%s5 + $0x20] sm:$0xf]
        %v3801 = vld [vmem:[%s5 + $0x24] sm:$0xf]
        %v3802 = vld [vmem:[%s5 + $0x28] sm:$0xf]
        %v3803 = vld [vmem:[%s5 + $0x2c] sm:$0xf]
        %v3804 = vld [vmem:[%s5 + $0x30] sm:$0xf]
        %v3805 = vld [vmem:[%s5 + $0x34] sm:$0xf]
        %v3806 = vld [vmem:[%s5 + $0x38] sm:$0xf]
        %v3807 = vld [vmem:[%s5 + $0x3c] sm:$0xf]
        %v3808 = vld [vmem:[%s5 + $0x40] sm:$0xf]
        %v3809 = vld [vmem:[%s5 + $0x44] sm:$0xf]
        %v3810 = vld [vmem:[%s5 + $0x48] sm:$0xf]
        %v3811 = vld [vmem:[%s5 + $0x4c] sm:$0xf]
        %v3812 = vld [vmem:[%s5 + $0x50] sm:$0xf]
        %v3813 = vld [vmem:[%s5 + $0x54] sm:$0xf]
        %v3814 = vld [vmem:[%s5 + $0x58] sm:$0xf]
        %v3815 = vld [vmem:[%s5 + $0x5c] sm:$0xf]
        %v3816 = vld [vmem:[%s5 + $0x60] sm:$0xf]
        %v3817 = vld [vmem:[%s5 + $0x64] sm:$0xf]
        %v3818 = vld [vmem:[%s5 + $0x68] sm:$0xf]
        %v3819 = vld [vmem:[%s5 + $0x6c] sm:$0xf]
        %v3820 = vld [vmem:[%s5 + $0x70] sm:$0xf]
        %v3821 = vld [vmem:[%s5 + $0x74] sm:$0xf]
        %v3822 = vld [vmem:[%s5 + $0x78] sm:$0xf]
        %v3823 = vld [vmem:[%s5 + $0x7c] sm:$0xf]
        %v3824 = vld [vmem:[%s6] sm:$0xf]
        %v3825 = vld [vmem:[%s6 + $0x4] sm:$0xf]
        %v3826 = vld [vmem:[%s6 + $0x8] sm:$0xf]
        %v3827 = vld [vmem:[%s6 + $0xc] sm:$0xf]
        %v3828 = vld [vmem:[%s6 + $0x10] sm:$0xf]
        %v3829 = vld [vmem:[%s6 + $0x14] sm:$0xf]
        %v3830 = vld [vmem:[%s6 + $0x18] sm:$0xf]
        %v3831 = vld [vmem:[%s6 + $0x1c] sm:$0xf]
        %v3832 = vld [vmem:[%s6 + $0x20] sm:$0xf]
        %v3833 = vld [vmem:[%s6 + $0x24] sm:$0xf]
        %v3834 = vld [vmem:[%s6 + $0x28] sm:$0xf]
        %v3835 = vld [vmem:[%s6 + $0x2c] sm:$0xf]
        %v3836 = vld [vmem:[%s6 + $0x30] sm:$0xf]
        %v3837 = vld [vmem:[%s6 + $0x34] sm:$0xf]
        %v3838 = vld [vmem:[%s6 + $0x38] sm:$0xf]
        %v3839 = vld [vmem:[%s6 + $0x3c] sm:$0xf]
        %v3848 = vunpack.c.l.b16 %v3750
        %v3849 = vunpack.c.l.b16 %v3751
        %v3850 = vunpack.c.l.b16 %v3752
        %v3851 = vunpack.c.l.b16 %v3753
        %v3852 = vunpack.c.l.b16 %v3754
        %v3853 = vunpack.c.l.b16 %v3755
        %v3854 = vunpack.c.l.b16 %v3756
        %v3855 = vunpack.c.l.b16 %v3757
        %v3856 = vpack.c.b16 %v3849, %v3848
        %v3857 = vpack.c.b16 %v3851, %v3850
        %v3858 = vpack.c.b16 %v3853, %v3852
        %v3859 = vpack.c.b16 %v3855, %v3854
        %v3880 = vunpack.c.l.b16 %v3824
        %v3881 = vunpack.c.l.b16 %v3825
        %v3882 = vunpack.c.l.b16 %v3826
        %v3883 = vunpack.c.l.b16 %v3827
        %v3884 = vunpack.c.l.b16 %v3828
        %v3885 = vunpack.c.l.b16 %v3829
        %v3886 = vunpack.c.l.b16 %v3830
        %v3887 = vunpack.c.l.b16 %v3831
        %v3888 = vunpack.c.l.b16 %v3832
        %v3889 = vunpack.c.l.b16 %v3833
        %v3890 = vunpack.c.l.b16 %v3834
        %v3891 = vunpack.c.l.b16 %v3835
        %v3892 = vunpack.c.l.b16 %v3836
        %v3893 = vunpack.c.l.b16 %v3837
        %v3894 = vunpack.c.l.b16 %v3838
        %v3895 = vunpack.c.l.b16 %v3839
        %v3896 = vpack.c.b16 %v3881, %v3880
        %v3897 = vpack.c.b16 %v3883, %v3882
        %v3898 = vpack.c.b16 %v3885, %v3884
        %v3899 = vpack.c.b16 %v3887, %v3886
        %v3900 = vpack.c.b16 %v3889, %v3888
        %v3901 = vpack.c.b16 %v3891, %v3890
        %v3902 = vpack.c.b16 %v3893, %v3892
        %v3903 = vpack.c.b16 %v3895, %v3894
        %3912 = vmatprep.subr.bf16.mxu0 0
        %3913 = vmatpush1.bf16.msra.mxu0 %v3903
        %3914 = vmatprep.subr.bf16.mxu0 0
        %3915 = vmatpush1.bf16.msra.mxu0 %v3902
        %3916 = vmatprep.subr.bf16.mxu0 0
        %3917 = vmatpush1.bf16.msra.mxu0 %v3901
        %3918 = vmatprep.subr.bf16.mxu0 0
        %3919 = vmatpush1.bf16.msra.mxu0 %v3900
        %3920 = vmatprep.subr.bf16.mxu0 0
        %3921 = vmatpush1.bf16.msra.mxu0 %v3899
        %3922 = vmatprep.subr.bf16.mxu0 0
        %3923 = vmatpush1.bf16.msra.mxu0 %v3898
        %3924 = vmatprep.subr.bf16.mxu0 0
        %3925 = vmatpush1.bf16.msra.mxu0 %v3897
        %3926 = vmatprep.subr.bf16.mxu0 0
        %3927 = vmatpush1.bf16.msra.mxu0 %v3896
        %3928 = vmatprep.subr.bf16.mxu0 0
        %3929 = vmatpush2.bf16.msra.mxu0 0
        %3930 = vmatprep.subr.bf16.mxu0 0
        %3931 = vmatpush2.bf16.msra.mxu0 0
        %3932 = vmatprep.subr.bf16.mxu0 0
        %3933 = vmatpush2.bf16.msra.mxu0 0
        %3934 = vmatprep.subr.bf16.mxu0 0
        %3935 = vmatpush2.bf16.msra.mxu0 0
        %3936 = vmatprep.subr.bf16.mxu0 0
        %3937 = vmatpush2.bf16.msra.mxu0 0
        %3938 = vmatprep.subr.bf16.mxu0 0
        %3939 = vmatpush2.bf16.msra.mxu0 0
        %3940 = vmatprep.subr.bf16.mxu0 0
        %3941 = vmatpush2.bf16.msra.mxu0 0
        %3942 = vmatprep.subr.bf16.mxu0 0
        %3943 = vmatpush2.bf16.msra.mxu0 0
        %3944 = vmatprep.mubr.bf16.mxu0 0
        %3945 = vmatmul.mubr.bf16.gmra.mxu0 %v3856
        %v3946 = vpop.f32.mrf.mxu0
        %v3947 = vadd.f32 0.0, %v3946
        %v3948 = vpop.f32.mrf.mxu0
        %v3949 = vpop.f32.mrf.mxu0
        %v3950 = vadd.f32 0.0, %v3949
        %v3951 = vpop.f32.mrf.mxu0
        %3952 = vmatprep.mubr.bf16.mxu0 0
        %3953 = vmatmul.mubr.bf16.gmra.mxu0 %v3857
        %v3954 = vpop.f32.mrf.mxu0
        %v3955 = vadd.f32 0.0, %v3954
        %v3956 = vpop.f32.mrf.mxu0
        %v3957 = vpop.f32.mrf.mxu0
        %v3958 = vadd.f32 0.0, %v3957
        %v3959 = vpop.f32.mrf.mxu0
        %3960 = vmatprep.mubr.bf16.mxu0 0
        %3961 = vmatmul.mubr.bf16.gmra.mxu0 %v3858
        %v3962 = vpop.f32.mrf.mxu0
        %v3963 = vadd.f32 0.0, %v3962
        %v3964 = vpop.f32.mrf.mxu0
        %v3965 = vpop.f32.mrf.mxu0
        %v3966 = vadd.f32 0.0, %v3965
        %v3967 = vpop.f32.mrf.mxu0
        %3968 = vmatprep.mubr.bf16.mxu0 0
        %3969 = vmatmul.mubr.bf16.gmra.mxu0 %v3859
        %v3970 = vpop.f32.mrf.mxu0
        %v3971 = vadd.f32 0.0, %v3970
        %v3972 = vpop.f32.mrf.mxu0
        %v3973 = vpop.f32.mrf.mxu0
        %v3974 = vadd.f32 0.0, %v3973
        %v3975 = vpop.f32.mrf.mxu0
        %3976 = vdwg.mxu0
        %v3977 = vpack.c.b16 %v3778, %v3776
        %v3978 = vpack.c.b16 %v3779, %v3777
        %v3979 = vpack.c.b16 %v3782, %v3780
        %v3980 = vpack.c.b16 %v3783, %v3781
        %v3981 = vpack.c.b16 %v3786, %v3784
        %v3982 = vpack.c.b16 %v3787, %v3785
        %v3983 = vpack.c.b16 %v3790, %v3788
        %v3984 = vpack.c.b16 %v3791, %v3789
        %v4025 = vunpack.c.l.b16 %v3792
        %v4026 = vunpack.c.l.b16 %v3793
        %v4027 = vunpack.c.l.b16 %v3794
        %v4028 = vunpack.c.l.b16 %v3795
        %v4029 = vunpack.c.l.b16 %v3796
        %v4030 = vunpack.c.l.b16 %v3797
        %v4031 = vunpack.c.l.b16 %v3798
        %v4032 = vunpack.c.l.b16 %v3799
        %v4033 = vunpack.c.l.b16 %v3800
        %v4034 = vunpack.c.l.b16 %v3801
        %v4035 = vunpack.c.l.b16 %v3802
        %v4036 = vunpack.c.l.b16 %v3803
        %v4037 = vunpack.c.l.b16 %v3804
        %v4038 = vunpack.c.l.b16 %v3805
        %v4039 = vunpack.c.l.b16 %v3806
        %v4040 = vunpack.c.l.b16 %v3807
        %v4041 = vunpack.c.l.b16 %v3808
        %v4042 = vunpack.c.l.b16 %v3809
        %v4043 = vunpack.c.l.b16 %v3810
        %v4044 = vunpack.c.l.b16 %v3811
        %v4045 = vunpack.c.l.b16 %v3812
        %v4046 = vunpack.c.l.b16 %v3813
        %v4047 = vunpack.c.l.b16 %v3814
        %v4048 = vunpack.c.l.b16 %v3815
        %v4049 = vunpack.c.l.b16 %v3816
        %v4050 = vunpack.c.l.b16 %v3817
        %v4051 = vunpack.c.l.b16 %v3818
        %v4052 = vunpack.c.l.b16 %v3819
        %v4053 = vunpack.c.l.b16 %v3820
        %v4054 = vunpack.c.l.b16 %v3821
        %v4055 = vunpack.c.l.b16 %v3822
        %v4056 = vunpack.c.l.b16 %v3823
        %v4057 = vpack.c.b16 %v4026, %v4025
        %v4058 = vpack.c.b16 %v4028, %v4027
        %v4059 = vpack.c.b16 %v4030, %v4029
        %v4060 = vpack.c.b16 %v4032, %v4031
        %v4061 = vpack.c.b16 %v4034, %v4033
        %v4062 = vpack.c.b16 %v4036, %v4035
        %v4063 = vpack.c.b16 %v4038, %v4037
        %v4064 = vpack.c.b16 %v4040, %v4039
        %v4065 = vpack.c.b16 %v4042, %v4041
        %v4066 = vpack.c.b16 %v4044, %v4043
        %v4067 = vpack.c.b16 %v4046, %v4045
        %v4068 = vpack.c.b16 %v4048, %v4047
        %v4069 = vpack.c.b16 %v4050, %v4049
        %v4070 = vpack.c.b16 %v4052, %v4051
        %v4071 = vpack.c.b16 %v4054, %v4053
        %v4072 = vpack.c.b16 %v4056, %v4055
        %4089 = vmatprep.subr.bf16.mxu0 0
        %4090 = vmatpush1.bf16.msra.mxu0 %v4064
        %4091 = vmatprep.subr.bf16.mxu0 0
        %4092 = vmatpush1.bf16.msra.mxu0 %v4063
        %4093 = vmatprep.subr.bf16.mxu0 0
        %4094 = vmatpush1.bf16.msra.mxu0 %v4062
        %4095 = vmatprep.subr.bf16.mxu0 0
        %4096 = vmatpush1.bf16.msra.mxu0 %v4061
        %4097 = vmatprep.subr.bf16.mxu0 0
        %4098 = vmatpush1.bf16.msra.mxu0 %v4060
        %4099 = vmatprep.subr.bf16.mxu0 0
        %4100 = vmatpush1.bf16.msra.mxu0 %v4059
        %4101 = vmatprep.subr.bf16.mxu0 0
        %4102 = vmatpush1.bf16.msra.mxu0 %v4058
        %4103 = vmatprep.subr.bf16.mxu0 0
        %4104 = vmatpush1.bf16.msra.mxu0 %v4057
        %4105 = vmatprep.subr.bf16.mxu0 0
        %4106 = vmatpush2.bf16.msra.mxu0 %v4072
        %4107 = vmatprep.subr.bf16.mxu0 0
        %4108 = vmatpush2.bf16.msra.mxu0 %v4071
        %4109 = vmatprep.subr.bf16.mxu0 0
        %4110 = vmatpush2.bf16.msra.mxu0 %v4070
        %4111 = vmatprep.subr.bf16.mxu0 0
        %4112 = vmatpush2.bf16.msra.mxu0 %v4069
        %4113 = vmatprep.subr.bf16.mxu0 0
        %4114 = vmatpush2.bf16.msra.mxu0 %v4068
        %4115 = vmatprep.subr.bf16.mxu0 0
        %4116 = vmatpush2.bf16.msra.mxu0 %v4067
        %4117 = vmatprep.subr.bf16.mxu0 0
        %4118 = vmatpush2.bf16.msra.mxu0 %v4066
        %4119 = vmatprep.subr.bf16.mxu0 0
        %4120 = vmatpush2.bf16.msra.mxu0 %v4065
        %4121 = vmatprep.mubr.bf16.mxu0 %v3978
        %4122 = vmatmul.mubr.bf16.gmra.mxu0 %v3977
        %v4123 = vpop.f32.mrf.mxu0
        %v4124 = vadd.f32 %v3947, %v4123
        %v4125 = vpop.f32.mrf.mxu0
        %v4126 = vpop.f32.mrf.mxu0
        %v4127 = vadd.f32 %v3950, %v4126
        %v4128 = vpop.f32.mrf.mxu0
        %4129 = vmatprep.mubr.bf16.mxu0 %v3980
        %4130 = vmatmul.mubr.bf16.gmra.mxu0 %v3979
        %v4131 = vpop.f32.mrf.mxu0
        %v4132 = vadd.f32 %v3955, %v4131
        %v4133 = vpop.f32.mrf.mxu0
        %v4134 = vpop.f32.mrf.mxu0
        %v4135 = vadd.f32 %v3958, %v4134
        %v4136 = vpop.f32.mrf.mxu0
        %4137 = vmatprep.mubr.bf16.mxu0 %v3982
        %4138 = vmatmul.mubr.bf16.gmra.mxu0 %v3981
        %v4139 = vpop.f32.mrf.mxu0
        %v4140 = vadd.f32 %v3963, %v4139
        %v4141 = vpop.f32.mrf.mxu0
        %v4142 = vpop.f32.mrf.mxu0
        %v4143 = vadd.f32 %v3966, %v4142
        %v4144 = vpop.f32.mrf.mxu0
        %4145 = vmatprep.mubr.bf16.mxu0 %v3984
        %4146 = vmatmul.mubr.bf16.gmra.mxu0 %v3983
        %v4147 = vpop.f32.mrf.mxu0
        %v4148 = vadd.f32 %v3971, %v4147
        %v4149 = vpop.f32.mrf.mxu0
        %v4150 = vpop.f32.mrf.mxu0
        %v4151 = vadd.f32 %v3974, %v4150
        %v4152 = vpop.f32.mrf.mxu0
        %4153 = vdwg.mxu0
        %v4156 = vunpack.c.l.b16 %v3736
        %v4157 = vunpack.c.l.b16 %v3737
        %s4158 = scalar_lea.vmem %s5, 128
        %v4159 = vld [vmem:[%s4158] sm:$0xf]
        %v4160 = vld [vmem:[%s4158 + $0x4] sm:$0xf]
        %v4161 = vld [vmem:[%s4158 + $0x8] sm:$0xf]
        %v4162 = vld [vmem:[%s4158 + $0xc] sm:$0xf]
        %v4163 = vld [vmem:[%s4158 + $0x10] sm:$0xf]
        %v4164 = vld [vmem:[%s4158 + $0x14] sm:$0xf]
        %v4165 = vld [vmem:[%s4158 + $0x18] sm:$0xf]
        %v4166 = vld [vmem:[%s4158 + $0x1c] sm:$0xf]
        %v4167 = vld [vmem:[%s4158 + $0x20] sm:$0xf]
        %v4168 = vld [vmem:[%s4158 + $0x24] sm:$0xf]
        %v4169 = vld [vmem:[%s4158 + $0x28] sm:$0xf]
        %v4170 = vld [vmem:[%s4158 + $0x2c] sm:$0xf]
        %v4171 = vld [vmem:[%s4158 + $0x30] sm:$0xf]
        %v4172 = vld [vmem:[%s4158 + $0x34] sm:$0xf]
        %v4173 = vld [vmem:[%s4158 + $0x38] sm:$0xf]
        %v4174 = vld [vmem:[%s4158 + $0x3c] sm:$0xf]
        %v4175 = vld [vmem:[%s4158 + $0x40] sm:$0xf]
        %v4176 = vld [vmem:[%s4158 + $0x44] sm:$0xf]
        %v4177 = vld [vmem:[%s4158 + $0x48] sm:$0xf]
        %v4178 = vld [vmem:[%s4158 + $0x4c] sm:$0xf]
        %v4179 = vld [vmem:[%s4158 + $0x50] sm:$0xf]
        %v4180 = vld [vmem:[%s4158 + $0x54] sm:$0xf]
        %v4181 = vld [vmem:[%s4158 + $0x58] sm:$0xf]
        %v4182 = vld [vmem:[%s4158 + $0x5c] sm:$0xf]
        %v4183 = vld [vmem:[%s4158 + $0x60] sm:$0xf]
        %v4184 = vld [vmem:[%s4158 + $0x64] sm:$0xf]
        %v4185 = vld [vmem:[%s4158 + $0x68] sm:$0xf]
        %v4186 = vld [vmem:[%s4158 + $0x6c] sm:$0xf]
        %v4187 = vld [vmem:[%s4158 + $0x70] sm:$0xf]
        %v4188 = vld [vmem:[%s4158 + $0x74] sm:$0xf]
        %v4189 = vld [vmem:[%s4158 + $0x78] sm:$0xf]
        %v4190 = vld [vmem:[%s4158 + $0x7c] sm:$0xf]
        %v4191 = vpack.c.b16 %v3780, %v3778
        %v4192 = vpack.c.b16 %v3781, %v3779
        %v4193 = vpack.c.b16 %v3784, %v3782
        %v4194 = vpack.c.b16 %v3785, %v3783
        %v4195 = vpack.c.b16 %v3788, %v3786
        %v4196 = vpack.c.b16 %v3789, %v3787
        %v4197 = vpack.c.b16 %v4156, %v3790
        %v4198 = vpack.c.b16 %v4157, %v3791
        %v4239 = vunpack.c.l.b16 %v4159
        %v4240 = vunpack.c.l.b16 %v4160
        %v4241 = vunpack.c.l.b16 %v4161
        %v4242 = vunpack.c.l.b16 %v4162
        %v4243 = vunpack.c.l.b16 %v4163
        %v4244 = vunpack.c.l.b16 %v4164
        %v4245 = vunpack.c.l.b16 %v4165
        %v4246 = vunpack.c.l.b16 %v4166
        %v4247 = vunpack.c.l.b16 %v4167
        %v4248 = vunpack.c.l.b16 %v4168
        %v4249 = vunpack.c.l.b16 %v4169
        %v4250 = vunpack.c.l.b16 %v4170
        %v4251 = vunpack.c.l.b16 %v4171
        %v4252 = vunpack.c.l.b16 %v4172
        %v4253 = vunpack.c.l.b16 %v4173
        %v4254 = vunpack.c.l.b16 %v4174
        %v4255 = vunpack.c.l.b16 %v4175
        %v4256 = vunpack.c.l.b16 %v4176
        %v4257 = vunpack.c.l.b16 %v4177
        %v4258 = vunpack.c.l.b16 %v4178
        %v4259 = vunpack.c.l.b16 %v4179
        %v4260 = vunpack.c.l.b16 %v4180
        %v4261 = vunpack.c.l.b16 %v4181
        %v4262 = vunpack.c.l.b16 %v4182
        %v4263 = vunpack.c.l.b16 %v4183
        %v4264 = vunpack.c.l.b16 %v4184
        %v4265 = vunpack.c.l.b16 %v4185
        %v4266 = vunpack.c.l.b16 %v4186
        %v4267 = vunpack.c.l.b16 %v4187
        %v4268 = vunpack.c.l.b16 %v4188
        %v4269 = vunpack.c.l.b16 %v4189
        %v4270 = vunpack.c.l.b16 %v4190
        %v4271 = vpack.c.b16 %v4240, %v4239
        %v4272 = vpack.c.b16 %v4242, %v4241
        %v4273 = vpack.c.b16 %v4244, %v4243
        %v4274 = vpack.c.b16 %v4246, %v4245
        %v4275 = vpack.c.b16 %v4248, %v4247
        %v4276 = vpack.c.b16 %v4250, %v4249
        %v4277 = vpack.c.b16 %v4252, %v4251
        %v4278 = vpack.c.b16 %v4254, %v4253
        %v4279 = vpack.c.b16 %v4256, %v4255
        %v4280 = vpack.c.b16 %v4258, %v4257
        %v4281 = vpack.c.b16 %v4260, %v4259
        %v4282 = vpack.c.b16 %v4262, %v4261
        %v4283 = vpack.c.b16 %v4264, %v4263
        %v4284 = vpack.c.b16 %v4266, %v4265
        %v4285 = vpack.c.b16 %v4268, %v4267
        %v4286 = vpack.c.b16 %v4270, %v4269
        %4303 = vmatprep.subr.bf16.mxu0 0
        %4304 = vmatpush1.bf16.msra.mxu0 %v4278
        %4305 = vmatprep.subr.bf16.mxu0 0
        %4306 = vmatpush1.bf16.msra.mxu0 %v4277
        %4307 = vmatprep.subr.bf16.mxu0 0
        %4308 = vmatpush1.bf16.msra.mxu0 %v4276
        %4309 = vmatprep.subr.bf16.mxu0 0
        %4310 = vmatpush1.bf16.msra.mxu0 %v4275
        %4311 = vmatprep.subr.bf16.mxu0 0
        %4312 = vmatpush1.bf16.msra.mxu0 %v4274
        %4313 = vmatprep.subr.bf16.mxu0 0
        %4314 = vmatpush1.bf16.msra.mxu0 %v4273
        %4315 = vmatprep.subr.bf16.mxu0 0
        %4316 = vmatpush1.bf16.msra.mxu0 %v4272
        %4317 = vmatprep.subr.bf16.mxu0 0
        %4318 = vmatpush1.bf16.msra.mxu0 %v4271
        %4319 = vmatprep.subr.bf16.mxu0 0
        %4320 = vmatpush2.bf16.msra.mxu0 %v4286
        %4321 = vmatprep.subr.bf16.mxu0 0
        %4322 = vmatpush2.bf16.msra.mxu0 %v4285
        %4323 = vmatprep.subr.bf16.mxu0 0
        %4324 = vmatpush2.bf16.msra.mxu0 %v4284
        %4325 = vmatprep.subr.bf16.mxu0 0
        %4326 = vmatpush2.bf16.msra.mxu0 %v4283
        %4327 = vmatprep.subr.bf16.mxu0 0
        %4328 = vmatpush2.bf16.msra.mxu0 %v4282
        %4329 = vmatprep.subr.bf16.mxu0 0
        %4330 = vmatpush2.bf16.msra.mxu0 %v4281
        %4331 = vmatprep.subr.bf16.mxu0 0
        %4332 = vmatpush2.bf16.msra.mxu0 %v4280
        %4333 = vmatprep.subr.bf16.mxu0 0
        %4334 = vmatpush2.bf16.msra.mxu0 %v4279
        %4335 = vmatprep.mubr.bf16.mxu0 %v4192
        %4336 = vmatmul.mubr.bf16.gmra.mxu0 %v4191
        %v4337 = vpop.f32.mrf.mxu0
        %v4338 = vadd.f32 0.0, %v4337
        %v4339 = vpop.f32.mrf.mxu0
        %v4340 = vpop.f32.mrf.mxu0
        %v4341 = vadd.f32 0.0, %v4340
        %v4342 = vpop.f32.mrf.mxu0
        %4343 = vmatprep.mubr.bf16.mxu0 %v4194
        %4344 = vmatmul.mubr.bf16.gmra.mxu0 %v4193
        %v4345 = vpop.f32.mrf.mxu0
        %v4346 = vadd.f32 0.0, %v4345
        %v4347 = vpop.f32.mrf.mxu0
        %v4348 = vpop.f32.mrf.mxu0
        %v4349 = vadd.f32 0.0, %v4348
        %v4350 = vpop.f32.mrf.mxu0
        %4351 = vmatprep.mubr.bf16.mxu0 %v4196
        %4352 = vmatmul.mubr.bf16.gmra.mxu0 %v4195
        %v4353 = vpop.f32.mrf.mxu0
        %v4354 = vadd.f32 0.0, %v4353
        %v4355 = vpop.f32.mrf.mxu0
        %v4356 = vpop.f32.mrf.mxu0
        %v4357 = vadd.f32 0.0, %v4356
        %v4358 = vpop.f32.mrf.mxu0
        %4359 = vmatprep.mubr.bf16.mxu0 %v4198
        %4360 = vmatmul.mubr.bf16.gmra.mxu0 %v4197
        %v4361 = vpop.f32.mrf.mxu0
        %v4362 = vadd.f32 0.0, %v4361
        %v4363 = vpop.f32.mrf.mxu0
        %v4364 = vpop.f32.mrf.mxu0
        %v4365 = vadd.f32 0.0, %v4364
        %v4366 = vpop.f32.mrf.mxu0
        %4367 = vdwg.mxu0
        %v4368 = vadd.f32 %v4124, %v4338
        %v4369 = vadd.f32 %v4127, %v4341
        %v4370 = vadd.f32 %v4132, %v4346
        %v4371 = vadd.f32 %v4135, %v4349
        %v4372 = vadd.f32 %v4140, %v4354
        %v4373 = vadd.f32 %v4143, %v4357
        %v4374 = vadd.f32 %v4148, %v4362
        %v4375 = vadd.f32 %v4151, %v4365
        %s4376 = scalar_lea.vmem %s6, 64
        %v4377 = vld [vmem:[%s4376] sm:$0xf]
        %v4378 = vld [vmem:[%s4376 + $0x4] sm:$0xf]
        %v4379 = vld [vmem:[%s4376 + $0x8] sm:$0xf]
        %v4380 = vld [vmem:[%s4376 + $0xc] sm:$0xf]
        %v4381 = vld [vmem:[%s4376 + $0x10] sm:$0xf]
        %v4382 = vld [vmem:[%s4376 + $0x14] sm:$0xf]
        %v4383 = vld [vmem:[%s4376 + $0x18] sm:$0xf]
        %v4384 = vld [vmem:[%s4376 + $0x1c] sm:$0xf]
        %v4385 = vld [vmem:[%s4376 + $0x20] sm:$0xf]
        %v4386 = vld [vmem:[%s4376 + $0x24] sm:$0xf]
        %v4387 = vld [vmem:[%s4376 + $0x28] sm:$0xf]
        %v4388 = vld [vmem:[%s4376 + $0x2c] sm:$0xf]
        %v4389 = vld [vmem:[%s4376 + $0x30] sm:$0xf]
        %v4390 = vld [vmem:[%s4376 + $0x34] sm:$0xf]
        %v4391 = vld [vmem:[%s4376 + $0x38] sm:$0xf]
        %v4392 = vld [vmem:[%s4376 + $0x3c] sm:$0xf]
        %v4394 = vunpack.c.l.b16 %v3758
        %v4395 = vpack.c.b16 %v3850, %v3849
        %v4396 = vpack.c.b16 %v3852, %v3851
        %v4397 = vpack.c.b16 %v3854, %v3853
        %v4398 = vpack.c.b16 %v4394, %v3855
        %v4419 = vunpack.c.l.b16 %v4377
        %v4420 = vunpack.c.l.b16 %v4378
        %v4421 = vunpack.c.l.b16 %v4379
        %v4422 = vunpack.c.l.b16 %v4380
        %v4423 = vunpack.c.l.b16 %v4381
        %v4424 = vunpack.c.l.b16 %v4382
        %v4425 = vunpack.c.l.b16 %v4383
        %v4426 = vunpack.c.l.b16 %v4384
        %v4427 = vunpack.c.l.b16 %v4385
        %v4428 = vunpack.c.l.b16 %v4386
        %v4429 = vunpack.c.l.b16 %v4387
        %v4430 = vunpack.c.l.b16 %v4388
        %v4431 = vunpack.c.l.b16 %v4389
        %v4432 = vunpack.c.l.b16 %v4390
        %v4433 = vunpack.c.l.b16 %v4391
        %v4434 = vunpack.c.l.b16 %v4392
        %v4435 = vpack.c.b16 %v4420, %v4419
        %v4436 = vpack.c.b16 %v4422, %v4421
        %v4437 = vpack.c.b16 %v4424, %v4423
        %v4438 = vpack.c.b16 %v4426, %v4425
        %v4439 = vpack.c.b16 %v4428, %v4427
        %v4440 = vpack.c.b16 %v4430, %v4429
        %v4441 = vpack.c.b16 %v4432, %v4431
        %v4442 = vpack.c.b16 %v4434, %v4433
        %4451 = vmatprep.subr.bf16.mxu0 0
        %4452 = vmatpush1.bf16.msra.mxu0 %v4442
        %4453 = vmatprep.subr.bf16.mxu0 0
        %4454 = vmatpush1.bf16.msra.mxu0 %v4441
        %4455 = vmatprep.subr.bf16.mxu0 0
        %4456 = vmatpush1.bf16.msra.mxu0 %v4440
        %4457 = vmatprep.subr.bf16.mxu0 0
        %4458 = vmatpush1.bf16.msra.mxu0 %v4439
        %4459 = vmatprep.subr.bf16.mxu0 0
        %4460 = vmatpush1.bf16.msra.mxu0 %v4438
        %4461 = vmatprep.subr.bf16.mxu0 0
        %4462 = vmatpush1.bf16.msra.mxu0 %v4437
        %4463 = vmatprep.subr.bf16.mxu0 0
        %4464 = vmatpush1.bf16.msra.mxu0 %v4436
        %4465 = vmatprep.subr.bf16.mxu0 0
        %4466 = vmatpush1.bf16.msra.mxu0 %v4435
        %4467 = vmatprep.subr.bf16.mxu0 0
        %4468 = vmatpush2.bf16.msra.mxu0 0
        %4469 = vmatprep.subr.bf16.mxu0 0
        %4470 = vmatpush2.bf16.msra.mxu0 0
        %4471 = vmatprep.subr.bf16.mxu0 0
        %4472 = vmatpush2.bf16.msra.mxu0 0
        %4473 = vmatprep.subr.bf16.mxu0 0
        %4474 = vmatpush2.bf16.msra.mxu0 0
        %4475 = vmatprep.subr.bf16.mxu0 0
        %4476 = vmatpush2.bf16.msra.mxu0 0
        %4477 = vmatprep.subr.bf16.mxu0 0
        %4478 = vmatpush2.bf16.msra.mxu0 0
        %4479 = vmatprep.subr.bf16.mxu0 0
        %4480 = vmatpush2.bf16.msra.mxu0 0
        %4481 = vmatprep.subr.bf16.mxu0 0
        %4482 = vmatpush2.bf16.msra.mxu0 0
        %4483 = vmatprep.mubr.bf16.mxu0 0
        %4484 = vmatmul.mubr.bf16.gmra.mxu0 %v4395
        %v4485 = vpop.f32.mrf.mxu0
        %v4486 = vadd.f32 0.0, %v4485
        %v4487 = vpop.f32.mrf.mxu0
        %v4488 = vpop.f32.mrf.mxu0
        %v4489 = vadd.f32 0.0, %v4488
        %v4490 = vpop.f32.mrf.mxu0
        %4491 = vmatprep.mubr.bf16.mxu0 0
        %4492 = vmatmul.mubr.bf16.gmra.mxu0 %v4396
        %v4493 = vpop.f32.mrf.mxu0
        %v4494 = vadd.f32 0.0, %v4493
        %v4495 = vpop.f32.mrf.mxu0
        %v4496 = vpop.f32.mrf.mxu0
        %v4497 = vadd.f32 0.0, %v4496
        %v4498 = vpop.f32.mrf.mxu0
        %4499 = vmatprep.mubr.bf16.mxu0 0
        %4500 = vmatmul.mubr.bf16.gmra.mxu0 %v4397
        %v4501 = vpop.f32.mrf.mxu0
        %v4502 = vadd.f32 0.0, %v4501
        %v4503 = vpop.f32.mrf.mxu0
        %v4504 = vpop.f32.mrf.mxu0
        %v4505 = vadd.f32 0.0, %v4504
        %v4506 = vpop.f32.mrf.mxu0
        %4507 = vmatprep.mubr.bf16.mxu0 0
        %4508 = vmatmul.mubr.bf16.gmra.mxu0 %v4398
        %v4509 = vpop.f32.mrf.mxu0
        %v4510 = vadd.f32 0.0, %v4509
        %v4511 = vpop.f32.mrf.mxu0
        %v4512 = vpop.f32.mrf.mxu0
        %v4513 = vadd.f32 0.0, %v4512
        %v4514 = vpop.f32.mrf.mxu0
        %4515 = vdwg.mxu0
        %v4516 = vadd.f32 %v4368, %v4486
        %v4517 = vadd.f32 %v4369, %v4489
        %v4518 = vadd.f32 %v4370, %v4494
        %v4519 = vadd.f32 %v4371, %v4497
        %v4520 = vadd.f32 %v4372, %v4502
        %v4521 = vadd.f32 %v4373, %v4505
        %v4522 = vadd.f32 %v4374, %v4510
        %v4523 = vadd.f32 %v4375, %v4513
        %v4526 = vunpack.c.l.b16 %v3738
        %v4527 = vunpack.c.l.b16 %v3739
        %s4528 = scalar_lea.vmem %s5, 256
        %v4529 = vld [vmem:[%s4528] sm:$0xf]
        %v4530 = vld [vmem:[%s4528 + $0x4] sm:$0xf]
        %v4531 = vld [vmem:[%s4528 + $0x8] sm:$0xf]
        %v4532 = vld [vmem:[%s4528 + $0xc] sm:$0xf]
        %v4533 = vld [vmem:[%s4528 + $0x10] sm:$0xf]
        %v4534 = vld [vmem:[%s4528 + $0x14] sm:$0xf]
        %v4535 = vld [vmem:[%s4528 + $0x18] sm:$0xf]
        %v4536 = vld [vmem:[%s4528 + $0x1c] sm:$0xf]
        %v4537 = vld [vmem:[%s4528 + $0x20] sm:$0xf]
        %v4538 = vld [vmem:[%s4528 + $0x24] sm:$0xf]
        %v4539 = vld [vmem:[%s4528 + $0x28] sm:$0xf]
        %v4540 = vld [vmem:[%s4528 + $0x2c] sm:$0xf]
        %v4541 = vld [vmem:[%s4528 + $0x30] sm:$0xf]
        %v4542 = vld [vmem:[%s4528 + $0x34] sm:$0xf]
        %v4543 = vld [vmem:[%s4528 + $0x38] sm:$0xf]
        %v4544 = vld [vmem:[%s4528 + $0x3c] sm:$0xf]
        %v4545 = vld [vmem:[%s4528 + $0x40] sm:$0xf]
        %v4546 = vld [vmem:[%s4528 + $0x44] sm:$0xf]
        %v4547 = vld [vmem:[%s4528 + $0x48] sm:$0xf]
        %v4548 = vld [vmem:[%s4528 + $0x4c] sm:$0xf]
        %v4549 = vld [vmem:[%s4528 + $0x50] sm:$0xf]
        %v4550 = vld [vmem:[%s4528 + $0x54] sm:$0xf]
        %v4551 = vld [vmem:[%s4528 + $0x58] sm:$0xf]
        %v4552 = vld [vmem:[%s4528 + $0x5c] sm:$0xf]
        %v4553 = vld [vmem:[%s4528 + $0x60] sm:$0xf]
        %v4554 = vld [vmem:[%s4528 + $0x64] sm:$0xf]
        %v4555 = vld [vmem:[%s4528 + $0x68] sm:$0xf]
        %v4556 = vld [vmem:[%s4528 + $0x6c] sm:$0xf]
        %v4557 = vld [vmem:[%s4528 + $0x70] sm:$0xf]
        %v4558 = vld [vmem:[%s4528 + $0x74] sm:$0xf]
        %v4559 = vld [vmem:[%s4528 + $0x78] sm:$0xf]
        %v4560 = vld [vmem:[%s4528 + $0x7c] sm:$0xf]
        %v4561 = vpack.c.b16 %v4526, %v4156
        %v4562 = vpack.c.b16 %v4527, %v4157
        %v4597 = vunpack.c.l.b16 %v4529
        %v4598 = vunpack.c.l.b16 %v4530
        %v4599 = vunpack.c.l.b16 %v4531
        %v4600 = vunpack.c.l.b16 %v4532
        %v4601 = vunpack.c.l.b16 %v4533
        %v4602 = vunpack.c.l.b16 %v4534
        %v4603 = vunpack.c.l.b16 %v4535
        %v4604 = vunpack.c.l.b16 %v4536
        %v4605 = vunpack.c.l.b16 %v4537
        %v4606 = vunpack.c.l.b16 %v4538
        %v4607 = vunpack.c.l.b16 %v4539
        %v4608 = vunpack.c.l.b16 %v4540
        %v4609 = vunpack.c.l.b16 %v4541
        %v4610 = vunpack.c.l.b16 %v4542
        %v4611 = vunpack.c.l.b16 %v4543
        %v4612 = vunpack.c.l.b16 %v4544
        %v4613 = vunpack.c.l.b16 %v4545
        %v4614 = vunpack.c.l.b16 %v4546
        %v4615 = vunpack.c.l.b16 %v4547
        %v4616 = vunpack.c.l.b16 %v4548
        %v4617 = vunpack.c.l.b16 %v4549
        %v4618 = vunpack.c.l.b16 %v4550
        %v4619 = vunpack.c.l.b16 %v4551
        %v4620 = vunpack.c.l.b16 %v4552
        %v4621 = vunpack.c.l.b16 %v4553
        %v4622 = vunpack.c.l.b16 %v4554
        %v4623 = vunpack.c.l.b16 %v4555
        %v4624 = vunpack.c.l.b16 %v4556
        %v4625 = vunpack.c.l.b16 %v4557
        %v4626 = vunpack.c.l.b16 %v4558
        %v4627 = vunpack.c.l.b16 %v4559
        %v4628 = vunpack.c.l.b16 %v4560
        %v4629 = vpack.c.b16 %v4598, %v4597
        %v4630 = vpack.c.b16 %v4600, %v4599
        %v4631 = vpack.c.b16 %v4602, %v4601
        %v4632 = vpack.c.b16 %v4604, %v4603
        %v4633 = vpack.c.b16 %v4606, %v4605
        %v4634 = vpack.c.b16 %v4608, %v4607
        %v4635 = vpack.c.b16 %v4610, %v4609
        %v4636 = vpack.c.b16 %v4612, %v4611
        %v4637 = vpack.c.b16 %v4614, %v4613
        %v4638 = vpack.c.b16 %v4616, %v4615
        %v4639 = vpack.c.b16 %v4618, %v4617
        %v4640 = vpack.c.b16 %v4620, %v4619
        %v4641 = vpack.c.b16 %v4622, %v4621
        %v4642 = vpack.c.b16 %v4624, %v4623
        %v4643 = vpack.c.b16 %v4626, %v4625
        %v4644 = vpack.c.b16 %v4628, %v4627
        %4661 = vmatprep.subr.bf16.mxu0 0
        %4662 = vmatpush1.bf16.msra.mxu0 %v4636
        %4663 = vmatprep.subr.bf16.mxu0 0
        %4664 = vmatpush1.bf16.msra.mxu0 %v4635
        %4665 = vmatprep.subr.bf16.mxu0 0
        %4666 = vmatpush1.bf16.msra.mxu0 %v4634
        %4667 = vmatprep.subr.bf16.mxu0 0
        %4668 = vmatpush1.bf16.msra.mxu0 %v4633
        %4669 = vmatprep.subr.bf16.mxu0 0
        %4670 = vmatpush1.bf16.msra.mxu0 %v4632
        %4671 = vmatprep.subr.bf16.mxu0 0
        %4672 = vmatpush1.bf16.msra.mxu0 %v4631
        %4673 = vmatprep.subr.bf16.mxu0 0
        %4674 = vmatpush1.bf16.msra.mxu0 %v4630
        %4675 = vmatprep.subr.bf16.mxu0 0
        %4676 = vmatpush1.bf16.msra.mxu0 %v4629
        %4677 = vmatprep.subr.bf16.mxu0 0
        %4678 = vmatpush2.bf16.msra.mxu0 %v4644
        %4679 = vmatprep.subr.bf16.mxu0 0
        %4680 = vmatpush2.bf16.msra.mxu0 %v4643
        %4681 = vmatprep.subr.bf16.mxu0 0
        %4682 = vmatpush2.bf16.msra.mxu0 %v4642
        %4683 = vmatprep.subr.bf16.mxu0 0
        %4684 = vmatpush2.bf16.msra.mxu0 %v4641
        %4685 = vmatprep.subr.bf16.mxu0 0
        %4686 = vmatpush2.bf16.msra.mxu0 %v4640
        %4687 = vmatprep.subr.bf16.mxu0 0
        %4688 = vmatpush2.bf16.msra.mxu0 %v4639
        %4689 = vmatprep.subr.bf16.mxu0 0
        %4690 = vmatpush2.bf16.msra.mxu0 %v4638
        %4691 = vmatprep.subr.bf16.mxu0 0
        %4692 = vmatpush2.bf16.msra.mxu0 %v4637
        %4693 = vmatprep.mubr.bf16.mxu0 %v3980
        %4694 = vmatmul.mubr.bf16.gmra.mxu0 %v3979
        %v4695 = vpop.f32.mrf.mxu0
        %v4696 = vadd.f32 0.0, %v4695
        %v4697 = vpop.f32.mrf.mxu0
        %v4698 = vpop.f32.mrf.mxu0
        %v4699 = vadd.f32 0.0, %v4698
        %v4700 = vpop.f32.mrf.mxu0
        %4701 = vmatprep.mubr.bf16.mxu0 %v3982
        %4702 = vmatmul.mubr.bf16.gmra.mxu0 %v3981
        %v4703 = vpop.f32.mrf.mxu0
        %v4704 = vadd.f32 0.0, %v4703
        %v4705 = vpop.f32.mrf.mxu0
        %v4706 = vpop.f32.mrf.mxu0
        %v4707 = vadd.f32 0.0, %v4706
        %v4708 = vpop.f32.mrf.mxu0
        %4709 = vmatprep.mubr.bf16.mxu0 %v3984
        %4710 = vmatmul.mubr.bf16.gmra.mxu0 %v3983
        %v4711 = vpop.f32.mrf.mxu0
        %v4712 = vadd.f32 0.0, %v4711
        %v4713 = vpop.f32.mrf.mxu0
        %v4714 = vpop.f32.mrf.mxu0
        %v4715 = vadd.f32 0.0, %v4714
        %v4716 = vpop.f32.mrf.mxu0
        %4717 = vmatprep.mubr.bf16.mxu0 %v4562
        %4718 = vmatmul.mubr.bf16.gmra.mxu0 %v4561
        %v4719 = vpop.f32.mrf.mxu0
        %v4720 = vadd.f32 0.0, %v4719
        %v4721 = vpop.f32.mrf.mxu0
        %v4722 = vpop.f32.mrf.mxu0
        %v4723 = vadd.f32 0.0, %v4722
        %v4724 = vpop.f32.mrf.mxu0
        %4725 = vdwg.mxu0
        %v4726 = vadd.f32 %v4516, %v4696
        %v4727 = vadd.f32 %v4517, %v4699
        %v4728 = vadd.f32 %v4518, %v4704
        %v4729 = vadd.f32 %v4519, %v4707
        %v4730 = vadd.f32 %v4520, %v4712
        %v4731 = vadd.f32 %v4521, %v4715
        %v4732 = vadd.f32 %v4522, %v4720
        %v4733 = vadd.f32 %v4523, %v4723
        %s4734 = scalar_lea.vmem %s6, 128
        %v4735 = vld [vmem:[%s4734] sm:$0xf]
        %v4736 = vld [vmem:[%s4734 + $0x4] sm:$0xf]
        %v4737 = vld [vmem:[%s4734 + $0x8] sm:$0xf]
        %v4738 = vld [vmem:[%s4734 + $0xc] sm:$0xf]
        %v4739 = vld [vmem:[%s4734 + $0x10] sm:$0xf]
        %v4740 = vld [vmem:[%s4734 + $0x14] sm:$0xf]
        %v4741 = vld [vmem:[%s4734 + $0x18] sm:$0xf]
        %v4742 = vld [vmem:[%s4734 + $0x1c] sm:$0xf]
        %v4743 = vld [vmem:[%s4734 + $0x20] sm:$0xf]
        %v4744 = vld [vmem:[%s4734 + $0x24] sm:$0xf]
        %v4745 = vld [vmem:[%s4734 + $0x28] sm:$0xf]
        %v4746 = vld [vmem:[%s4734 + $0x2c] sm:$0xf]
        %v4747 = vld [vmem:[%s4734 + $0x30] sm:$0xf]
        %v4748 = vld [vmem:[%s4734 + $0x34] sm:$0xf]
        %v4749 = vld [vmem:[%s4734 + $0x38] sm:$0xf]
        %v4750 = vld [vmem:[%s4734 + $0x3c] sm:$0xf]
        %v4752 = vunpack.c.l.b16 %v3759
        %v4753 = vpack.c.b16 %v4752, %v4394
        %v4771 = vunpack.c.l.b16 %v4735
        %v4772 = vunpack.c.l.b16 %v4736
        %v4773 = vunpack.c.l.b16 %v4737
        %v4774 = vunpack.c.l.b16 %v4738
        %v4775 = vunpack.c.l.b16 %v4739
        %v4776 = vunpack.c.l.b16 %v4740
        %v4777 = vunpack.c.l.b16 %v4741
        %v4778 = vunpack.c.l.b16 %v4742
        %v4779 = vunpack.c.l.b16 %v4743
        %v4780 = vunpack.c.l.b16 %v4744
        %v4781 = vunpack.c.l.b16 %v4745
        %v4782 = vunpack.c.l.b16 %v4746
        %v4783 = vunpack.c.l.b16 %v4747
        %v4784 = vunpack.c.l.b16 %v4748
        %v4785 = vunpack.c.l.b16 %v4749
        %v4786 = vunpack.c.l.b16 %v4750
        %v4787 = vpack.c.b16 %v4772, %v4771
        %v4788 = vpack.c.b16 %v4774, %v4773
        %v4789 = vpack.c.b16 %v4776, %v4775
        %v4790 = vpack.c.b16 %v4778, %v4777
        %v4791 = vpack.c.b16 %v4780, %v4779
        %v4792 = vpack.c.b16 %v4782, %v4781
        %v4793 = vpack.c.b16 %v4784, %v4783
        %v4794 = vpack.c.b16 %v4786, %v4785
        %4803 = vmatprep.subr.bf16.mxu0 0
        %4804 = vmatpush1.bf16.msra.mxu0 %v4794
        %4805 = vmatprep.subr.bf16.mxu0 0
        %4806 = vmatpush1.bf16.msra.mxu0 %v4793
        %4807 = vmatprep.subr.bf16.mxu0 0
        %4808 = vmatpush1.bf16.msra.mxu0 %v4792
        %4809 = vmatprep.subr.bf16.mxu0 0
        %4810 = vmatpush1.bf16.msra.mxu0 %v4791
        %4811 = vmatprep.subr.bf16.mxu0 0
        %4812 = vmatpush1.bf16.msra.mxu0 %v4790
        %4813 = vmatprep.subr.bf16.mxu0 0
        %4814 = vmatpush1.bf16.msra.mxu0 %v4789
        %4815 = vmatprep.subr.bf16.mxu0 0
        %4816 = vmatpush1.bf16.msra.mxu0 %v4788
        %4817 = vmatprep.subr.bf16.mxu0 0
        %4818 = vmatpush1.bf16.msra.mxu0 %v4787
        %4819 = vmatprep.subr.bf16.mxu0 0
        %4820 = vmatpush2.bf16.msra.mxu0 0
        %4821 = vmatprep.subr.bf16.mxu0 0
        %4822 = vmatpush2.bf16.msra.mxu0 0
        %4823 = vmatprep.subr.bf16.mxu0 0
        %4824 = vmatpush2.bf16.msra.mxu0 0
        %4825 = vmatprep.subr.bf16.mxu0 0
        %4826 = vmatpush2.bf16.msra.mxu0 0
        %4827 = vmatprep.subr.bf16.mxu0 0
        %4828 = vmatpush2.bf16.msra.mxu0 0
        %4829 = vmatprep.subr.bf16.mxu0 0
        %4830 = vmatpush2.bf16.msra.mxu0 0
        %4831 = vmatprep.subr.bf16.mxu0 0
        %4832 = vmatpush2.bf16.msra.mxu0 0
        %4833 = vmatprep.subr.bf16.mxu0 0
        %4834 = vmatpush2.bf16.msra.mxu0 0
        %4835 = vmatprep.mubr.bf16.mxu0 0
        %4836 = vmatmul.mubr.bf16.gmra.mxu0 %v3857
        %v4837 = vpop.f32.mrf.mxu0
        %v4838 = vadd.f32 0.0, %v4837
        %v4839 = vpop.f32.mrf.mxu0
        %v4840 = vpop.f32.mrf.mxu0
        %v4841 = vadd.f32 0.0, %v4840
        %v4842 = vpop.f32.mrf.mxu0
        %4843 = vmatprep.mubr.bf16.mxu0 0
        %4844 = vmatmul.mubr.bf16.gmra.mxu0 %v3858
        %v4845 = vpop.f32.mrf.mxu0
        %v4846 = vadd.f32 0.0, %v4845
        %v4847 = vpop.f32.mrf.mxu0
        %v4848 = vpop.f32.mrf.mxu0
        %v4849 = vadd.f32 0.0, %v4848
        %v4850 = vpop.f32.mrf.mxu0
        %4851 = vmatprep.mubr.bf16.mxu0 0
        %4852 = vmatmul.mubr.bf16.gmra.mxu0 %v3859
        %v4853 = vpop.f32.mrf.mxu0
        %v4854 = vadd.f32 0.0, %v4853
        %v4855 = vpop.f32.mrf.mxu0
        %v4856 = vpop.f32.mrf.mxu0
        %v4857 = vadd.f32 0.0, %v4856
        %v4858 = vpop.f32.mrf.mxu0
        %4859 = vmatprep.mubr.bf16.mxu0 0
        %4860 = vmatmul.mubr.bf16.gmra.mxu0 %v4753
        %v4861 = vpop.f32.mrf.mxu0
        %v4862 = vadd.f32 0.0, %v4861
        %v4863 = vpop.f32.mrf.mxu0
        %v4864 = vpop.f32.mrf.mxu0
        %v4865 = vadd.f32 0.0, %v4864
        %v4866 = vpop.f32.mrf.mxu0
        %4867 = vdwg.mxu0
        %v4868 = vadd.f32 %v4726, %v4838
        %v4869 = vadd.f32 %v4727, %v4841
        %v4870 = vadd.f32 %v4728, %v4846
        %v4871 = vadd.f32 %v4729, %v4849
        %v4872 = vadd.f32 %v4730, %v4854
        %v4873 = vadd.f32 %v4731, %v4857
        %v4874 = vadd.f32 %v4732, %v4862
        %v4875 = vadd.f32 %v4733, %v4865
        %v4876 = vmax.f32 %v4868, 0.0
        %v4877 = vmax.f32 %v4869, 0.0
        %v4878 = vmax.f32 %v4870, 0.0
        %v4879 = vmax.f32 %v4871, 0.0
        %v4880 = vmax.f32 %v4872, 0.0
        %v4881 = vmax.f32 %v4873, 0.0
        %v4882 = vmax.f32 %v4874, 0.0
        %v4883 = vmax.f32 %v4875, 0.0
        %4884 = vst [vmem:[%s271] sm:$0xff] %v4876
        %4885 = vst [vmem:[%s271 + $0x8] sm:$0xff] %v4877
        %4886 = vst [vmem:[%s271 + $0x10] sm:$0xff] %v4878
        %4887 = vst [vmem:[%s271 + $0x18] sm:$0xff] %v4879
        %4888 = vst [vmem:[%s271 + $0x20] sm:$0xff] %v4880
        %4889 = vst [vmem:[%s271 + $0x28] sm:$0xff] %v4881
        %4890 = vst [vmem:[%s271 + $0x30] sm:$0xff] %v4882
        %4891 = vst [vmem:[%s271 + $0x38] sm:$0xff] %v4883
        %s4892 = sand.u32 %s181, 1
        %s4893 = scalar_lea.sflag [#allocation6], %s4892
        %s4894 = sand.u32 %s181, 1
        %s4895 = smul.addr %s4894, 64
        %s4896 = scalar_lea.vmem [#allocation5], %s4895
        // Predicated region
        $region49: #{feature_conv.1} parent=47 // pred_check
          %p4897 = pneg %p191
        $region50: #{feature_conv.1} parent=47 // pred_check_branch
          %4899 = sbr.rel (%p4897) target = $region52
        $region51: #{feature_conv.1} parent=47 // pred_region
          %s4901 = ssub.s32 1024, 1024
          %4902 = vsyncadd %s4893, %s4901
          %s4903 = smul.addr %s21, 8
          %s4904 = smul.addr %s4903, 128
          %s4905 = scalar_lea.hbm %s7, %s4904
          %s4906 = sshll.u32 %s4896, 4
          %s4907 = int_to_ptr.vmem [resolvable:$true] %s4906
          %4912 = dma.vmem_to_hbm [thread:$0]  %s4907, 1024, %s4905, %s4893, 128, 128, 8
        $region52: #{feature_conv.1} parent=47 // pred_fallthru
          _
      $region48: #{feature_conv.1} parent=5 // pred_fallthru
        _
      %p4913 = scmp.le.s32.totalorder 2, %s16
      // Predicated region
      $region53: #{feature_conv.1} parent=5 // pred_check
        %p4914 = pneg %p4913
      $region54: #{feature_conv.1} parent=5 // pred_check_branch
        %4916 = sbr.rel (%p4914) target = $region56
      $region55: #{feature_conv.1} parent=5 // pred_region
        %s4917 = ssub.s32 %s16, 2
        // Predicated region
        $region57: #{feature_conv.1} parent=55 // pred_check
          %p4918 = pneg %p197
        $region58: #{feature_conv.1} parent=55 // pred_check_branch
          %4920 = sbr.rel (%p4918) target = $region60
        $region59: #{feature_conv.1} parent=55 // pred_region
          %s4921 = sand.u32 %s182, 1
          %s4922 = scalar_lea.sflag [#allocation6], %s4921
          %s4923 = sand.u32 %s182, 1
          %s4924 = smul.addr %s4923, 64
          %s4925 = scalar_lea.vmem [#allocation5], %s4924
          %4926 = dma.done %s4922, 1024
        $region60: #{feature_conv.1} parent=55 // pred_fallthru
          _
      $region56: #{feature_conv.1} parent=5 // pred_fallthru
        _
    $region6: #{feature_conv.1} parent=1 // loop_footer
      %s20 = sadd.s32 1, %s16
    $region7: #{feature_conv.1} parent=1 // loop_footer_branch
      %15 = sbr.rel target = $region3
    $region8: #{feature_conv.1} parent=1 // loop_exit
      _
    %4927 = vsyncpa [#allocation6], 1
    %s4928 = scalar_lea.sflag [#allocation6], 1
    %4929 = vsyncpa %s4928, 1

</llo_original>
